<compile_context>
chip_gen: v6e
topology: v6e:2x2x1
jax: 0.10.0
libtpu: 0.0.40
codegen_flags: <defaults>
</compile_context>

<pallas_src>
import numpy as np
import jax
import jax.numpy as jnp
from jax.experimental import pallas as pl
from jax.experimental.pallas import tpu as pltpu

BN_EPS = 1e-5


def _round_up(a, b):
    return (a + b - 1) // b * b


# ------------------------------------------------------------------------------ kernel
def aux_head_kernel(x_ref, wa_ref, ba_ref, wb_ref, bb_ref, wc_ref, bc_ref,
                    out_ref, acc_ref):
    """Grid = (batch tiles [parallel], K blocks of C*64 [arbitrary]).

    x_ref  : (TILE_N, TILE_K)   raw NCHW-flattened input slice (col = c*64 + h*8 + w)
    wa_ref : (TILE_K, 512)      fused [AvgPool(5,3) + Conv1x1 + BN1.scale] K block
    ba_ref : (1, 512)           BN1 bias, tiled per 2x2 spatial position
    wb_ref : (512, 768)         Conv2x2 (row = (kh*2+kw)*128 + c), BN2.scale folded
    bb_ref : (1, 768)           BN2 bias
    wc_ref : (768, OUT_PAD)     classifier weight, lane-padded
    bc_ref : (1, OUT_PAD)       classifier bias, lane-padded
    acc_ref: (TILE_N, 512) f32  stage-1 accumulator, persists across the K axis
    """
    k = pl.program_id(1)

    @pl.when(k == 0)
    def _():
        acc_ref[...] = jnp.zeros_like(acc_ref)

    # ReLU precedes the pooling in the PyTorch module; cast to the weight dtype so the
    # MXU runs the bf16 x bf16 -> f32 fast path (no-op on the f32 validation path).
    x = jnp.maximum(x_ref[...], 0).astype(wa_ref.dtype)
    acc_ref[...] += jnp.dot(x, wa_ref[...], preferred_element_type=jnp.float32)

    @pl.when(k == pl.num_programs(1) - 1)
    def _():
        # Stage 1 epilogue: BN1 bias + ReLU -> (TILE_N, 512), cols = p*128 + o
        y = jnp.maximum(acc_ref[...] + ba_ref[...], 0.0)
        # Stage 2: 2x2 conv over the 2x2 map == full contraction over (p, channel)
        z = jnp.dot(y.astype(wb_ref.dtype), wb_ref[...],
                    preferred_element_type=jnp.float32)
        z = jnp.maximum(z + bb_ref[...], 0.0)
        # Stage 3: classifier (lane-padded output width -> unmasked vst)
        o = jnp.dot(z.astype(wc_ref.dtype), wc_ref[...],
                    preferred_element_type=jnp.float32) + bc_ref[...]
        out_ref[...] = o.astype(out_ref.dtype)


# ----------------------------------------------------------------------- operand folding
def _make_pool_matrix():
    """(4, 64): AvgPool2d(5, stride=3, pad=0) on an 8x8 map -> 2x2; row = ph*2+pw."""
    p = np.zeros((4, 64), np.float32)
    for ph in range(2):
        for pw in range(2):
            r = ph * 2 + pw
            for h in range(ph * 3, ph * 3 + 5):
                for w in range(pw * 3, pw * 3 + 5):
                    p[r, h * 8 + w] = 1.0 / 25.0
    return p


def _fold_bn(gamma, beta, mean, var, eps=BN_EPS):
    s = gamma / jnp.sqrt(var + eps)
    return s, beta - mean * s


def prepare_aux_head(params, *, compute_dtype=jnp.bfloat16):
    """Fold BN scales / pooling into the weights ONCE, at model-load time.

    Returns a dict of device arrays + static metadata for aux_head_forward. Rebuilding
    the C*32768-element fused weight per forward call would dominate the latency-bound
    aux-head invocation, so keep this out of the hot path.
    """
    C = params["conv1_w"].shape[1]
    num_classes = params["fc_b"].shape[0]

    s1, b1 = _fold_bn(params["bn1_g"], params["bn1_b"], params["bn1_m"], params["bn1_v"])
    s2, b2 = _fold_bn(params["bn2_g"], params["bn2_b"], params["bn2_m"], params["bn2_v"])

    pool = jnp.asarray(_make_pool_matrix())                       # (4, 64)
    w1 = params["conv1_w"].reshape(128, C).T * s1[None, :]        # (C, 128), BN1 scale folded
    # Fused stage-1 weight: wa[c*64+s, p*128+o] = pool[p, s] * w1[c, o]
    wa = jnp.einsum("ps,co->cspo", pool, w1).reshape(C * 64, 4 * 128)
    ba = jnp.tile(b1.reshape(1, 128), (1, 4))                     # (1, 512): col p*128+o -> b1[o]

    # Stage-2 weight: (768,128,2,2) OIHW -> (kh,kw,c,out) -> (512,768); BN2 scale folded.
    wb = jnp.transpose(params["conv2_w"], (2, 3, 1, 0)).reshape(4 * 128, 768) * s2[None, :]
    bb = b2.reshape(1, 768)

    out_pad = max(128, _round_up(num_classes, 128))               # lane-dense classifier
    wc = jnp.zeros((768, out_pad), jnp.float32).at[:, :num_classes].set(params["fc_w"].T)
    bc = jnp.zeros((1, out_pad), jnp.float32).at[0, :num_classes].set(params["fc_b"])

    # Biases stay f32: they add onto f32 MXU accumulators.
    return {
        "wa": wa.astype(compute_dtype), "ba": ba.astype(jnp.float32),
        "wb": wb.astype(compute_dtype), "bb": bb.astype(jnp.float32),
        "wc": wc.astype(compute_dtype), "bc": bc.astype(jnp.float32),
        "C": C, "num_classes": num_classes, "out_pad": out_pad,
    }


# --------------------------------------------------------------------------- tiling picks
def _pick_tile_n(n):
    """Batch tile: sublane/MXU friendly, >= 2 tiles whenever n > 8 (keeps both v7x
    TensorCores busy), and sized to limit last-tile waste for large n."""
    if n <= 8:
        return n                                        # single exact tile
    if n <= 16:
        return 8
    if n <= 512:
        return _round_up((n + 1) // 2, 16)              # exactly 2 tiles
    return 128 if (n % 256) and (n % 256) <= 128 else 256


def _pick_tile_k(C, w_itemsize):
    """K block over the C*64 reduction of the fused stage-1 GEMM. Single resident K
    step when wa is small; otherwise stream wa in bounded blocks so VMEM use is
    independent of C (wa is a 64x-redundant blow-up of conv1)."""
    K = C * 64
    budget = 6 << 20                                    # bytes of wa per K block
    if K * 512 * w_itemsize <= budget:
        return K
    max_kc = max(1, budget // (64 * 512 * w_itemsize))
    kc = 1
    for d in range(1, min(C, max_kc) + 1):              # largest divisor of C <= max_kc
        if C % d == 0:                                   # (prime C degrades to kc=1: correct, slower)
            kc = d
    return kc * 64


def _vmem_capacity_bytes():
    try:
        return int(pltpu.get_tpu_info().vmem_capacity_bytes)
    except Exception:
        return 64 << 20                                  # conservative: smallest gen (v7x)


# ------------------------------------------------------------------------------ entry point
def _build_call(out_pad, N, tile_n, tile_k, n_tiles, k_tiles, vmem_limit,
                single_buffer_resident):
    const_map = lambda i, k: (0, 0)

    def const_spec(shape):
        if single_buffer_resident:
            # Never-changing block: one VMEM buffer instead of the default two.
            return pl.BlockSpec(shape, const_map, pipeline_mode=pl.Buffered(1))
        return pl.BlockSpec(shape, const_map)

    if k_tiles == 1:
        wa_spec = const_spec((tile_k, 512))              # fused stage-1 weight stays resident
    else:
        wa_spec = pl.BlockSpec((tile_k, 512), lambda i, k: (k, 0))   # streamed K blocks

    return pl.pallas_call(
        aux_head_kernel,
        out_shape=jax.ShapeDtypeStruct((N, out_pad), jnp.float32),
        grid=(n_tiles, k_tiles),
        in_specs=[
            pl.BlockSpec((tile_n, tile_k), lambda i, k: (i, k)),     # streamed input tile
            wa_spec,
            const_spec((1, 4 * 128)),
            const_spec((4 * 128, 768)),
            const_spec((1, 768)),
            const_spec((768, out_pad)),
            const_spec((1, out_pad)),
        ],
        out_specs=pl.BlockSpec((tile_n, out_pad), lambda i, k: (i, 0)),
        scratch_shapes=[pltpu.VMEM((tile_n, 512), jnp.float32)],
        compiler_params=pltpu.CompilerParams(
            dimension_semantics=("parallel", "arbitrary"),
            vmem_limit_bytes=vmem_limit,
        ),
    )


def aux_head_forward(x_nchw, prepared):
    """x_nchw: (N, C, 8, 8) float (any float dtype). Returns (N, num_classes) float32."""
    N, C, H, W = x_nchw.shape
    assert H == 8 and W == 8, "AuxiliaryHeadCIFAR assumes an 8x8 input"
    assert C == prepared["C"]
    out_pad, num_classes = prepared["out_pad"], prepared["num_classes"]
    wa, ba, wb = prepared["wa"], prepared["ba"], prepared["wb"]
    bb, wc, bc = prepared["bb"], prepared["wc"], prepared["bc"]

    # Contiguous NCHW flatten (col = c*64 + h*8 + w): no transpose, no pad, no cast pass —
    # the kernel casts x to the weight dtype after the in-kernel ReLU.
    x_flat = x_nchw.reshape(N, C * 64)

    w_isz = jnp.dtype(wa.dtype).itemsize
    x_isz = jnp.dtype(x_flat.dtype).itemsize
    tile_n = _pick_tile_n(N)
    tile_k = _pick_tile_k(C, w_isz)
    assert (C * 64) % tile_k == 0                       # exact K blocks (no garbage in the reduction)
    n_tiles = -(-N // tile_n)
    k_tiles = (C * 64) // tile_k

    # Chip-aware VMEM budget; conservative 2x on residents so the pl.Buffered(1)
    # fallback path still fits. Includes f32 accumulator/intermediates + headroom.
    wa_bufs = 1 if k_tiles == 1 else 2
    resident = (wb.size + wc.size) * w_isz + (ba.size + bb.size + bc.size) * 4
    stream = (wa_bufs * tile_k * 512 * w_isz
              + 2 * tile_n * tile_k * x_isz
              + 2 * tile_n * out_pad * 4)
    interm = tile_n * 512 * 4 + tile_n * (512 + 768 + out_pad) * 4
    needed = 2 * resident + stream + interm + (6 << 20)
    vmem_limit = int(min(max(needed, 32 << 20), _vmem_capacity_bytes() - (2 << 20)))

    args = (x_flat, wa, ba, wb, bb, wc, bc)
    try:
        out = _build_call(out_pad, N, tile_n, tile_k, n_tiles, k_tiles, vmem_limit,
                          single_buffer_resident=True)(*args)
    except Exception:
        # This JAX/Mosaic build rejected pipeline_mode=pl.Buffered(1): use default buffering.
        out = _build_call(out_pad, N, tile_n, tile_k, n_tiles, k_tiles, vmem_limit,
                          single_buffer_resident=False)(*args)

    return out[:, :num_classes]


# ---------------------------------------------------------------------- reference & params
def reference_forward(x, params):
    """Pure-JAX reference (NCHW, lax conv / reduce_window) for validation."""
    def bn(t, g, b, m, v):
        return (t - m[None, :, None, None]) / jnp.sqrt(v[None, :, None, None] + BN_EPS) \
            * g[None, :, None, None] + b[None, :, None, None]

    h = jnp.maximum(x, 0.0)
    h = jax.lax.reduce_window(h, 0.0, jax.lax.add,
                              (1, 1, 5, 5), (1, 1, 3, 3), "VALID") / 25.0
    h = jax.lax.conv_general_dilated(h, params["conv1_w"], (1, 1), "VALID",
                                     dimension_numbers=("NCHW", "OIHW", "NCHW"))
    h = jnp.maximum(bn(h, params["bn1_g"], params["bn1_b"],
                       params["bn1_m"], params["bn1_v"]), 0.0)
    h = jax.lax.conv_general_dilated(h, params["conv2_w"], (1, 1), "VALID",
                                     dimension_numbers=("NCHW", "OIHW", "NCHW"))
    h = jnp.maximum(bn(h, params["bn2_g"], params["bn2_b"],
                       params["bn2_m"], params["bn2_v"]), 0.0)
    h = h.reshape(h.shape[0], -1)
    return h @ params["fc_w"].T + params["fc_b"]


def init_params(key, C, num_classes):
    ks = jax.random.split(key, 12)
    return {
        "conv1_w": jax.random.normal(ks[0], (128, C, 1, 1), jnp.float32) * 0.1,
        "bn1_g": jax.random.uniform(ks[1], (128,), jnp.float32, 0.5, 1.5),
        "bn1_b": jax.random.normal(ks[2], (128,), jnp.float32) * 0.1,
        "bn1_m": jax.random.normal(ks[3], (128,), jnp.float32) * 0.1,
        "bn1_v": jax.random.uniform(ks[4], (128,), jnp.float32, 0.5, 1.5),
        "conv2_w": jax.random.normal(ks[5], (768, 128, 2, 2), jnp.float32) * 0.05,
        "bn2_g": jax.random.uniform(ks[6], (768,), jnp.float32, 0.5, 1.5),
        "bn2_b": jax.random.normal(ks[7], (768,), jnp.float32) * 0.1,
        "bn2_m": jax.random.normal(ks[8], (768,), jnp.float32) * 0.1,
        "bn2_v": jax.random.uniform(ks[9], (768,), jnp.float32, 0.5, 1.5),
        "fc_w": jax.random.normal(ks[10], (num_classes, 768), jnp.float32) * 0.05,
        "fc_b": jax.random.normal(ks[11], (num_classes,), jnp.float32) * 0.1,
    }


if __name__ == "__main__":
    N, C, num_classes = 2, 4, 10          # module docstring requires an 8x8 spatial input
    key = jax.random.PRNGKey(0)
    kx, kp = jax.random.split(key)
    x = jax.random.normal(kx, (N, C, 8, 8), jnp.float32)
    params = init_params(kp, C, num_classes)

    ref = jax.block_until_ready(reference_forward(x, params))

    # f32 operands: strict check against the pure-JAX reference.
    prep_f32 = prepare_aux_head(params, compute_dtype=jnp.float32)
    out_f32 = jax.block_until_ready(aux_head_forward(x, prep_f32))
    assert out_f32.shape == (N, num_classes)
    np.testing.assert_allclose(np.asarray(out_f32), np.asarray(ref), rtol=1e-4, atol=1e-4)

    # bf16 operands (default fast path, f32 MXU accumulation): looser tolerance.
    prep = prepare_aux_head(params)        # compute_dtype=jnp.bfloat16 by default
    out = jax.block_until_ready(aux_head_forward(x, prep))
    assert out.shape == (N, num_classes)
    np.testing.assert_allclose(np.asarray(out), np.asarray(ref), rtol=5e-2, atol=5e-2)

    print("KERNEL_OK")
</pallas_src>

<mosaic_0001>
module attributes {stable_mosaic.version = 11 : i64} {
  func.func @aux_head_kernel(%arg0: i32, %arg1: i32, %arg2: memref<2x256xf32, #tpu.memory_space<vmem>>, %arg3: memref<256x512xf32, #tpu.memory_space<vmem>>, %arg4: memref<1x512xf32, #tpu.memory_space<vmem>>, %arg5: memref<512x768xf32, #tpu.memory_space<vmem>>, %arg6: memref<1x768xf32, #tpu.memory_space<vmem>>, %arg7: memref<768x128xf32, #tpu.memory_space<vmem>>, %arg8: memref<1x128xf32, #tpu.memory_space<vmem>>, %arg9: memref<2x128xf32, #tpu.memory_space<vmem>>, %arg10: memref<2x512xf32, #tpu.memory_space<vmem>>) attributes {dimension_semantics = [#tpu.dimension_semantics<parallel>, #tpu.dimension_semantics<arbitrary>], iteration_bounds = array<i64: 1, 1>, scalar_prefetch = 0 : i64, scratch_operands = 1 : i64, tpu.core_type = #tpu.core_type<tc>, window_params = [{transform_indices = @transform_0, window_bounds = array<i64: 2, 256>}, {pipeline_mode = #tpu.pipeline_mode<synchronous>, transform_indices = @transform_1, window_bounds = array<i64: 256, 512>}, {pipeline_mode = #tpu.pipeline_mode<synchronous>, transform_indices = @transform_2, window_bounds = array<i64: 1, 512>}, {pipeline_mode = #tpu.pipeline_mode<synchronous>, transform_indices = @transform_3, window_bounds = array<i64: 512, 768>}, {pipeline_mode = #tpu.pipeline_mode<synchronous>, transform_indices = @transform_4, window_bounds = array<i64: 1, 768>}, {pipeline_mode = #tpu.pipeline_mode<synchronous>, transform_indices = @transform_5, window_bounds = array<i64: 768, 128>}, {pipeline_mode = #tpu.pipeline_mode<synchronous>, transform_indices = @transform_6, window_bounds = array<i64: 1, 128>}, {transform_indices = @transform_7, window_bounds = array<i64: 2, 128>}]} {
    %c0_i32 = arith.constant 0 : i32
    %0 = arith.cmpi eq, %arg1, %c0_i32 : i32
    %1 = arith.extui %0 : i1 to i32
    %c0_i32_0 = arith.constant 0 : i32
    %2 = arith.cmpi ne, %1, %c0_i32_0 : i32
    scf.if %2 {
      %cst_11 = arith.constant 0.000000e+00 : f32
      %14 = vector.broadcast %cst_11 : f32 to vector<2x512xf32>
      %c0_12 = arith.constant 0 : index
      %c0_13 = arith.constant 0 : index
      %15 = vector.load %arg10[%c0_12, %c0_13] : memref<2x512xf32, #tpu.memory_space<vmem>>, vector<2x512xf32>
      tpu.vector_store %arg10[%c0_12, %c0_13], %14 {strides = array<i32>} : memref<2x512xf32, #tpu.memory_space<vmem>>, vector<2x512xf32>,
    } else {
    }
    %c0 = arith.constant 0 : index
    %c0_1 = arith.constant 0 : index
    %3 = vector.load %arg2[%c0, %c0_1] : memref<2x256xf32, #tpu.memory_space<vmem>>, vector<2x256xf32>
    %cst = arith.constant 0.000000e+00 : f32
    %4 = vector.broadcast %cst : f32 to vector<2x256xf32>
    %5 = arith.maximumf %3, %4 : vector<2x256xf32>
    %c0_2 = arith.constant 0 : index
    %c0_3 = arith.constant 0 : index
    %6 = vector.load %arg10[%c0_2, %c0_3] : memref<2x512xf32, #tpu.memory_space<vmem>>, vector<2x512xf32>
    %c0_4 = arith.constant 0 : index
    %c0_5 = arith.constant 0 : index
    %7 = vector.load %arg3[%c0_4, %c0_5] : memref<256x512xf32, #tpu.memory_space<vmem>>, vector<256x512xf32>
    %cst_6 = arith.constant dense<0.000000e+00> : vector<2x512xf32>
    %8 = tpu.matmul %5, %7, %cst_6 {dimension_numbers = #tpu.dot_dimension_numbers<[1], [0], [0], [1], [0, 0, 1, 1], [], []>} : vector<2x256xf32>, vector<256x512xf32>, vector<2x512xf32> -> vector<2x512xf32>
    %9 = arith.addf %6, %8 : vector<2x512xf32>
    %c0_7 = arith.constant 0 : index
    %c0_8 = arith.constant 0 : index
    %10 = vector.load %arg10[%c0_7, %c0_8] : memref<2x512xf32, #tpu.memory_space<vmem>>, vector<2x512xf32>
    tpu.vector_store %arg10[%c0_7, %c0_8], %9 {strides = array<i32>} : memref<2x512xf32, #tpu.memory_space<vmem>>, vector<2x512xf32>,
    %c0_i32_9 = arith.constant 0 : i32
    %11 = arith.cmpi eq, %arg1, %c0_i32_9 : i32
    %12 = arith.extui %11 : i1 to i32
    %c0_i32_10 = arith.constant 0 : i32
    %13 = arith.cmpi ne, %12, %c0_i32_10 : i32
    scf.if %13 {
      %c0_11 = arith.constant 0 : index
      %c0_12 = arith.constant 0 : index
      %14 = vector.load %arg10[%c0_11, %c0_12] : memref<2x512xf32, #tpu.memory_space<vmem>>, vector<2x512xf32>
      %c0_13 = arith.constant 0 : index
      %c0_14 = arith.constant 0 : index
      %15 = vector.load %arg4[%c0_13, %c0_14] : memref<1x512xf32, #tpu.memory_space<vmem>>, vector<1x512xf32>
      %16 = vector.broadcast %15 : vector<1x512xf32> to vector<2x512xf32>
      %17 = arith.addf %14, %16 : vector<2x512xf32>
      %cst_15 = arith.constant 0.000000e+00 : f32
      %18 = vector.broadcast %cst_15 : f32 to vector<2x512xf32>
      %19 = arith.maximumf %17, %18 : vector<2x512xf32>
      %c0_16 = arith.constant 0 : index
      %c0_17 = arith.constant 0 : index
      %20 = vector.load %arg5[%c0_16, %c0_17] : memref<512x768xf32, #tpu.memory_space<vmem>>, vector<512x768xf32>
      %cst_18 = arith.constant dense<0.000000e+00> : vector<2x768xf32>
      %21 = tpu.matmul %19, %20, %cst_18 {dimension_numbers = #tpu.dot_dimension_numbers<[1], [0], [0], [1], [0, 0, 1, 1], [], []>} : vector<2x512xf32>, vector<512x768xf32>, vector<2x768xf32> -> vector<2x768xf32>
      %c0_19 = arith.constant 0 : index
      %c0_20 = arith.constant 0 : index
      %22 = vector.load %arg6[%c0_19, %c0_20] : memref<1x768xf32, #tpu.memory_space<vmem>>, vector<1x768xf32>
      %23 = vector.broadcast %22 : vector<1x768xf32> to vector<2x768xf32>
      %24 = arith.addf %21, %23 : vector<2x768xf32>
      %cst_21 = arith.constant 0.000000e+00 : f32
      %25 = vector.broadcast %cst_21 : f32 to vector<2x768xf32>
      %26 = arith.maximumf %24, %25 : vector<2x768xf32>
      %c0_22 = arith.constant 0 : index
      %c0_23 = arith.constant 0 : index
      %27 = vector.load %arg7[%c0_22, %c0_23] : memref<768x128xf32, #tpu.memory_space<vmem>>, vector<768x128xf32>
      %cst_24 = arith.constant dense<0.000000e+00> : vector<2x128xf32>
      %28 = tpu.matmul %26, %27, %cst_24 {dimension_numbers = #tpu.dot_dimension_numbers<[1], [0], [0], [1], [0, 0, 1, 1], [], []>} : vector<2x768xf32>, vector<768x128xf32>, vector<2x128xf32> -> vector<2x128xf32>
      %c0_25 = arith.constant 0 : index
      %c0_26 = arith.constant 0 : index
      %29 = vector.load %arg8[%c0_25, %c0_26] : memref<1x128xf32, #tpu.memory_space<vmem>>, vector<1x128xf32>
      %30 = vector.broadcast %29 : vector<1x128xf32> to vector<2x128xf32>
      %31 = arith.addf %28, %30 : vector<2x128xf32>
      %c0_27 = arith.constant 0 : index
      %c0_28 = arith.constant 0 : index
      %32 = vector.load %arg9[%c0_27, %c0_28] : memref<2x128xf32, #tpu.memory_space<vmem>>, vector<2x128xf32>
      tpu.vector_store %arg9[%c0_27, %c0_28], %31 {strides = array<i32>} : memref<2x128xf32, #tpu.memory_space<vmem>>, vector<2x128xf32>,
    } else {
    }
    return
  }
  func.func @transform_0(%arg0: i32, %arg1: i32) -> (i32, i32) {
    %c0_i32 = arith.constant 0 : i32
    return %arg0, %arg1 : i32, i32
  }
  func.func @transform_1(%arg0: i32, %arg1: i32) -> (i32, i32) {
    %c0_i32 = arith.constant 0 : i32
    %c0_i32_0 = arith.constant 0 : i32
    %c0_i32_1 = arith.constant 0 : i32
    return %c0_i32, %c0_i32_0 : i32, i32
  }
  func.func @transform_2(%arg0: i32, %arg1: i32) -> (i32, i32) {
    %c0_i32 = arith.constant 0 : i32
    %c0_i32_0 = arith.constant 0 : i32
    %c0_i32_1 = arith.constant 0 : i32
    return %c0_i32, %c0_i32_0 : i32, i32
  }
  func.func @transform_3(%arg0: i32, %arg1: i32) -> (i32, i32) {
    %c0_i32 = arith.constant 0 : i32
    %c0_i32_0 = arith.constant 0 : i32
    %c0_i32_1 = arith.constant 0 : i32
    return %c0_i32, %c0_i32_0 : i32, i32
  }
  func.func @transform_4(%arg0: i32, %arg1: i32) -> (i32, i32) {
    %c0_i32 = arith.constant 0 : i32
    %c0_i32_0 = arith.constant 0 : i32
    %c0_i32_1 = arith.constant 0 : i32
    return %c0_i32, %c0_i32_0 : i32, i32
  }
  func.func @transform_5(%arg0: i32, %arg1: i32) -> (i32, i32) {
    %c0_i32 = arith.constant 0 : i32
    %c0_i32_0 = arith.constant 0 : i32
    %c0_i32_1 = arith.constant 0 : i32
    return %c0_i32, %c0_i32_0 : i32, i32
  }
  func.func @transform_6(%arg0: i32, %arg1: i32) -> (i32, i32) {
    %c0_i32 = arith.constant 0 : i32
    %c0_i32_0 = arith.constant 0 : i32
    %c0_i32_1 = arith.constant 0 : i32
    return %c0_i32, %c0_i32_0 : i32, i32
  }
  func.func @transform_7(%arg0: i32, %arg1: i32) -> (i32, i32) {
    %c0_i32 = arith.constant 0 : i32
    %c0_i32_0 = arith.constant 0 : i32
    return %arg0, %c0_i32 : i32, i32
  }
}

module attributes {stable_mosaic.version = 11 : i64} {
  func.func @aux_head_kernel(%arg0: i32, %arg1: i32, %arg2: memref<2x256xf32, #tpu.memory_space<vmem>>, %arg3: memref<256x512xf32, #tpu.memory_space<vmem>>, %arg4: memref<1x512xf32, #tpu.memory_space<vmem>>, %arg5: memref<512x768xf32, #tpu.memory_space<vmem>>, %arg6: memref<1x768xf32, #tpu.memory_space<vmem>>, %arg7: memref<768x128xf32, #tpu.memory_space<vmem>>, %arg8: memref<1x128xf32, #tpu.memory_space<vmem>>, %arg9: memref<2x128xf32, #tpu.memory_space<vmem>>, %arg10: memref<2x512xf32, #tpu.memory_space<vmem>>) attributes {dimension_semantics = [#tpu.dimension_semantics<parallel>, #tpu.dimension_semantics<arbitrary>], iteration_bounds = array<i64: 1, 1>, scalar_prefetch = 0 : i64, scratch_operands = 1 : i64, tpu.core_type = #tpu.core_type<tc>, window_params = [{transform_indices = @transform_0, window_bounds = array<i64: 2, 256>}, {pipeline_mode = #tpu.pipeline_mode<synchronous>, transform_indices = @transform_1, window_bounds = array<i64: 256, 512>}, {pipeline_mode = #tpu.pipeline_mode<synchronous>, transform_indices = @transform_2, window_bounds = array<i64: 1, 512>}, {pipeline_mode = #tpu.pipeline_mode<synchronous>, transform_indices = @transform_3, window_bounds = array<i64: 512, 768>}, {pipeline_mode = #tpu.pipeline_mode<synchronous>, transform_indices = @transform_4, window_bounds = array<i64: 1, 768>}, {pipeline_mode = #tpu.pipeline_mode<synchronous>, transform_indices = @transform_5, window_bounds = array<i64: 768, 128>}, {pipeline_mode = #tpu.pipeline_mode<synchronous>, transform_indices = @transform_6, window_bounds = array<i64: 1, 128>}, {transform_indices = @transform_7, window_bounds = array<i64: 2, 128>}]} {
    %c0_i32 = arith.constant 0 : i32
    %0 = arith.cmpi eq, %arg1, %c0_i32 : i32
    %1 = arith.extui %0 : i1 to i32
    %c0_i32_0 = arith.constant 0 : i32
    %2 = arith.cmpi ne, %1, %c0_i32_0 : i32
    scf.if %2 {
      %cst_11 = arith.constant 0.000000e+00 : f32
      %14 = vector.broadcast %cst_11 : f32 to vector<2x512xf32>
      %c0_12 = arith.constant 0 : index
      %c0_13 = arith.constant 0 : index
      %15 = vector.load %arg10[%c0_12, %c0_13] : memref<2x512xf32, #tpu.memory_space<vmem>>, vector<2x512xf32>
      tpu.vector_store %arg10[%c0_12, %c0_13], %14 {strides = array<i32>} : memref<2x512xf32, #tpu.memory_space<vmem>>, vector<2x512xf32>,
    } else {
    }
    %c0 = arith.constant 0 : index
    %c0_1 = arith.constant 0 : index
    %3 = vector.load %arg2[%c0, %c0_1] : memref<2x256xf32, #tpu.memory_space<vmem>>, vector<2x256xf32>
    %cst = arith.constant 0.000000e+00 : f32
    %4 = vector.broadcast %cst : f32 to vector<2x256xf32>
    %5 = arith.maximumf %3, %4 : vector<2x256xf32>
    %c0_2 = arith.constant 0 : index
    %c0_3 = arith.constant 0 : index
    %6 = vector.load %arg10[%c0_2, %c0_3] : memref<2x512xf32, #tpu.memory_space<vmem>>, vector<2x512xf32>
    %c0_4 = arith.constant 0 : index
    %c0_5 = arith.constant 0 : index
    %7 = vector.load %arg3[%c0_4, %c0_5] : memref<256x512xf32, #tpu.memory_space<vmem>>, vector<256x512xf32>
    %cst_6 = arith.constant dense<0.000000e+00> : vector<2x512xf32>
    %8 = tpu.matmul %5, %7, %cst_6 {dimension_numbers = #tpu.dot_dimension_numbers<[1], [0], [0], [1], [0, 0, 1, 1], [], []>} : vector<2x256xf32>, vector<256x512xf32>, vector<2x512xf32> -> vector<2x512xf32>
    %9 = arith.addf %6, %8 : vector<2x512xf32>
    %c0_7 = arith.constant 0 : index
    %c0_8 = arith.constant 0 : index
    %10 = vector.load %arg10[%c0_7, %c0_8] : memref<2x512xf32, #tpu.memory_space<vmem>>, vector<2x512xf32>
    tpu.vector_store %arg10[%c0_7, %c0_8], %9 {strides = array<i32>} : memref<2x512xf32, #tpu.memory_space<vmem>>, vector<2x512xf32>,
    %c0_i32_9 = arith.constant 0 : i32
    %11 = arith.cmpi eq, %arg1, %c0_i32_9 : i32
    %12 = arith.extui %11 : i1 to i32
    %c0_i32_10 = arith.constant 0 : i32
    %13 = arith.cmpi ne, %12, %c0_i32_10 : i32
    scf.if %13 {
      %c0_11 = arith.constant 0 : index
      %c0_12 = arith.constant 0 : index
      %14 = vector.load %arg10[%c0_11, %c0_12] : memref<2x512xf32, #tpu.memory_space<vmem>>, vector<2x512xf32>
      %c0_13 = arith.constant 0 : index
      %c0_14 = arith.constant 0 : index
      %15 = vector.load %arg4[%c0_13, %c0_14] : memref<1x512xf32, #tpu.memory_space<vmem>>, vector<1x512xf32>
      %16 = vector.broadcast %15 : vector<1x512xf32> to vector<2x512xf32>
      %17 = arith.addf %14, %16 : vector<2x512xf32>
      %cst_15 = arith.constant 0.000000e+00 : f32
      %18 = vector.broadcast %cst_15 : f32 to vector<2x512xf32>
      %19 = arith.maximumf %17, %18 : vector<2x512xf32>
      %c0_16 = arith.constant 0 : index
      %c0_17 = arith.constant 0 : index
      %20 = vector.load %arg5[%c0_16, %c0_17] : memref<512x768xf32, #tpu.memory_space<vmem>>, vector<512x768xf32>
      %cst_18 = arith.constant dense<0.000000e+00> : vector<2x768xf32>
      %21 = tpu.matmul %19, %20, %cst_18 {dimension_numbers = #tpu.dot_dimension_numbers<[1], [0], [0], [1], [0, 0, 1, 1], [], []>} : vector<2x512xf32>, vector<512x768xf32>, vector<2x768xf32> -> vector<2x768xf32>
      %c0_19 = arith.constant 0 : index
      %c0_20 = arith.constant 0 : index
      %22 = vector.load %arg6[%c0_19, %c0_20] : memref<1x768xf32, #tpu.memory_space<vmem>>, vector<1x768xf32>
      %23 = vector.broadcast %22 : vector<1x768xf32> to vector<2x768xf32>
      %24 = arith.addf %21, %23 : vector<2x768xf32>
      %cst_21 = arith.constant 0.000000e+00 : f32
      %25 = vector.broadcast %cst_21 : f32 to vector<2x768xf32>
      %26 = arith.maximumf %24, %25 : vector<2x768xf32>
      %c0_22 = arith.constant 0 : index
      %c0_23 = arith.constant 0 : index
      %27 = vector.load %arg7[%c0_22, %c0_23] : memref<768x128xf32, #tpu.memory_space<vmem>>, vector<768x128xf32>
      %cst_24 = arith.constant dense<0.000000e+00> : vector<2x128xf32>
      %28 = tpu.matmul %26, %27, %cst_24 {dimension_numbers = #tpu.dot_dimension_numbers<[1], [0], [0], [1], [0, 0, 1, 1], [], []>} : vector<2x768xf32>, vector<768x128xf32>, vector<2x128xf32> -> vector<2x128xf32>
      %c0_25 = arith.constant 0 : index
      %c0_26 = arith.constant 0 : index
      %29 = vector.load %arg8[%c0_25, %c0_26] : memref<1x128xf32, #tpu.memory_space<vmem>>, vector<1x128xf32>
      %30 = vector.broadcast %29 : vector<1x128xf32> to vector<2x128xf32>
      %31 = arith.addf %28, %30 : vector<2x128xf32>
      %c0_27 = arith.constant 0 : index
      %c0_28 = arith.constant 0 : index
      %32 = vector.load %arg9[%c0_27, %c0_28] : memref<2x128xf32, #tpu.memory_space<vmem>>, vector<2x128xf32>
      tpu.vector_store %arg9[%c0_27, %c0_28], %31 {strides = array<i32>} : memref<2x128xf32, #tpu.memory_space<vmem>>, vector<2x128xf32>,
    } else {
    }
    return
  }
  func.func @transform_0(%arg0: i32, %arg1: i32) -> (i32, i32) {
    %c0_i32 = arith.constant 0 : i32
    return %arg0, %arg1 : i32, i32
  }
  func.func @transform_1(%arg0: i32, %arg1: i32) -> (i32, i32) {
    %c0_i32 = arith.constant 0 : i32
    %c0_i32_0 = arith.constant 0 : i32
    %c0_i32_1 = arith.constant 0 : i32
    return %c0_i32, %c0_i32_0 : i32, i32
  }
  func.func @transform_2(%arg0: i32, %arg1: i32) -> (i32, i32) {
    %c0_i32 = arith.constant 0 : i32
    %c0_i32_0 = arith.constant 0 : i32
    %c0_i32_1 = arith.constant 0 : i32
    return %c0_i32, %c0_i32_0 : i32, i32
  }
  func.func @transform_3(%arg0: i32, %arg1: i32) -> (i32, i32) {
    %c0_i32 = arith.constant 0 : i32
    %c0_i32_0 = arith.constant 0 : i32
    %c0_i32_1 = arith.constant 0 : i32
    return %c0_i32, %c0_i32_0 : i32, i32
  }
  func.func @transform_4(%arg0: i32, %arg1: i32) -> (i32, i32) {
    %c0_i32 = arith.constant 0 : i32
    %c0_i32_0 = arith.constant 0 : i32
    %c0_i32_1 = arith.constant 0 : i32
    return %c0_i32, %c0_i32_0 : i32, i32
  }
  func.func @transform_5(%arg0: i32, %arg1: i32) -> (i32, i32) {
    %c0_i32 = arith.constant 0 : i32
    %c0_i32_0 = arith.constant 0 : i32
    %c0_i32_1 = arith.constant 0 : i32
    return %c0_i32, %c0_i32_0 : i32, i32
  }
  func.func @transform_6(%arg0: i32, %arg1: i32) -> (i32, i32) {
    %c0_i32 = arith.constant 0 : i32
    %c0_i32_0 = arith.constant 0 : i32
    %c0_i32_1 = arith.constant 0 : i32
    return %c0_i32, %c0_i32_0 : i32, i32
  }
  func.func @transform_7(%arg0: i32, %arg1: i32) -> (i32, i32) {
    %c0_i32 = arith.constant 0 : i32
    %c0_i32_0 = arith.constant 0 : i32
    return %arg0, %c0_i32 : i32, i32
  }
}

</mosaic_0001>

<llo_original>
// kernel: tpu_custom_call.1
$region0: #{tpu_custom_call.1}
  #allocation0 [shape = 'u32[]', space=smem, size = 0x4, offset = 0x4, fixed_abs, tag = 'smem constant byte address 0x4 - core index']
  #allocation1 [shape = 'u32[144,128]{1,0:T(1,128)}', space=vmem, size = 0x12000, scoped, tag = 'internal scratch']
  #allocation2 [shape = 'f32[2,512]{1,0:T(2,128)}', space=vmem, size = 0x1000, scoped, tag = 'scratch operand']
  %s0 = inlined_call_operand.hbm [shape: f32[2,256], index: 0, kind: input, shape index: {}]
  %s1 = inlined_call_operand.hbm [shape: f32[256,512], index: 1, kind: input, shape index: {}]
  %s2 = inlined_call_operand.hbm [shape: f32[1,512], index: 2, kind: input, shape index: {}]
  %s3 = inlined_call_operand.hbm [shape: f32[512,768], index: 3, kind: input, shape index: {}]
  %s4 = inlined_call_operand.hbm [shape: f32[1,768], index: 4, kind: input, shape index: {}]
  %s5 = inlined_call_operand.hbm [shape: f32[768,128], index: 5, kind: input, shape index: {}]
  %s6 = inlined_call_operand.hbm [shape: f32[1,128], index: 6, kind: input, shape index: {}]
  %s7 = inlined_call_operand.hbm [shape: f32[2,128], index: 7, kind: output, shape index: {}]
  %s8 = sld [smem:[#allocation0]]
  $region74: #{tpu_custom_call.1} parent=0
    _
  %s10 = ssub.s32 1, %s8
  %s11 = scalar_select 0, %s10, %s8
  $region1: #{tpu_custom_call.1} parent=0
    #allocation3 [shape = 'u8[2048]{0}', space=vmem, size = 0x800, scoped, tag = 'input window, operand 0, single buffered']
    #allocation4 [shape = 's32[1]{0}', space=sflag, size = 0x4, scoped, tag = 'scoped memory for tpu_custom_call.1']
    #allocation5 [shape = 's32[1]{0}', space=sflag, size = 0x4, scoped, tag = 'scoped memory for tpu_custom_call.1']
    #allocation6 [shape = 'u8[524288]{0}', space=vmem, size = 0x80000, scoped, tag = 'input window, operand 1, single buffered']
    #allocation7 [shape = 's32[1]{0}', space=sflag, size = 0x4, scoped, tag = 'scoped memory for tpu_custom_call.1']
    #allocation8 [shape = 'u8[2048]{0}', space=vmem, size = 0x800, scoped, tag = 'input window, operand 2, single buffered']
    #allocation9 [shape = 'u8[1572864]{0}', space=vmem, size = 0x180000, scoped, tag = 'input window, operand 3, single buffered']
    #allocation10 [shape = 's32[1]{0}', space=sflag, size = 0x4, scoped, tag = 'scoped memory for tpu_custom_call.1']
    #allocation11 [shape = 'u8[3072]{0}', space=vmem, size = 0xc00, scoped, tag = 'input window, operand 4, single buffered']
    #allocation12 [shape = 'u8[393216]{0}', space=vmem, size = 0x60000, scoped, tag = 'input window, operand 5, single buffered']
    #allocation13 [shape = 's32[1]{0}', space=sflag, size = 0x4, scoped, tag = 'scoped memory for tpu_custom_call.1']
    #allocation14 [shape = 'u8[512]{0}', space=vmem, size = 0x400, scoped, tag = 'input window, operand 6, single buffered']
    #allocation15 [shape = 'u8[1024]{0}', space=vmem, size = 0x400, scoped, tag = 'output window, operand 0, single buffered']
    %12 = vsyncpa [#allocation4], 0
    %13 = vsyncpa [#allocation7], 0
    %14 = vsyncpa [#allocation10], 0
    %15 = vsyncpa [#allocation13], 0
    %16 = vsyncpa [#allocation5], 0
    // Predicated region
    $region2: #{tpu_custom_call.1} parent=1 // pred_check
      _
    $region3: #{tpu_custom_call.1} parent=1 // pred_check_branch
      %18 = sbr.rel (0) target = $region5
    $region4: #{tpu_custom_call.1} parent=1 // pred_region
      %s20 = ssub.s32 64, 64
      %21 = vsyncadd [#allocation4], %s20
      %s23 = sshll.u32 [#allocation3], 4
      %s24 = int_to_ptr.vmem [resolvable:$true] %s23
      %26 = dma.hbm_to_vmem [thread:$0]  %s0, 64, %s24, [#allocation4]
    $region5: #{tpu_custom_call.1} parent=1 // pred_fallthru
      _
    // Predicated region
    $region6: #{tpu_custom_call.1} parent=1 // pred_check
      _
    $region7: #{tpu_custom_call.1} parent=1 // pred_check_branch
      %28 = sbr.rel (0) target = $region9
    $region8: #{tpu_custom_call.1} parent=1 // pred_region
      %s30 = ssub.s32 16384, 16384
      %31 = vsyncadd [#allocation7], %s30
      %s32 = sshll.u32 [#allocation6], 4
      %s33 = int_to_ptr.vmem [resolvable:$true] %s32
      %38 = dma.hbm_to_vmem [thread:$0]  %s1, 16384, %s33, [#allocation7], 512, 512, 32
    $region9: #{tpu_custom_call.1} parent=1 // pred_fallthru
      _
    // Predicated region
    $region10: #{tpu_custom_call.1} parent=1 // pred_check
      _
    $region11: #{tpu_custom_call.1} parent=1 // pred_check_branch
      %40 = sbr.rel (0) target = $region13
    $region12: #{tpu_custom_call.1} parent=1 // pred_region
      %s42 = ssub.s32 64, 64
      %43 = vsyncadd [#allocation7], %s42
      %s45 = sshll.u32 [#allocation8], 4
      %s46 = int_to_ptr.vmem [resolvable:$true] %s45
      %48 = dma.hbm_to_vmem [thread:$0]  %s2, 64, %s46, [#allocation7]
    $region13: #{tpu_custom_call.1} parent=1 // pred_fallthru
      _
    // Predicated region
    $region14: #{tpu_custom_call.1} parent=1 // pred_check
      _
    $region15: #{tpu_custom_call.1} parent=1 // pred_check_branch
      %50 = sbr.rel (0) target = $region17
    $region16: #{tpu_custom_call.1} parent=1 // pred_region
      %s52 = ssub.s32 49152, 49152
      %53 = vsyncadd [#allocation10], %s52
      %s54 = sshll.u32 [#allocation9], 4
      %s55 = int_to_ptr.vmem [resolvable:$true] %s54
      %60 = dma.hbm_to_vmem [thread:$0]  %s3, 49152, %s55, [#allocation10], 768, 768, 48
    $region17: #{tpu_custom_call.1} parent=1 // pred_fallthru
      _
    // Predicated region
    $region18: #{tpu_custom_call.1} parent=1 // pred_check
      _
    $region19: #{tpu_custom_call.1} parent=1 // pred_check_branch
      %62 = sbr.rel (0) target = $region21
    $region20: #{tpu_custom_call.1} parent=1 // pred_region
      %s64 = ssub.s32 96, 96
      %65 = vsyncadd [#allocation10], %s64
      %s67 = sshll.u32 [#allocation11], 4
      %s68 = int_to_ptr.vmem [resolvable:$true] %s67
      %70 = dma.hbm_to_vmem [thread:$0]  %s4, 96, %s68, [#allocation10]
    $region21: #{tpu_custom_call.1} parent=1 // pred_fallthru
      _
    // Predicated region
    $region22: #{tpu_custom_call.1} parent=1 // pred_check
      _
    $region23: #{tpu_custom_call.1} parent=1 // pred_check_branch
      %72 = sbr.rel (0) target = $region25
    $region24: #{tpu_custom_call.1} parent=1 // pred_region
      %s74 = ssub.s32 12288, 12288
      %75 = vsyncadd [#allocation13], %s74
      %s76 = sshll.u32 [#allocation12], 4
      %s77 = int_to_ptr.vmem [resolvable:$true] %s76
      %82 = dma.hbm_to_vmem [thread:$0]  %s5, 12288, %s77, [#allocation13], 128, 128, 8
    $region25: #{tpu_custom_call.1} parent=1 // pred_fallthru
      _
    // Predicated region
    $region26: #{tpu_custom_call.1} parent=1 // pred_check
      _
    $region27: #{tpu_custom_call.1} parent=1 // pred_check_branch
      %84 = sbr.rel (0) target = $region29
    $region28: #{tpu_custom_call.1} parent=1 // pred_region
      %s86 = ssub.s32 16, 16
      %87 = vsyncadd [#allocation13], %s86
      %s89 = sshll.u32 [#allocation14], 4
      %s90 = int_to_ptr.vmem [resolvable:$true] %s89
      %92 = dma.hbm_to_vmem [thread:$0]  %s6, 16, %s90, [#allocation13]
    $region29: #{tpu_custom_call.1} parent=1 // pred_fallthru
      _
    // Predicated region
    $region30: #{tpu_custom_call.1} parent=1 // pred_check
      _
    $region31: #{tpu_custom_call.1} parent=1 // pred_check_branch
      %94 = sbr.rel (0) target = $region33
    $region32: #{tpu_custom_call.1} parent=1 // pred_region
      %95 = dma.done [#allocation4], 64
    $region33: #{tpu_custom_call.1} parent=1 // pred_fallthru
      _
    // Predicated region
    $region34: #{tpu_custom_call.1} parent=1 // pred_check
      _
    $region35: #{tpu_custom_call.1} parent=1 // pred_check_branch
      %97 = sbr.rel (0) target = $region37
    $region36: #{tpu_custom_call.1} parent=1 // pred_region
      %98 = dma.done [#allocation7], 16384
    $region37: #{tpu_custom_call.1} parent=1 // pred_fallthru
      _
    // Predicated region
    $region38: #{tpu_custom_call.1} parent=1 // pred_check
      _
    $region39: #{tpu_custom_call.1} parent=1 // pred_check_branch
      %100 = sbr.rel (0) target = $region41
    $region40: #{tpu_custom_call.1} parent=1 // pred_region
      %101 = dma.done [#allocation7], 64
    $region41: #{tpu_custom_call.1} parent=1 // pred_fallthru
      _
    // Predicated region
    $region42: #{tpu_custom_call.1} parent=1 // pred_check
      _
    $region43: #{tpu_custom_call.1} parent=1 // pred_check_branch
      %103 = sbr.rel (0) target = $region45
    $region44: #{tpu_custom_call.1} parent=1 // pred_region
      %104 = dma.done [#allocation10], 49152
    $region45: #{tpu_custom_call.1} parent=1 // pred_fallthru
      _
    // Predicated region
    $region46: #{tpu_custom_call.1} parent=1 // pred_check
      _
    $region47: #{tpu_custom_call.1} parent=1 // pred_check_branch
      %106 = sbr.rel (0) target = $region49
    $region48: #{tpu_custom_call.1} parent=1 // pred_region
      %107 = dma.done [#allocation10], 96
    $region49: #{tpu_custom_call.1} parent=1 // pred_fallthru
      _
    // Predicated region
    $region50: #{tpu_custom_call.1} parent=1 // pred_check
      _
    $region51: #{tpu_custom_call.1} parent=1 // pred_check_branch
      %109 = sbr.rel (0) target = $region53
    $region52: #{tpu_custom_call.1} parent=1 // pred_region
      %110 = dma.done [#allocation13], 12288
    $region53: #{tpu_custom_call.1} parent=1 // pred_fallthru
      _
    // Predicated region
    $region54: #{tpu_custom_call.1} parent=1 // pred_check
      _
    $region55: #{tpu_custom_call.1} parent=1 // pred_check_branch
      %112 = sbr.rel (0) target = $region57
    $region56: #{tpu_custom_call.1} parent=1 // pred_region
      %113 = dma.done [#allocation13], 16
    $region57: #{tpu_custom_call.1} parent=1 // pred_fallthru
      _
    %p114 = scmp.eq.s32.totalorder 0, 0
    // Predicated region
    $region58: #{tpu_custom_call.1} parent=1 // pred_check
      %p115 = pneg %p114
    $region59: #{tpu_custom_call.1} parent=1 // pred_check_branch
      %117 = sbr.rel (%p115) target = $region61
    $region60: #{tpu_custom_call.1} parent=1 // pred_region
      %118 = vst [vmem:[#allocation2] sm:$0xff] 0.0
    $region61: #{tpu_custom_call.1} parent=1 // pred_fallthru
      _
    %v119 = vld [vmem:[#allocation3] sm:$0xf]
    %v120 = vmax.f32 %v119, 0.0
    %v121 = vld [vmem:[#allocation2] sm:$0xff]
    %v122 = vld [vmem:[#allocation6] sm:$0xff]
    %v123 = vld [vmem:[#allocation6 + $0x8] sm:$0xff]
    %v124 = vld [vmem:[#allocation6 + $0x10] sm:$0xff]
    %v125 = vld [vmem:[#allocation6 + $0x18] sm:$0xff]
    %v126 = vld [vmem:[#allocation6 + $0x20] sm:$0xff]
    %v127 = vld [vmem:[#allocation6 + $0x28] sm:$0xff]
    %v128 = vld [vmem:[#allocation6 + $0x30] sm:$0xff]
    %v129 = vld [vmem:[#allocation6 + $0x38] sm:$0xff]
    %v130 = vld [vmem:[#allocation6 + $0x40] sm:$0xff]
    %v131 = vld [vmem:[#allocation6 + $0x48] sm:$0xff]
    %v132 = vld [vmem:[#allocation6 + $0x50] sm:$0xff]
    %v133 = vld [vmem:[#allocation6 + $0x58] sm:$0xff]
    %v134 = vld [vmem:[#allocation6 + $0x60] sm:$0xff]
    %v135 = vld [vmem:[#allocation6 + $0x68] sm:$0xff]
    %v136 = vld [vmem:[#allocation6 + $0x70] sm:$0xff]
    %v137 = vld [vmem:[#allocation6 + $0x78] sm:$0xff]
    %v138 = vld [vmem:[#allocation6 + $0x80] sm:$0xff]
    %v139 = vld [vmem:[#allocation6 + $0x88] sm:$0xff]
    %v140 = vld [vmem:[#allocation6 + $0x90] sm:$0xff]
    %v141 = vld [vmem:[#allocation6 + $0x98] sm:$0xff]
    %v142 = vld [vmem:[#allocation6 + $0xa0] sm:$0xff]
    %v143 = vld [vmem:[#allocation6 + $0xa8] sm:$0xff]
    %v144 = vld [vmem:[#allocation6 + $0xb0] sm:$0xff]
    %v145 = vld [vmem:[#allocation6 + $0xb8] sm:$0xff]
    %v146 = vld [vmem:[#allocation6 + $0xc0] sm:$0xff]
    %v147 = vld [vmem:[#allocation6 + $0xc8] sm:$0xff]
    %v148 = vld [vmem:[#allocation6 + $0xd0] sm:$0xff]
    %v149 = vld [vmem:[#allocation6 + $0xd8] sm:$0xff]
    %v150 = vld [vmem:[#allocation6 + $0xe0] sm:$0xff]
    %v151 = vld [vmem:[#allocation6 + $0xe8] sm:$0xff]
    %v152 = vld [vmem:[#allocation6 + $0xf0] sm:$0xff]
    %v153 = vld [vmem:[#allocation6 + $0xf8] sm:$0xff]
    %v154 = vld [vmem:[#allocation6 + $0x100] sm:$0xff]
    %v155 = vld [vmem:[#allocation6 + $0x108] sm:$0xff]
    %v156 = vld [vmem:[#allocation6 + $0x110] sm:$0xff]
    %v157 = vld [vmem:[#allocation6 + $0x118] sm:$0xff]
    %v158 = vld [vmem:[#allocation6 + $0x120] sm:$0xff]
    %v159 = vld [vmem:[#allocation6 + $0x128] sm:$0xff]
    %v160 = vld [vmem:[#allocation6 + $0x130] sm:$0xff]
    %v161 = vld [vmem:[#allocation6 + $0x138] sm:$0xff]
    %v162 = vld [vmem:[#allocation6 + $0x140] sm:$0xff]
    %v163 = vld [vmem:[#allocation6 + $0x148] sm:$0xff]
    %v164 = vld [vmem:[#allocation6 + $0x150] sm:$0xff]
    %v165 = vld [vmem:[#allocation6 + $0x158] sm:$0xff]
    %v166 = vld [vmem:[#allocation6 + $0x160] sm:$0xff]
    %v167 = vld [vmem:[#allocation6 + $0x168] sm:$0xff]
    %v168 = vld [vmem:[#allocation6 + $0x170] sm:$0xff]
    %v169 = vld [vmem:[#allocation6 + $0x178] sm:$0xff]
    %v170 = vld [vmem:[#allocation6 + $0x180] sm:$0xff]
    %v171 = vld [vmem:[#allocation6 + $0x188] sm:$0xff]
    %v172 = vld [vmem:[#allocation6 + $0x190] sm:$0xff]
    %v173 = vld [vmem:[#allocation6 + $0x198] sm:$0xff]
    %v174 = vld [vmem:[#allocation6 + $0x1a0] sm:$0xff]
    %v175 = vld [vmem:[#allocation6 + $0x1a8] sm:$0xff]
    %v176 = vld [vmem:[#allocation6 + $0x1b0] sm:$0xff]
    %v177 = vld [vmem:[#allocation6 + $0x1b8] sm:$0xff]
    %v178 = vld [vmem:[#allocation6 + $0x1c0] sm:$0xff]
    %v179 = vld [vmem:[#allocation6 + $0x1c8] sm:$0xff]
    %v180 = vld [vmem:[#allocation6 + $0x1d0] sm:$0xff]
    %v181 = vld [vmem:[#allocation6 + $0x1d8] sm:$0xff]
    %v182 = vld [vmem:[#allocation6 + $0x1e0] sm:$0xff]
    %v183 = vld [vmem:[#allocation6 + $0x1e8] sm:$0xff]
    %v184 = vld [vmem:[#allocation6 + $0x1f0] sm:$0xff]
    %v185 = vld [vmem:[#allocation6 + $0x1f8] sm:$0xff]
    %v186 = vld [vmem:[#allocation6 + $0x200] sm:$0xff]
    %v187 = vld [vmem:[#allocation6 + $0x208] sm:$0xff]
    %v188 = vld [vmem:[#allocation6 + $0x210] sm:$0xff]
    %v189 = vld [vmem:[#allocation6 + $0x218] sm:$0xff]
    %v190 = vld [vmem:[#allocation6 + $0x220] sm:$0xff]
    %v191 = vld [vmem:[#allocation6 + $0x228] sm:$0xff]
    %v192 = vld [vmem:[#allocation6 + $0x230] sm:$0xff]
    %v193 = vld [vmem:[#allocation6 + $0x238] sm:$0xff]
    %v194 = vld [vmem:[#allocation6 + $0x240] sm:$0xff]
    %v195 = vld [vmem:[#allocation6 + $0x248] sm:$0xff]
    %v196 = vld [vmem:[#allocation6 + $0x250] sm:$0xff]
    %v197 = vld [vmem:[#allocation6 + $0x258] sm:$0xff]
    %v198 = vld [vmem:[#allocation6 + $0x260] sm:$0xff]
    %v199 = vld [vmem:[#allocation6 + $0x268] sm:$0xff]
    %v200 = vld [vmem:[#allocation6 + $0x270] sm:$0xff]
    %v201 = vld [vmem:[#allocation6 + $0x278] sm:$0xff]
    %v202 = vld [vmem:[#allocation6 + $0x280] sm:$0xff]
    %v203 = vld [vmem:[#allocation6 + $0x288] sm:$0xff]
    %v204 = vld [vmem:[#allocation6 + $0x290] sm:$0xff]
    %v205 = vld [vmem:[#allocation6 + $0x298] sm:$0xff]
    %v206 = vld [vmem:[#allocation6 + $0x2a0] sm:$0xff]
    %v207 = vld [vmem:[#allocation6 + $0x2a8] sm:$0xff]
    %v208 = vld [vmem:[#allocation6 + $0x2b0] sm:$0xff]
    %v209 = vld [vmem:[#allocation6 + $0x2b8] sm:$0xff]
    %v210 = vld [vmem:[#allocation6 + $0x2c0] sm:$0xff]
    %v211 = vld [vmem:[#allocation6 + $0x2c8] sm:$0xff]
    %v212 = vld [vmem:[#allocation6 + $0x2d0] sm:$0xff]
    %v213 = vld [vmem:[#allocation6 + $0x2d8] sm:$0xff]
    %v214 = vld [vmem:[#allocation6 + $0x2e0] sm:$0xff]
    %v215 = vld [vmem:[#allocation6 + $0x2e8] sm:$0xff]
    %v216 = vld [vmem:[#allocation6 + $0x2f0] sm:$0xff]
    %v217 = vld [vmem:[#allocation6 + $0x2f8] sm:$0xff]
    %v218 = vld [vmem:[#allocation6 + $0x300] sm:$0xff]
    %v219 = vld [vmem:[#allocation6 + $0x308] sm:$0xff]
    %v220 = vld [vmem:[#allocation6 + $0x310] sm:$0xff]
    %v221 = vld [vmem:[#allocation6 + $0x318] sm:$0xff]
    %v222 = vld [vmem:[#allocation6 + $0x320] sm:$0xff]
    %v223 = vld [vmem:[#allocation6 + $0x328] sm:$0xff]
    %v224 = vld [vmem:[#allocation6 + $0x330] sm:$0xff]
    %v225 = vld [vmem:[#allocation6 + $0x338] sm:$0xff]
    %v226 = vld [vmem:[#allocation6 + $0x340] sm:$0xff]
    %v227 = vld [vmem:[#allocation6 + $0x348] sm:$0xff]
    %v228 = vld [vmem:[#allocation6 + $0x350] sm:$0xff]
    %v229 = vld [vmem:[#allocation6 + $0x358] sm:$0xff]
    %v230 = vld [vmem:[#allocation6 + $0x360] sm:$0xff]
    %v231 = vld [vmem:[#allocation6 + $0x368] sm:$0xff]
    %v232 = vld [vmem:[#allocation6 + $0x370] sm:$0xff]
    %v233 = vld [vmem:[#allocation6 + $0x378] sm:$0xff]
    %v234 = vld [vmem:[#allocation6 + $0x380] sm:$0xff]
    %v235 = vld [vmem:[#allocation6 + $0x388] sm:$0xff]
    %v236 = vld [vmem:[#allocation6 + $0x390] sm:$0xff]
    %v237 = vld [vmem:[#allocation6 + $0x398] sm:$0xff]
    %v238 = vld [vmem:[#allocation6 + $0x3a0] sm:$0xff]
    %v239 = vld [vmem:[#allocation6 + $0x3a8] sm:$0xff]
    %v240 = vld [vmem:[#allocation6 + $0x3b0] sm:$0xff]
    %v241 = vld [vmem:[#allocation6 + $0x3b8] sm:$0xff]
    %v242 = vld [vmem:[#allocation6 + $0x3c0] sm:$0xff]
    %v243 = vld [vmem:[#allocation6 + $0x3c8] sm:$0xff]
    %v244 = vld [vmem:[#allocation6 + $0x3d0] sm:$0xff]
    %v245 = vld [vmem:[#allocation6 + $0x3d8] sm:$0xff]
    %v246 = vld [vmem:[#allocation6 + $0x3e0] sm:$0xff]
    %v247 = vld [vmem:[#allocation6 + $0x3e8] sm:$0xff]
    %v248 = vld [vmem:[#allocation6 + $0x3f0] sm:$0xff]
    %v249 = vld [vmem:[#allocation6 + $0x3f8] sm:$0xff]
    %v252 = vunpack.c.l.s4 1983009808
    %v253 = vunpack.c.0.s8 %v252
    %v254 = vlaneseq
    %v255 = vshrl.u32 %v254, 7
    %v256 = vsub.s32 %v253, %v255
    %v257 = vrot.slane %v120, %v256
    %v258 = vcombine.high %v257, %v257
    %261 = vmatprep.subr.mxu0 %v183
    %262 = vmatpush1.msra.mxu0 %v182
    %263 = vmatprep.subr.mxu0 %v179
    %264 = vmatpush1.msra.mxu0 %v178
    %265 = vmatprep.subr.mxu0 %v175
    %266 = vmatpush1.msra.mxu0 %v174
    %267 = vmatprep.subr.mxu0 %v171
    %268 = vmatpush1.msra.mxu0 %v170
    %269 = vmatprep.subr.mxu0 %v167
    %270 = vmatpush1.msra.mxu0 %v166
    %271 = vmatprep.subr.mxu0 %v163
    %272 = vmatpush1.msra.mxu0 %v162
    %273 = vmatprep.subr.mxu0 %v159
    %274 = vmatpush1.msra.mxu0 %v158
    %275 = vmatprep.subr.mxu0 %v155
    %276 = vmatpush1.msra.mxu0 %v154
    %277 = vmatprep.subr.mxu0 %v151
    %278 = vmatpush1.msra.mxu0 %v150
    %279 = vmatprep.subr.mxu0 %v147
    %280 = vmatpush1.msra.mxu0 %v146
    %281 = vmatprep.subr.mxu0 %v143
    %282 = vmatpush1.msra.mxu0 %v142
    %283 = vmatprep.subr.mxu0 %v139
    %284 = vmatpush1.msra.mxu0 %v138
    %285 = vmatprep.subr.mxu0 %v135
    %286 = vmatpush1.msra.mxu0 %v134
    %287 = vmatprep.subr.mxu0 %v131
    %288 = vmatpush1.msra.mxu0 %v130
    %289 = vmatprep.subr.mxu0 %v127
    %290 = vmatpush1.msra.mxu0 %v126
    %291 = vmatprep.subr.mxu0 %v123
    %292 = vmatpush1.msra.mxu0 %v122
    %293 = vmatprep.subr.mxu0 %v247
    %294 = vmatpush2.msra.mxu0 %v246
    %295 = vmatprep.subr.mxu0 %v243
    %296 = vmatpush2.msra.mxu0 %v242
    %297 = vmatprep.subr.mxu0 %v239
    %298 = vmatpush2.msra.mxu0 %v238
    %299 = vmatprep.subr.mxu0 %v235
    %300 = vmatpush2.msra.mxu0 %v234
    %301 = vmatprep.subr.mxu0 %v231
    %302 = vmatpush2.msra.mxu0 %v230
    %303 = vmatprep.subr.mxu0 %v227
    %304 = vmatpush2.msra.mxu0 %v226
    %305 = vmatprep.subr.mxu0 %v223
    %306 = vmatpush2.msra.mxu0 %v222
    %307 = vmatprep.subr.mxu0 %v219
    %308 = vmatpush2.msra.mxu0 %v218
    %309 = vmatprep.subr.mxu0 %v215
    %310 = vmatpush2.msra.mxu0 %v214
    %311 = vmatprep.subr.mxu0 %v211
    %312 = vmatpush2.msra.mxu0 %v210
    %313 = vmatprep.subr.mxu0 %v207
    %314 = vmatpush2.msra.mxu0 %v206
    %315 = vmatprep.subr.mxu0 %v203
    %316 = vmatpush2.msra.mxu0 %v202
    %317 = vmatprep.subr.mxu0 %v199
    %318 = vmatpush2.msra.mxu0 %v198
    %319 = vmatprep.subr.mxu0 %v195
    %320 = vmatpush2.msra.mxu0 %v194
    %321 = vmatprep.subr.mxu0 %v191
    %322 = vmatpush2.msra.mxu0 %v190
    %323 = vmatprep.subr.mxu0 %v187
    %324 = vmatpush2.msra.mxu0 %v186
    %325 = vmatprep.mubr.f32.mxu0 %v258
    %326 = vmatmul.mubr.f32.gmra.mxu0 %v257
    %v327 = vpop.f32.mrf.mxu0
    %v328 = vadd.f32 0.0, %v327
    %v329 = vpop.f32.mrf.mxu0
    %v330 = vadd.f32 0.0, %v329
    %331 = vdwg.mxu0
    %332 = vmatprep.subr.mxu0 %v185
    %333 = vmatpush1.msra.mxu0 %v184
    %334 = vmatprep.subr.mxu0 %v181
    %335 = vmatpush1.msra.mxu0 %v180
    %336 = vmatprep.subr.mxu0 %v177
    %337 = vmatpush1.msra.mxu0 %v176
    %338 = vmatprep.subr.mxu0 %v173
    %339 = vmatpush1.msra.mxu0 %v172
    %340 = vmatprep.subr.mxu0 %v169
    %341 = vmatpush1.msra.mxu0 %v168
    %342 = vmatprep.subr.mxu0 %v165
    %343 = vmatpush1.msra.mxu0 %v164
    %344 = vmatprep.subr.mxu0 %v161
    %345 = vmatpush1.msra.mxu0 %v160
    %346 = vmatprep.subr.mxu0 %v157
    %347 = vmatpush1.msra.mxu0 %v156
    %348 = vmatprep.subr.mxu0 %v153
    %349 = vmatpush1.msra.mxu0 %v152
    %350 = vmatprep.subr.mxu0 %v149
    %351 = vmatpush1.msra.mxu0 %v148
    %352 = vmatprep.subr.mxu0 %v145
    %353 = vmatpush1.msra.mxu0 %v144
    %354 = vmatprep.subr.mxu0 %v141
    %355 = vmatpush1.msra.mxu0 %v140
    %356 = vmatprep.subr.mxu0 %v137
    %357 = vmatpush1.msra.mxu0 %v136
    %358 = vmatprep.subr.mxu0 %v133
    %359 = vmatpush1.msra.mxu0 %v132
    %360 = vmatprep.subr.mxu0 %v129
    %361 = vmatpush1.msra.mxu0 %v128
    %362 = vmatprep.subr.mxu0 %v125
    %363 = vmatpush1.msra.mxu0 %v124
    %364 = vmatprep.subr.mxu0 %v249
    %365 = vmatpush2.msra.mxu0 %v248
    %366 = vmatprep.subr.mxu0 %v245
    %367 = vmatpush2.msra.mxu0 %v244
    %368 = vmatprep.subr.mxu0 %v241
    %369 = vmatpush2.msra.mxu0 %v240
    %370 = vmatprep.subr.mxu0 %v237
    %371 = vmatpush2.msra.mxu0 %v236
    %372 = vmatprep.subr.mxu0 %v233
    %373 = vmatpush2.msra.mxu0 %v232
    %374 = vmatprep.subr.mxu0 %v229
    %375 = vmatpush2.msra.mxu0 %v228
    %376 = vmatprep.subr.mxu0 %v225
    %377 = vmatpush2.msra.mxu0 %v224
    %378 = vmatprep.subr.mxu0 %v221
    %379 = vmatpush2.msra.mxu0 %v220
    %380 = vmatprep.subr.mxu0 %v217
    %381 = vmatpush2.msra.mxu0 %v216
    %382 = vmatprep.subr.mxu0 %v213
    %383 = vmatpush2.msra.mxu0 %v212
    %384 = vmatprep.subr.mxu0 %v209
    %385 = vmatpush2.msra.mxu0 %v208
    %386 = vmatprep.subr.mxu0 %v205
    %387 = vmatpush2.msra.mxu0 %v204
    %388 = vmatprep.subr.mxu0 %v201
    %389 = vmatpush2.msra.mxu0 %v200
    %390 = vmatprep.subr.mxu0 %v197
    %391 = vmatpush2.msra.mxu0 %v196
    %392 = vmatprep.subr.mxu0 %v193
    %393 = vmatpush2.msra.mxu0 %v192
    %394 = vmatprep.subr.mxu0 %v189
    %395 = vmatpush2.msra.mxu0 %v188
    %396 = vmatprep.mubr.f32.mxu0 %v258
    %397 = vmatmul.mubr.f32.gmra.mxu0 %v257
    %v398 = vpop.f32.mrf.mxu0
    %v399 = vadd.f32 0.0, %v398
    %v400 = vpop.f32.mrf.mxu0
    %v401 = vadd.f32 0.0, %v400
    %402 = vdwg.mxu0
    %v407 = vcombine.low %v328, %v330
    %v408 = vcombine.low %v399, %v401
    %v410 = vunpack.c.l.s4 1983009808
    %v411 = vunpack.c.0.s8 %v410
    %v412 = vlaneseq
    %v413 = vshrl.u32 %v412, 7
    %v414 = vsub.s32 %v411, %v413
    %v415 = vrot.slane %v407, %v414
    %v417 = vunpack.c.l.s4 1983009808
    %v418 = vunpack.c.0.s8 %v417
    %v419 = vlaneseq
    %v420 = vshrl.u32 %v419, 7
    %v421 = vsub.s32 %v418, %v420
    %v422 = vrot.slane %v408, %v421
    %v423 = vcombine.low %v415, %v422
    %v425 = vadd.f32 %v121, %v423
    %426 = vst [vmem:[#allocation2] sm:$0xff] %v425
    // Predicated region
    $region62: #{tpu_custom_call.1} parent=1 // pred_check
      %p427 = pneg %p114
    $region63: #{tpu_custom_call.1} parent=1 // pred_check_branch
      %429 = sbr.rel (%p427) target = $region65
    $region64: #{tpu_custom_call.1} parent=1 // pred_region
      %v430 = vld [vmem:[#allocation2] sm:$0xff]
      %v431 = vld [vmem:[#allocation8] sm:$0xf]
      %v433 = vlaneseq
      %v434 = vshrl.u32 %v433, 7
      %v435 = vsub.s32 0, %v434
      %v436 = vrot.slane %v431, %v435
      %v437 = vlaneseq
      %v438 = vshrl.u32 %v437, 7
      %v439 = vsub.s32 1, %v438
      %v440 = vrot.slane %v431, %v439
      %v441 = vlaneseq
      %v442 = vshrl.u32 %v441, 7
      %v443 = vsub.s32 2, %v442
      %v444 = vrot.slane %v431, %v443
      %v445 = vlaneseq
      %v446 = vshrl.u32 %v445, 7
      %v447 = vsub.s32 3, %v446
      %v448 = vrot.slane %v431, %v447
      %v449 = vcombine.low %v436, %v440
      %v450 = vcombine.low %v444, %v448
      %v452 = vunpack.c.l.s4 1983009808
      %v453 = vunpack.c.0.s8 %v452
      %v454 = vlaneseq
      %v455 = vshrl.u32 %v454, 7
      %v456 = vsub.s32 %v453, %v455
      %v457 = vrot.slane %v449, %v456
      %v459 = vunpack.c.l.s4 1983009808
      %v460 = vunpack.c.0.s8 %v459
      %v461 = vlaneseq
      %v462 = vshrl.u32 %v461, 7
      %v463 = vsub.s32 %v460, %v462
      %v464 = vrot.slane %v450, %v463
      %v465 = vcombine.low %v457, %v464
      %v467 = vadd.f32 %v430, %v465
      %v468 = vmax.f32 %v467, 0.0
      %v469 = vld [vmem:[#allocation9] sm:$0xff]
      %v470 = vld [vmem:[#allocation9 + $0x8] sm:$0xff]
      %v471 = vld [vmem:[#allocation9 + $0x10] sm:$0xff]
      %v472 = vld [vmem:[#allocation9 + $0x18] sm:$0xff]
      %v473 = vld [vmem:[#allocation9 + $0x20] sm:$0xff]
      %v474 = vld [vmem:[#allocation9 + $0x28] sm:$0xff]
      %v475 = vld [vmem:[#allocation9 + $0x30] sm:$0xff]
      %v476 = vld [vmem:[#allocation9 + $0x38] sm:$0xff]
      %v477 = vld [vmem:[#allocation9 + $0x40] sm:$0xff]
      %v478 = vld [vmem:[#allocation9 + $0x48] sm:$0xff]
      %v479 = vld [vmem:[#allocation9 + $0x50] sm:$0xff]
      %v480 = vld [vmem:[#allocation9 + $0x58] sm:$0xff]
      %v481 = vld [vmem:[#allocation9 + $0x60] sm:$0xff]
      %v482 = vld [vmem:[#allocation9 + $0x68] sm:$0xff]
      %v483 = vld [vmem:[#allocation9 + $0x70] sm:$0xff]
      %v484 = vld [vmem:[#allocation9 + $0x78] sm:$0xff]
      %v485 = vld [vmem:[#allocation9 + $0x80] sm:$0xff]
      %v486 = vld [vmem:[#allocation9 + $0x88] sm:$0xff]
      %v487 = vld [vmem:[#allocation9 + $0x90] sm:$0xff]
      %v488 = vld [vmem:[#allocation9 + $0x98] sm:$0xff]
      %v489 = vld [vmem:[#allocation9 + $0xa0] sm:$0xff]
      %v490 = vld [vmem:[#allocation9 + $0xa8] sm:$0xff]
      %v491 = vld [vmem:[#allocation9 + $0xb0] sm:$0xff]
      %v492 = vld [vmem:[#allocation9 + $0xb8] sm:$0xff]
      %v493 = vld [vmem:[#allocation9 + $0xc0] sm:$0xff]
      %v494 = vld [vmem:[#allocation9 + $0xc8] sm:$0xff]
      %v495 = vld [vmem:[#allocation9 + $0xd0] sm:$0xff]
      %v496 = vld [vmem:[#allocation9 + $0xd8] sm:$0xff]
      %v497 = vld [vmem:[#allocation9 + $0xe0] sm:$0xff]
      %v498 = vld [vmem:[#allocation9 + $0xe8] sm:$0xff]
      %v499 = vld [vmem:[#allocation9 + $0xf0] sm:$0xff]
      %v500 = vld [vmem:[#allocation9 + $0xf8] sm:$0xff]
      %v501 = vld [vmem:[#allocation9 + $0x100] sm:$0xff]
      %v502 = vld [vmem:[#allocation9 + $0x108] sm:$0xff]
      %v503 = vld [vmem:[#allocation9 + $0x110] sm:$0xff]
      %v504 = vld [vmem:[#allocation9 + $0x118] sm:$0xff]
      %v505 = vld [vmem:[#allocation9 + $0x120] sm:$0xff]
      %v506 = vld [vmem:[#allocation9 + $0x128] sm:$0xff]
      %v507 = vld [vmem:[#allocation9 + $0x130] sm:$0xff]
      %v508 = vld [vmem:[#allocation9 + $0x138] sm:$0xff]
      %v509 = vld [vmem:[#allocation9 + $0x140] sm:$0xff]
      %v510 = vld [vmem:[#allocation9 + $0x148] sm:$0xff]
      %v511 = vld [vmem:[#allocation9 + $0x150] sm:$0xff]
      %v512 = vld [vmem:[#allocation9 + $0x158] sm:$0xff]
      %v513 = vld [vmem:[#allocation9 + $0x160] sm:$0xff]
      %v514 = vld [vmem:[#allocation9 + $0x168] sm:$0xff]
      %v515 = vld [vmem:[#allocation9 + $0x170] sm:$0xff]
      %v516 = vld [vmem:[#allocation9 + $0x178] sm:$0xff]
      %v517 = vld [vmem:[#allocation9 + $0x180] sm:$0xff]
      %v518 = vld [vmem:[#allocation9 + $0x188] sm:$0xff]
      %v519 = vld [vmem:[#allocation9 + $0x190] sm:$0xff]
      %v520 = vld [vmem:[#allocation9 + $0x198] sm:$0xff]
      %v521 = vld [vmem:[#allocation9 + $0x1a0] sm:$0xff]
      %v522 = vld [vmem:[#allocation9 + $0x1a8] sm:$0xff]
      %v523 = vld [vmem:[#allocation9 + $0x1b0] sm:$0xff]
      %v524 = vld [vmem:[#allocation9 + $0x1b8] sm:$0xff]
      %v525 = vld [vmem:[#allocation9 + $0x1c0] sm:$0xff]
      %v526 = vld [vmem:[#allocation9 + $0x1c8] sm:$0xff]
      %v527 = vld [vmem:[#allocation9 + $0x1d0] sm:$0xff]
      %v528 = vld [vmem:[#allocation9 + $0x1d8] sm:$0xff]
      %v529 = vld [vmem:[#allocation9 + $0x1e0] sm:$0xff]
      %v530 = vld [vmem:[#allocation9 + $0x1e8] sm:$0xff]
      %v531 = vld [vmem:[#allocation9 + $0x1f0] sm:$0xff]
      %v532 = vld [vmem:[#allocation9 + $0x1f8] sm:$0xff]
      %v533 = vld [vmem:[#allocation9 + $0x200] sm:$0xff]
      %v534 = vld [vmem:[#allocation9 + $0x208] sm:$0xff]
      %v535 = vld [vmem:[#allocation9 + $0x210] sm:$0xff]
      %v536 = vld [vmem:[#allocation9 + $0x218] sm:$0xff]
      %v537 = vld [vmem:[#allocation9 + $0x220] sm:$0xff]
      %v538 = vld [vmem:[#allocation9 + $0x228] sm:$0xff]
      %v539 = vld [vmem:[#allocation9 + $0x230] sm:$0xff]
      %v540 = vld [vmem:[#allocation9 + $0x238] sm:$0xff]
      %v541 = vld [vmem:[#allocation9 + $0x240] sm:$0xff]
      %v542 = vld [vmem:[#allocation9 + $0x248] sm:$0xff]
      %v543 = vld [vmem:[#allocation9 + $0x250] sm:$0xff]
      %v544 = vld [vmem:[#allocation9 + $0x258] sm:$0xff]
      %v545 = vld [vmem:[#allocation9 + $0x260] sm:$0xff]
      %v546 = vld [vmem:[#allocation9 + $0x268] sm:$0xff]
      %v547 = vld [vmem:[#allocation9 + $0x270] sm:$0xff]
      %v548 = vld [vmem:[#allocation9 + $0x278] sm:$0xff]
      %v549 = vld [vmem:[#allocation9 + $0x280] sm:$0xff]
      %v550 = vld [vmem:[#allocation9 + $0x288] sm:$0xff]
      %v551 = vld [vmem:[#allocation9 + $0x290] sm:$0xff]
      %v552 = vld [vmem:[#allocation9 + $0x298] sm:$0xff]
      %v553 = vld [vmem:[#allocation9 + $0x2a0] sm:$0xff]
      %v554 = vld [vmem:[#allocation9 + $0x2a8] sm:$0xff]
      %v555 = vld [vmem:[#allocation9 + $0x2b0] sm:$0xff]
      %v556 = vld [vmem:[#allocation9 + $0x2b8] sm:$0xff]
      %v557 = vld [vmem:[#allocation9 + $0x2c0] sm:$0xff]
      %v558 = vld [vmem:[#allocation9 + $0x2c8] sm:$0xff]
      %v559 = vld [vmem:[#allocation9 + $0x2d0] sm:$0xff]
      %v560 = vld [vmem:[#allocation9 + $0x2d8] sm:$0xff]
      %v561 = vld [vmem:[#allocation9 + $0x2e0] sm:$0xff]
      %v562 = vld [vmem:[#allocation9 + $0x2e8] sm:$0xff]
      %v563 = vld [vmem:[#allocation9 + $0x2f0] sm:$0xff]
      %v564 = vld [vmem:[#allocation9 + $0x2f8] sm:$0xff]
      %v565 = vld [vmem:[#allocation9 + $0x300] sm:$0xff]
      %v566 = vld [vmem:[#allocation9 + $0x308] sm:$0xff]
      %v567 = vld [vmem:[#allocation9 + $0x310] sm:$0xff]
      %v568 = vld [vmem:[#allocation9 + $0x318] sm:$0xff]
      %v569 = vld [vmem:[#allocation9 + $0x320] sm:$0xff]
      %v570 = vld [vmem:[#allocation9 + $0x328] sm:$0xff]
      %v571 = vld [vmem:[#allocation9 + $0x330] sm:$0xff]
      %v572 = vld [vmem:[#allocation9 + $0x338] sm:$0xff]
      %v573 = vld [vmem:[#allocation9 + $0x340] sm:$0xff]
      %v574 = vld [vmem:[#allocation9 + $0x348] sm:$0xff]
      %v575 = vld [vmem:[#allocation9 + $0x350] sm:$0xff]
      %v576 = vld [vmem:[#allocation9 + $0x358] sm:$0xff]
      %v577 = vld [vmem:[#allocation9 + $0x360] sm:$0xff]
      %v578 = vld [vmem:[#allocation9 + $0x368] sm:$0xff]
      %v579 = vld [vmem:[#allocation9 + $0x370] sm:$0xff]
      %v580 = vld [vmem:[#allocation9 + $0x378] sm:$0xff]
      %v581 = vld [vmem:[#allocation9 + $0x380] sm:$0xff]
      %v582 = vld [vmem:[#allocation9 + $0x388] sm:$0xff]
      %v583 = vld [vmem:[#allocation9 + $0x390] sm:$0xff]
      %v584 = vld [vmem:[#allocation9 + $0x398] sm:$0xff]
      %v585 = vld [vmem:[#allocation9 + $0x3a0] sm:$0xff]
      %v586 = vld [vmem:[#allocation9 + $0x3a8] sm:$0xff]
      %v587 = vld [vmem:[#allocation9 + $0x3b0] sm:$0xff]
      %v588 = vld [vmem:[#allocation9 + $0x3b8] sm:$0xff]
      %v589 = vld [vmem:[#allocation9 + $0x3c0] sm:$0xff]
      %v590 = vld [vmem:[#allocation9 + $0x3c8] sm:$0xff]
      %v591 = vld [vmem:[#allocation9 + $0x3d0] sm:$0xff]
      %v592 = vld [vmem:[#allocation9 + $0x3d8] sm:$0xff]
      %v593 = vld [vmem:[#allocation9 + $0x3e0] sm:$0xff]
      %v594 = vld [vmem:[#allocation9 + $0x3e8] sm:$0xff]
      %v595 = vld [vmem:[#allocation9 + $0x3f0] sm:$0xff]
      %v596 = vld [vmem:[#allocation9 + $0x3f8] sm:$0xff]
      %v597 = vld [vmem:[#allocation9 + $0x400] sm:$0xff]
      %v598 = vld [vmem:[#allocation9 + $0x408] sm:$0xff]
      %v599 = vld [vmem:[#allocation9 + $0x410] sm:$0xff]
      %v600 = vld [vmem:[#allocation9 + $0x418] sm:$0xff]
      %v601 = vld [vmem:[#allocation9 + $0x420] sm:$0xff]
      %v602 = vld [vmem:[#allocation9 + $0x428] sm:$0xff]
      %v603 = vld [vmem:[#allocation9 + $0x430] sm:$0xff]
      %v604 = vld [vmem:[#allocation9 + $0x438] sm:$0xff]
      %v605 = vld [vmem:[#allocation9 + $0x440] sm:$0xff]
      %v606 = vld [vmem:[#allocation9 + $0x448] sm:$0xff]
      %v607 = vld [vmem:[#allocation9 + $0x450] sm:$0xff]
      %v608 = vld [vmem:[#allocation9 + $0x458] sm:$0xff]
      %v609 = vld [vmem:[#allocation9 + $0x460] sm:$0xff]
      %v610 = vld [vmem:[#allocation9 + $0x468] sm:$0xff]
      %v611 = vld [vmem:[#allocation9 + $0x470] sm:$0xff]
      %v612 = vld [vmem:[#allocation9 + $0x478] sm:$0xff]
      %v613 = vld [vmem:[#allocation9 + $0x480] sm:$0xff]
      %v614 = vld [vmem:[#allocation9 + $0x488] sm:$0xff]
      %v615 = vld [vmem:[#allocation9 + $0x490] sm:$0xff]
      %v616 = vld [vmem:[#allocation9 + $0x498] sm:$0xff]
      %v617 = vld [vmem:[#allocation9 + $0x4a0] sm:$0xff]
      %v618 = vld [vmem:[#allocation9 + $0x4a8] sm:$0xff]
      %v619 = vld [vmem:[#allocation9 + $0x4b0] sm:$0xff]
      %v620 = vld [vmem:[#allocation9 + $0x4b8] sm:$0xff]
      %v621 = vld [vmem:[#allocation9 + $0x4c0] sm:$0xff]
      %v622 = vld [vmem:[#allocation9 + $0x4c8] sm:$0xff]
      %v623 = vld [vmem:[#allocation9 + $0x4d0] sm:$0xff]
      %v624 = vld [vmem:[#allocation9 + $0x4d8] sm:$0xff]
      %v625 = vld [vmem:[#allocation9 + $0x4e0] sm:$0xff]
      %v626 = vld [vmem:[#allocation9 + $0x4e8] sm:$0xff]
      %v627 = vld [vmem:[#allocation9 + $0x4f0] sm:$0xff]
      %v628 = vld [vmem:[#allocation9 + $0x4f8] sm:$0xff]
      %v629 = vld [vmem:[#allocation9 + $0x500] sm:$0xff]
      %v630 = vld [vmem:[#allocation9 + $0x508] sm:$0xff]
      %v631 = vld [vmem:[#allocation9 + $0x510] sm:$0xff]
      %v632 = vld [vmem:[#allocation9 + $0x518] sm:$0xff]
      %v633 = vld [vmem:[#allocation9 + $0x520] sm:$0xff]
      %v634 = vld [vmem:[#allocation9 + $0x528] sm:$0xff]
      %v635 = vld [vmem:[#allocation9 + $0x530] sm:$0xff]
      %v636 = vld [vmem:[#allocation9 + $0x538] sm:$0xff]
      %v637 = vld [vmem:[#allocation9 + $0x540] sm:$0xff]
      %v638 = vld [vmem:[#allocation9 + $0x548] sm:$0xff]
      %v639 = vld [vmem:[#allocation9 + $0x550] sm:$0xff]
      %v640 = vld [vmem:[#allocation9 + $0x558] sm:$0xff]
      %v641 = vld [vmem:[#allocation9 + $0x560] sm:$0xff]
      %v642 = vld [vmem:[#allocation9 + $0x568] sm:$0xff]
      %v643 = vld [vmem:[#allocation9 + $0x570] sm:$0xff]
      %v644 = vld [vmem:[#allocation9 + $0x578] sm:$0xff]
      %v645 = vld [vmem:[#allocation9 + $0x580] sm:$0xff]
      %v646 = vld [vmem:[#allocation9 + $0x588] sm:$0xff]
      %v647 = vld [vmem:[#allocation9 + $0x590] sm:$0xff]
      %v648 = vld [vmem:[#allocation9 + $0x598] sm:$0xff]
      %v649 = vld [vmem:[#allocation9 + $0x5a0] sm:$0xff]
      %v650 = vld [vmem:[#allocation9 + $0x5a8] sm:$0xff]
      %v651 = vld [vmem:[#allocation9 + $0x5b0] sm:$0xff]
      %v652 = vld [vmem:[#allocation9 + $0x5b8] sm:$0xff]
      %v653 = vld [vmem:[#allocation9 + $0x5c0] sm:$0xff]
      %v654 = vld [vmem:[#allocation9 + $0x5c8] sm:$0xff]
      %v655 = vld [vmem:[#allocation9 + $0x5d0] sm:$0xff]
      %v656 = vld [vmem:[#allocation9 + $0x5d8] sm:$0xff]
      %v657 = vld [vmem:[#allocation9 + $0x5e0] sm:$0xff]
      %v658 = vld [vmem:[#allocation9 + $0x5e8] sm:$0xff]
      %v659 = vld [vmem:[#allocation9 + $0x5f0] sm:$0xff]
      %v660 = vld [vmem:[#allocation9 + $0x5f8] sm:$0xff]
      %v661 = vld [vmem:[#allocation9 + $0x600] sm:$0xff]
      %v662 = vld [vmem:[#allocation9 + $0x608] sm:$0xff]
      %v663 = vld [vmem:[#allocation9 + $0x610] sm:$0xff]
      %v664 = vld [vmem:[#allocation9 + $0x618] sm:$0xff]
      %v665 = vld [vmem:[#allocation9 + $0x620] sm:$0xff]
      %v666 = vld [vmem:[#allocation9 + $0x628] sm:$0xff]
      %v667 = vld [vmem:[#allocation9 + $0x630] sm:$0xff]
      %v668 = vld [vmem:[#allocation9 + $0x638] sm:$0xff]
      %v669 = vld [vmem:[#allocation9 + $0x640] sm:$0xff]
      %v670 = vld [vmem:[#allocation9 + $0x648] sm:$0xff]
      %v671 = vld [vmem:[#allocation9 + $0x650] sm:$0xff]
      %v672 = vld [vmem:[#allocation9 + $0x658] sm:$0xff]
      %v673 = vld [vmem:[#allocation9 + $0x660] sm:$0xff]
      %v674 = vld [vmem:[#allocation9 + $0x668] sm:$0xff]
      %v675 = vld [vmem:[#allocation9 + $0x670] sm:$0xff]
      %v676 = vld [vmem:[#allocation9 + $0x678] sm:$0xff]
      %v677 = vld [vmem:[#allocation9 + $0x680] sm:$0xff]
      %v678 = vld [vmem:[#allocation9 + $0x688] sm:$0xff]
      %v679 = vld [vmem:[#allocation9 + $0x690] sm:$0xff]
      %v680 = vld [vmem:[#allocation9 + $0x698] sm:$0xff]
      %v681 = vld [vmem:[#allocation9 + $0x6a0] sm:$0xff]
      %v682 = vld [vmem:[#allocation9 + $0x6a8] sm:$0xff]
      %v683 = vld [vmem:[#allocation9 + $0x6b0] sm:$0xff]
      %v684 = vld [vmem:[#allocation9 + $0x6b8] sm:$0xff]
      %v685 = vld [vmem:[#allocation9 + $0x6c0] sm:$0xff]
      %v686 = vld [vmem:[#allocation9 + $0x6c8] sm:$0xff]
      %v687 = vld [vmem:[#allocation9 + $0x6d0] sm:$0xff]
      %v688 = vld [vmem:[#allocation9 + $0x6d8] sm:$0xff]
      %v689 = vld [vmem:[#allocation9 + $0x6e0] sm:$0xff]
      %v690 = vld [vmem:[#allocation9 + $0x6e8] sm:$0xff]
      %v691 = vld [vmem:[#allocation9 + $0x6f0] sm:$0xff]
      %v692 = vld [vmem:[#allocation9 + $0x6f8] sm:$0xff]
      %v693 = vld [vmem:[#allocation9 + $0x700] sm:$0xff]
      %v694 = vld [vmem:[#allocation9 + $0x708] sm:$0xff]
      %v695 = vld [vmem:[#allocation9 + $0x710] sm:$0xff]
      %v696 = vld [vmem:[#allocation9 + $0x718] sm:$0xff]
      %v697 = vld [vmem:[#allocation9 + $0x720] sm:$0xff]
      %v698 = vld [vmem:[#allocation9 + $0x728] sm:$0xff]
      %v699 = vld [vmem:[#allocation9 + $0x730] sm:$0xff]
      %v700 = vld [vmem:[#allocation9 + $0x738] sm:$0xff]
      %v701 = vld [vmem:[#allocation9 + $0x740] sm:$0xff]
      %v702 = vld [vmem:[#allocation9 + $0x748] sm:$0xff]
      %v703 = vld [vmem:[#allocation9 + $0x750] sm:$0xff]
      %v704 = vld [vmem:[#allocation9 + $0x758] sm:$0xff]
      %v705 = vld [vmem:[#allocation9 + $0x760] sm:$0xff]
      %v706 = vld [vmem:[#allocation9 + $0x768] sm:$0xff]
      %v707 = vld [vmem:[#allocation9 + $0x770] sm:$0xff]
      %v708 = vld [vmem:[#allocation9 + $0x778] sm:$0xff]
      %v709 = vld [vmem:[#allocation9 + $0x780] sm:$0xff]
      %v710 = vld [vmem:[#allocation9 + $0x788] sm:$0xff]
      %v711 = vld [vmem:[#allocation9 + $0x790] sm:$0xff]
      %v712 = vld [vmem:[#allocation9 + $0x798] sm:$0xff]
      %v713 = vld [vmem:[#allocation9 + $0x7a0] sm:$0xff]
      %v714 = vld [vmem:[#allocation9 + $0x7a8] sm:$0xff]
      %v715 = vld [vmem:[#allocation9 + $0x7b0] sm:$0xff]
      %v716 = vld [vmem:[#allocation9 + $0x7b8] sm:$0xff]
      %v717 = vld [vmem:[#allocation9 + $0x7c0] sm:$0xff]
      %v718 = vld [vmem:[#allocation9 + $0x7c8] sm:$0xff]
      %v719 = vld [vmem:[#allocation9 + $0x7d0] sm:$0xff]
      %v720 = vld [vmem:[#allocation9 + $0x7d8] sm:$0xff]
      %v721 = vld [vmem:[#allocation9 + $0x7e0] sm:$0xff]
      %v722 = vld [vmem:[#allocation9 + $0x7e8] sm:$0xff]
      %v723 = vld [vmem:[#allocation9 + $0x7f0] sm:$0xff]
      %v724 = vld [vmem:[#allocation9 + $0x7f8] sm:$0xff]
      %v725 = vld [vmem:[#allocation9 + $0x800] sm:$0xff]
      %v726 = vld [vmem:[#allocation9 + $0x808] sm:$0xff]
      %v727 = vld [vmem:[#allocation9 + $0x810] sm:$0xff]
      %v728 = vld [vmem:[#allocation9 + $0x818] sm:$0xff]
      %v729 = vld [vmem:[#allocation9 + $0x820] sm:$0xff]
      %v730 = vld [vmem:[#allocation9 + $0x828] sm:$0xff]
      %v731 = vld [vmem:[#allocation9 + $0x830] sm:$0xff]
      %v732 = vld [vmem:[#allocation9 + $0x838] sm:$0xff]
      %v733 = vld [vmem:[#allocation9 + $0x840] sm:$0xff]
      %v734 = vld [vmem:[#allocation9 + $0x848] sm:$0xff]
      %v735 = vld [vmem:[#allocation9 + $0x850] sm:$0xff]
      %v736 = vld [vmem:[#allocation9 + $0x858] sm:$0xff]
      %v737 = vld [vmem:[#allocation9 + $0x860] sm:$0xff]
      %v738 = vld [vmem:[#allocation9 + $0x868] sm:$0xff]
      %v739 = vld [vmem:[#allocation9 + $0x870] sm:$0xff]
      %v740 = vld [vmem:[#allocation9 + $0x878] sm:$0xff]
      %v741 = vld [vmem:[#allocation9 + $0x880] sm:$0xff]
      %v742 = vld [vmem:[#allocation9 + $0x888] sm:$0xff]
      %v743 = vld [vmem:[#allocation9 + $0x890] sm:$0xff]
      %v744 = vld [vmem:[#allocation9 + $0x898] sm:$0xff]
      %v745 = vld [vmem:[#allocation9 + $0x8a0] sm:$0xff]
      %v746 = vld [vmem:[#allocation9 + $0x8a8] sm:$0xff]
      %v747 = vld [vmem:[#allocation9 + $0x8b0] sm:$0xff]
      %v748 = vld [vmem:[#allocation9 + $0x8b8] sm:$0xff]
      %v749 = vld [vmem:[#allocation9 + $0x8c0] sm:$0xff]
      %v750 = vld [vmem:[#allocation9 + $0x8c8] sm:$0xff]
      %v751 = vld [vmem:[#allocation9 + $0x8d0] sm:$0xff]
      %v752 = vld [vmem:[#allocation9 + $0x8d8] sm:$0xff]
      %v753 = vld [vmem:[#allocation9 + $0x8e0] sm:$0xff]
      %v754 = vld [vmem:[#allocation9 + $0x8e8] sm:$0xff]
      %v755 = vld [vmem:[#allocation9 + $0x8f0] sm:$0xff]
      %v756 = vld [vmem:[#allocation9 + $0x8f8] sm:$0xff]
      %v757 = vld [vmem:[#allocation9 + $0x900] sm:$0xff]
      %v758 = vld [vmem:[#allocation9 + $0x908] sm:$0xff]
      %v759 = vld [vmem:[#allocation9 + $0x910] sm:$0xff]
      %v760 = vld [vmem:[#allocation9 + $0x918] sm:$0xff]
      %v761 = vld [vmem:[#allocation9 + $0x920] sm:$0xff]
      %v762 = vld [vmem:[#allocation9 + $0x928] sm:$0xff]
      %v763 = vld [vmem:[#allocation9 + $0x930] sm:$0xff]
      %v764 = vld [vmem:[#allocation9 + $0x938] sm:$0xff]
      %v765 = vld [vmem:[#allocation9 + $0x940] sm:$0xff]
      %v766 = vld [vmem:[#allocation9 + $0x948] sm:$0xff]
      %v767 = vld [vmem:[#allocation9 + $0x950] sm:$0xff]
      %v768 = vld [vmem:[#allocation9 + $0x958] sm:$0xff]
      %v769 = vld [vmem:[#allocation9 + $0x960] sm:$0xff]
      %v770 = vld [vmem:[#allocation9 + $0x968] sm:$0xff]
      %v771 = vld [vmem:[#allocation9 + $0x970] sm:$0xff]
      %v772 = vld [vmem:[#allocation9 + $0x978] sm:$0xff]
      %v773 = vld [vmem:[#allocation9 + $0x980] sm:$0xff]
      %v774 = vld [vmem:[#allocation9 + $0x988] sm:$0xff]
      %v775 = vld [vmem:[#allocation9 + $0x990] sm:$0xff]
      %v776 = vld [vmem:[#allocation9 + $0x998] sm:$0xff]
      %v777 = vld [vmem:[#allocation9 + $0x9a0] sm:$0xff]
      %v778 = vld [vmem:[#allocation9 + $0x9a8] sm:$0xff]
      %v779 = vld [vmem:[#allocation9 + $0x9b0] sm:$0xff]
      %v780 = vld [vmem:[#allocation9 + $0x9b8] sm:$0xff]
      %v781 = vld [vmem:[#allocation9 + $0x9c0] sm:$0xff]
      %v782 = vld [vmem:[#allocation9 + $0x9c8] sm:$0xff]
      %v783 = vld [vmem:[#allocation9 + $0x9d0] sm:$0xff]
      %v784 = vld [vmem:[#allocation9 + $0x9d8] sm:$0xff]
      %v785 = vld [vmem:[#allocation9 + $0x9e0] sm:$0xff]
      %v786 = vld [vmem:[#allocation9 + $0x9e8] sm:$0xff]
      %v787 = vld [vmem:[#allocation9 + $0x9f0] sm:$0xff]
      %v788 = vld [vmem:[#allocation9 + $0x9f8] sm:$0xff]
      %v789 = vld [vmem:[#allocation9 + $0xa00] sm:$0xff]
      %v790 = vld [vmem:[#allocation9 + $0xa08] sm:$0xff]
      %v791 = vld [vmem:[#allocation9 + $0xa10] sm:$0xff]
      %v792 = vld [vmem:[#allocation9 + $0xa18] sm:$0xff]
      %v793 = vld [vmem:[#allocation9 + $0xa20] sm:$0xff]
      %v794 = vld [vmem:[#allocation9 + $0xa28] sm:$0xff]
      %v795 = vld [vmem:[#allocation9 + $0xa30] sm:$0xff]
      %v796 = vld [vmem:[#allocation9 + $0xa38] sm:$0xff]
      %v797 = vld [vmem:[#allocation9 + $0xa40] sm:$0xff]
      %v798 = vld [vmem:[#allocation9 + $0xa48] sm:$0xff]
      %v799 = vld [vmem:[#allocation9 + $0xa50] sm:$0xff]
      %v800 = vld [vmem:[#allocation9 + $0xa58] sm:$0xff]
      %v801 = vld [vmem:[#allocation9 + $0xa60] sm:$0xff]
      %v802 = vld [vmem:[#allocation9 + $0xa68] sm:$0xff]
      %v803 = vld [vmem:[#allocation9 + $0xa70] sm:$0xff]
      %v804 = vld [vmem:[#allocation9 + $0xa78] sm:$0xff]
      %v805 = vld [vmem:[#allocation9 + $0xa80] sm:$0xff]
      %v806 = vld [vmem:[#allocation9 + $0xa88] sm:$0xff]
      %v807 = vld [vmem:[#allocation9 + $0xa90] sm:$0xff]
      %v808 = vld [vmem:[#allocation9 + $0xa98] sm:$0xff]
      %v809 = vld [vmem:[#allocation9 + $0xaa0] sm:$0xff]
      %v810 = vld [vmem:[#allocation9 + $0xaa8] sm:$0xff]
      %v811 = vld [vmem:[#allocation9 + $0xab0] sm:$0xff]
      %v812 = vld [vmem:[#allocation9 + $0xab8] sm:$0xff]
      %v813 = vld [vmem:[#allocation9 + $0xac0] sm:$0xff]
      %v814 = vld [vmem:[#allocation9 + $0xac8] sm:$0xff]
      %v815 = vld [vmem:[#allocation9 + $0xad0] sm:$0xff]
      %v816 = vld [vmem:[#allocation9 + $0xad8] sm:$0xff]
      %v817 = vld [vmem:[#allocation9 + $0xae0] sm:$0xff]
      %v818 = vld [vmem:[#allocation9 + $0xae8] sm:$0xff]
      %v819 = vld [vmem:[#allocation9 + $0xaf0] sm:$0xff]
      %v820 = vld [vmem:[#allocation9 + $0xaf8] sm:$0xff]
      %v821 = vld [vmem:[#allocation9 + $0xb00] sm:$0xff]
      %v822 = vld [vmem:[#allocation9 + $0xb08] sm:$0xff]
      %v823 = vld [vmem:[#allocation9 + $0xb10] sm:$0xff]
      %v824 = vld [vmem:[#allocation9 + $0xb18] sm:$0xff]
      %v825 = vld [vmem:[#allocation9 + $0xb20] sm:$0xff]
      %v826 = vld [vmem:[#allocation9 + $0xb28] sm:$0xff]
      %v827 = vld [vmem:[#allocation9 + $0xb30] sm:$0xff]
      %v828 = vld [vmem:[#allocation9 + $0xb38] sm:$0xff]
      %v829 = vld [vmem:[#allocation9 + $0xb40] sm:$0xff]
      %v830 = vld [vmem:[#allocation9 + $0xb48] sm:$0xff]
      %v831 = vld [vmem:[#allocation9 + $0xb50] sm:$0xff]
      %v832 = vld [vmem:[#allocation9 + $0xb58] sm:$0xff]
      %v833 = vld [vmem:[#allocation9 + $0xb60] sm:$0xff]
      %v834 = vld [vmem:[#allocation9 + $0xb68] sm:$0xff]
      %v835 = vld [vmem:[#allocation9 + $0xb70] sm:$0xff]
      %v836 = vld [vmem:[#allocation9 + $0xb78] sm:$0xff]
      %v837 = vld [vmem:[#allocation9 + $0xb80] sm:$0xff]
      %v838 = vld [vmem:[#allocation9 + $0xb88] sm:$0xff]
      %v839 = vld [vmem:[#allocation9 + $0xb90] sm:$0xff]
      %v840 = vld [vmem:[#allocation9 + $0xb98] sm:$0xff]
      %v841 = vld [vmem:[#allocation9 + $0xba0] sm:$0xff]
      %v842 = vld [vmem:[#allocation9 + $0xba8] sm:$0xff]
      %v843 = vld [vmem:[#allocation9 + $0xbb0] sm:$0xff]
      %v844 = vld [vmem:[#allocation9 + $0xbb8] sm:$0xff]
      %v845 = vld [vmem:[#allocation9 + $0xbc0] sm:$0xff]
      %v846 = vld [vmem:[#allocation9 + $0xbc8] sm:$0xff]
      %v847 = vld [vmem:[#allocation9 + $0xbd0] sm:$0xff]
      %v848 = vld [vmem:[#allocation9 + $0xbd8] sm:$0xff]
      %v849 = vld [vmem:[#allocation9 + $0xbe0] sm:$0xff]
      %v850 = vld [vmem:[#allocation9 + $0xbe8] sm:$0xff]
      %v851 = vld [vmem:[#allocation9 + $0xbf0] sm:$0xff]
      %v852 = vld [vmem:[#allocation9 + $0xbf8] sm:$0xff]
      %v853 = vld [vmem:[#allocation11] sm:$0x3f]
      %v855 = vlaneseq
      %v856 = vshrl.u32 %v855, 7
      %v857 = vsub.s32 0, %v856
      %v858 = vrot.slane %v853, %v857
      %v859 = vlaneseq
      %v860 = vshrl.u32 %v859, 7
      %v861 = vsub.s32 1, %v860
      %v862 = vrot.slane %v853, %v861
      %v863 = vlaneseq
      %v864 = vshrl.u32 %v863, 7
      %v865 = vsub.s32 2, %v864
      %v866 = vrot.slane %v853, %v865
      %v867 = vlaneseq
      %v868 = vshrl.u32 %v867, 7
      %v869 = vsub.s32 3, %v868
      %v870 = vrot.slane %v853, %v869
      %v871 = vlaneseq
      %v872 = vshrl.u32 %v871, 7
      %v873 = vsub.s32 4, %v872
      %v874 = vrot.slane %v853, %v873
      %v875 = vlaneseq
      %v876 = vshrl.u32 %v875, 7
      %v877 = vsub.s32 5, %v876
      %v878 = vrot.slane %v853, %v877
      %v886 = vcombine.high %v468, %v468
      %v888 = vunpack.c.l.s4 1983009808
      %v889 = vunpack.c.0.s8 %v888
      %v890 = vlaneseq
      %v891 = vshrl.u32 %v890, 7
      %v892 = vsub.s32 %v889, %v891
      %v893 = vrot.slane %v468, %v892
      %v895 = vunpack.c.l.s4 1983009808
      %v896 = vunpack.c.0.s8 %v895
      %v897 = vlaneseq
      %v898 = vshrl.u32 %v897, 7
      %v899 = vsub.s32 %v896, %v898
      %v900 = vrot.slane %v886, %v899
      %v901 = vcombine.high %v893, %v893
      %v902 = vcombine.high %v900, %v900
      %907 = vmatprep.subr.mxu0 %v560
      %908 = vmatpush1.msra.mxu0 %v559
      %909 = vmatprep.subr.mxu0 %v554
      %910 = vmatpush1.msra.mxu0 %v553
      %911 = vmatprep.subr.mxu0 %v548
      %912 = vmatpush1.msra.mxu0 %v547
      %913 = vmatprep.subr.mxu0 %v542
      %914 = vmatpush1.msra.mxu0 %v541
      %915 = vmatprep.subr.mxu0 %v536
      %916 = vmatpush1.msra.mxu0 %v535
      %917 = vmatprep.subr.mxu0 %v530
      %918 = vmatpush1.msra.mxu0 %v529
      %919 = vmatprep.subr.mxu0 %v524
      %920 = vmatpush1.msra.mxu0 %v523
      %921 = vmatprep.subr.mxu0 %v518
      %922 = vmatpush1.msra.mxu0 %v517
      %923 = vmatprep.subr.mxu0 %v512
      %924 = vmatpush1.msra.mxu0 %v511
      %925 = vmatprep.subr.mxu0 %v506
      %926 = vmatpush1.msra.mxu0 %v505
      %927 = vmatprep.subr.mxu0 %v500
      %928 = vmatpush1.msra.mxu0 %v499
      %929 = vmatprep.subr.mxu0 %v494
      %930 = vmatpush1.msra.mxu0 %v493
      %931 = vmatprep.subr.mxu0 %v488
      %932 = vmatpush1.msra.mxu0 %v487
      %933 = vmatprep.subr.mxu0 %v482
      %934 = vmatpush1.msra.mxu0 %v481
      %935 = vmatprep.subr.mxu0 %v476
      %936 = vmatpush1.msra.mxu0 %v475
      %937 = vmatprep.subr.mxu0 %v470
      %938 = vmatpush1.msra.mxu0 %v469
      %939 = vmatprep.subr.mxu0 %v656
      %940 = vmatpush2.msra.mxu0 %v655
      %941 = vmatprep.subr.mxu0 %v650
      %942 = vmatpush2.msra.mxu0 %v649
      %943 = vmatprep.subr.mxu0 %v644
      %944 = vmatpush2.msra.mxu0 %v643
      %945 = vmatprep.subr.mxu0 %v638
      %946 = vmatpush2.msra.mxu0 %v637
      %947 = vmatprep.subr.mxu0 %v632
      %948 = vmatpush2.msra.mxu0 %v631
      %949 = vmatprep.subr.mxu0 %v626
      %950 = vmatpush2.msra.mxu0 %v625
      %951 = vmatprep.subr.mxu0 %v620
      %952 = vmatpush2.msra.mxu0 %v619
      %953 = vmatprep.subr.mxu0 %v614
      %954 = vmatpush2.msra.mxu0 %v613
      %955 = vmatprep.subr.mxu0 %v608
      %956 = vmatpush2.msra.mxu0 %v607
      %957 = vmatprep.subr.mxu0 %v602
      %958 = vmatpush2.msra.mxu0 %v601
      %959 = vmatprep.subr.mxu0 %v596
      %960 = vmatpush2.msra.mxu0 %v595
      %961 = vmatprep.subr.mxu0 %v590
      %962 = vmatpush2.msra.mxu0 %v589
      %963 = vmatprep.subr.mxu0 %v584
      %964 = vmatpush2.msra.mxu0 %v583
      %965 = vmatprep.subr.mxu0 %v578
      %966 = vmatpush2.msra.mxu0 %v577
      %967 = vmatprep.subr.mxu0 %v572
      %968 = vmatpush2.msra.mxu0 %v571
      %969 = vmatprep.subr.mxu0 %v566
      %970 = vmatpush2.msra.mxu0 %v565
      %971 = vmatprep.mubr.f32.mxu0 %v901
      %972 = vmatmul.mubr.f32.gmra.mxu0 %v893
      %v973 = vpop.f32.mrf.mxu0
      %v974 = vadd.f32 %v858, %v973
      %v975 = vpop.f32.mrf.mxu0
      %v976 = vadd.f32 %v862, %v975
      %977 = vdwg.mxu0
      %978 = vmatprep.subr.mxu0 %v752
      %979 = vmatpush1.msra.mxu0 %v751
      %980 = vmatprep.subr.mxu0 %v746
      %981 = vmatpush1.msra.mxu0 %v745
      %982 = vmatprep.subr.mxu0 %v740
      %983 = vmatpush1.msra.mxu0 %v739
      %984 = vmatprep.subr.mxu0 %v734
      %985 = vmatpush1.msra.mxu0 %v733
      %986 = vmatprep.subr.mxu0 %v728
      %987 = vmatpush1.msra.mxu0 %v727
      %988 = vmatprep.subr.mxu0 %v722
      %989 = vmatpush1.msra.mxu0 %v721
      %990 = vmatprep.subr.mxu0 %v716
      %991 = vmatpush1.msra.mxu0 %v715
      %992 = vmatprep.subr.mxu0 %v710
      %993 = vmatpush1.msra.mxu0 %v709
      %994 = vmatprep.subr.mxu0 %v704
      %995 = vmatpush1.msra.mxu0 %v703
      %996 = vmatprep.subr.mxu0 %v698
      %997 = vmatpush1.msra.mxu0 %v697
      %998 = vmatprep.subr.mxu0 %v692
      %999 = vmatpush1.msra.mxu0 %v691
      %1000 = vmatprep.subr.mxu0 %v686
      %1001 = vmatpush1.msra.mxu0 %v685
      %1002 = vmatprep.subr.mxu0 %v680
      %1003 = vmatpush1.msra.mxu0 %v679
      %1004 = vmatprep.subr.mxu0 %v674
      %1005 = vmatpush1.msra.mxu0 %v673
      %1006 = vmatprep.subr.mxu0 %v668
      %1007 = vmatpush1.msra.mxu0 %v667
      %1008 = vmatprep.subr.mxu0 %v662
      %1009 = vmatpush1.msra.mxu0 %v661
      %1010 = vmatprep.subr.mxu0 %v848
      %1011 = vmatpush2.msra.mxu0 %v847
      %1012 = vmatprep.subr.mxu0 %v842
      %1013 = vmatpush2.msra.mxu0 %v841
      %1014 = vmatprep.subr.mxu0 %v836
      %1015 = vmatpush2.msra.mxu0 %v835
      %1016 = vmatprep.subr.mxu0 %v830
      %1017 = vmatpush2.msra.mxu0 %v829
      %1018 = vmatprep.subr.mxu0 %v824
      %1019 = vmatpush2.msra.mxu0 %v823
      %1020 = vmatprep.subr.mxu0 %v818
      %1021 = vmatpush2.msra.mxu0 %v817
      %1022 = vmatprep.subr.mxu0 %v812
      %1023 = vmatpush2.msra.mxu0 %v811
      %1024 = vmatprep.subr.mxu0 %v806
      %1025 = vmatpush2.msra.mxu0 %v805
      %1026 = vmatprep.subr.mxu0 %v800
      %1027 = vmatpush2.msra.mxu0 %v799
      %1028 = vmatprep.subr.mxu0 %v794
      %1029 = vmatpush2.msra.mxu0 %v793
      %1030 = vmatprep.subr.mxu0 %v788
      %1031 = vmatpush2.msra.mxu0 %v787
      %1032 = vmatprep.subr.mxu0 %v782
      %1033 = vmatpush2.msra.mxu0 %v781
      %1034 = vmatprep.subr.mxu0 %v776
      %1035 = vmatpush2.msra.mxu0 %v775
      %1036 = vmatprep.subr.mxu0 %v770
      %1037 = vmatpush2.msra.mxu0 %v769
      %1038 = vmatprep.subr.mxu0 %v764
      %1039 = vmatpush2.msra.mxu0 %v763
      %1040 = vmatprep.subr.mxu0 %v758
      %1041 = vmatpush2.msra.mxu0 %v757
      %1042 = vmatprep.mubr.f32.mxu0 %v902
      %1043 = vmatmul.mubr.f32.gmra.mxu0 %v900
      %v1044 = vpop.f32.mrf.mxu0
      %v1045 = vadd.f32 %v974, %v1044
      %v1046 = vpop.f32.mrf.mxu0
      %v1047 = vadd.f32 %v976, %v1046
      %1048 = vdwg.mxu0
      %1049 = vmatprep.subr.mxu0 %v562
      %1050 = vmatpush1.msra.mxu0 %v561
      %1051 = vmatprep.subr.mxu0 %v556
      %1052 = vmatpush1.msra.mxu0 %v555
      %1053 = vmatprep.subr.mxu0 %v550
      %1054 = vmatpush1.msra.mxu0 %v549
      %1055 = vmatprep.subr.mxu0 %v544
      %1056 = vmatpush1.msra.mxu0 %v543
      %1057 = vmatprep.subr.mxu0 %v538
      %1058 = vmatpush1.msra.mxu0 %v537
      %1059 = vmatprep.subr.mxu0 %v532
      %1060 = vmatpush1.msra.mxu0 %v531
      %1061 = vmatprep.subr.mxu0 %v526
      %1062 = vmatpush1.msra.mxu0 %v525
      %1063 = vmatprep.subr.mxu0 %v520
      %1064 = vmatpush1.msra.mxu0 %v519
      %1065 = vmatprep.subr.mxu0 %v514
      %1066 = vmatpush1.msra.mxu0 %v513
      %1067 = vmatprep.subr.mxu0 %v508
      %1068 = vmatpush1.msra.mxu0 %v507
      %1069 = vmatprep.subr.mxu0 %v502
      %1070 = vmatpush1.msra.mxu0 %v501
      %1071 = vmatprep.subr.mxu0 %v496
      %1072 = vmatpush1.msra.mxu0 %v495
      %1073 = vmatprep.subr.mxu0 %v490
      %1074 = vmatpush1.msra.mxu0 %v489
      %1075 = vmatprep.subr.mxu0 %v484
      %1076 = vmatpush1.msra.mxu0 %v483
      %1077 = vmatprep.subr.mxu0 %v478
      %1078 = vmatpush1.msra.mxu0 %v477
      %1079 = vmatprep.subr.mxu0 %v472
      %1080 = vmatpush1.msra.mxu0 %v471
      %1081 = vmatprep.subr.mxu0 %v658
      %1082 = vmatpush2.msra.mxu0 %v657
      %1083 = vmatprep.subr.mxu0 %v652
      %1084 = vmatpush2.msra.mxu0 %v651
      %1085 = vmatprep.subr.mxu0 %v646
      %1086 = vmatpush2.msra.mxu0 %v645
      %1087 = vmatprep.subr.mxu0 %v640
      %1088 = vmatpush2.msra.mxu0 %v639
      %1089 = vmatprep.subr.mxu0 %v634
      %1090 = vmatpush2.msra.mxu0 %v633
      %1091 = vmatprep.subr.mxu0 %v628
      %1092 = vmatpush2.msra.mxu0 %v627
      %1093 = vmatprep.subr.mxu0 %v622
      %1094 = vmatpush2.msra.mxu0 %v621
      %1095 = vmatprep.subr.mxu0 %v616
      %1096 = vmatpush2.msra.mxu0 %v615
      %1097 = vmatprep.subr.mxu0 %v610
      %1098 = vmatpush2.msra.mxu0 %v609
      %1099 = vmatprep.subr.mxu0 %v604
      %1100 = vmatpush2.msra.mxu0 %v603
      %1101 = vmatprep.subr.mxu0 %v598
      %1102 = vmatpush2.msra.mxu0 %v597
      %1103 = vmatprep.subr.mxu0 %v592
      %1104 = vmatpush2.msra.mxu0 %v591
      %1105 = vmatprep.subr.mxu0 %v586
      %1106 = vmatpush2.msra.mxu0 %v585
      %1107 = vmatprep.subr.mxu0 %v580
      %1108 = vmatpush2.msra.mxu0 %v579
      %1109 = vmatprep.subr.mxu0 %v574
      %1110 = vmatpush2.msra.mxu0 %v573
      %1111 = vmatprep.subr.mxu0 %v568
      %1112 = vmatpush2.msra.mxu0 %v567
      %1113 = vmatprep.mubr.f32.mxu0 %v901
      %1114 = vmatmul.mubr.f32.gmra.mxu0 %v893
      %v1115 = vpop.f32.mrf.mxu0
      %v1116 = vadd.f32 %v866, %v1115
      %v1117 = vpop.f32.mrf.mxu0
      %v1118 = vadd.f32 %v870, %v1117
      %1119 = vdwg.mxu0
      %1120 = vmatprep.subr.mxu0 %v754
      %1121 = vmatpush1.msra.mxu0 %v753
      %1122 = vmatprep.subr.mxu0 %v748
      %1123 = vmatpush1.msra.mxu0 %v747
      %1124 = vmatprep.subr.mxu0 %v742
      %1125 = vmatpush1.msra.mxu0 %v741
      %1126 = vmatprep.subr.mxu0 %v736
      %1127 = vmatpush1.msra.mxu0 %v735
      %1128 = vmatprep.subr.mxu0 %v730
      %1129 = vmatpush1.msra.mxu0 %v729
      %1130 = vmatprep.subr.mxu0 %v724
      %1131 = vmatpush1.msra.mxu0 %v723
      %1132 = vmatprep.subr.mxu0 %v718
      %1133 = vmatpush1.msra.mxu0 %v717
      %1134 = vmatprep.subr.mxu0 %v712
      %1135 = vmatpush1.msra.mxu0 %v711
      %1136 = vmatprep.subr.mxu0 %v706
      %1137 = vmatpush1.msra.mxu0 %v705
      %1138 = vmatprep.subr.mxu0 %v700
      %1139 = vmatpush1.msra.mxu0 %v699
      %1140 = vmatprep.subr.mxu0 %v694
      %1141 = vmatpush1.msra.mxu0 %v693
      %1142 = vmatprep.subr.mxu0 %v688
      %1143 = vmatpush1.msra.mxu0 %v687
      %1144 = vmatprep.subr.mxu0 %v682
      %1145 = vmatpush1.msra.mxu0 %v681
      %1146 = vmatprep.subr.mxu0 %v676
      %1147 = vmatpush1.msra.mxu0 %v675
      %1148 = vmatprep.subr.mxu0 %v670
      %1149 = vmatpush1.msra.mxu0 %v669
      %1150 = vmatprep.subr.mxu0 %v664
      %1151 = vmatpush1.msra.mxu0 %v663
      %1152 = vmatprep.subr.mxu0 %v850
      %1153 = vmatpush2.msra.mxu0 %v849
      %1154 = vmatprep.subr.mxu0 %v844
      %1155 = vmatpush2.msra.mxu0 %v843
      %1156 = vmatprep.subr.mxu0 %v838
      %1157 = vmatpush2.msra.mxu0 %v837
      %1158 = vmatprep.subr.mxu0 %v832
      %1159 = vmatpush2.msra.mxu0 %v831
      %1160 = vmatprep.subr.mxu0 %v826
      %1161 = vmatpush2.msra.mxu0 %v825
      %1162 = vmatprep.subr.mxu0 %v820
      %1163 = vmatpush2.msra.mxu0 %v819
      %1164 = vmatprep.subr.mxu0 %v814
      %1165 = vmatpush2.msra.mxu0 %v813
      %1166 = vmatprep.subr.mxu0 %v808
      %1167 = vmatpush2.msra.mxu0 %v807
      %1168 = vmatprep.subr.mxu0 %v802
      %1169 = vmatpush2.msra.mxu0 %v801
      %1170 = vmatprep.subr.mxu0 %v796
      %1171 = vmatpush2.msra.mxu0 %v795
      %1172 = vmatprep.subr.mxu0 %v790
      %1173 = vmatpush2.msra.mxu0 %v789
      %1174 = vmatprep.subr.mxu0 %v784
      %1175 = vmatpush2.msra.mxu0 %v783
      %1176 = vmatprep.subr.mxu0 %v778
      %1177 = vmatpush2.msra.mxu0 %v777
      %1178 = vmatprep.subr.mxu0 %v772
      %1179 = vmatpush2.msra.mxu0 %v771
      %1180 = vmatprep.subr.mxu0 %v766
      %1181 = vmatpush2.msra.mxu0 %v765
      %1182 = vmatprep.subr.mxu0 %v760
      %1183 = vmatpush2.msra.mxu0 %v759
      %1184 = vmatprep.mubr.f32.mxu0 %v902
      %1185 = vmatmul.mubr.f32.gmra.mxu0 %v900
      %v1186 = vpop.f32.mrf.mxu0
      %v1187 = vadd.f32 %v1116, %v1186
      %v1188 = vpop.f32.mrf.mxu0
      %v1189 = vadd.f32 %v1118, %v1188
      %1190 = vdwg.mxu0
      %1191 = vmatprep.subr.mxu0 %v564
      %1192 = vmatpush1.msra.mxu0 %v563
      %1193 = vmatprep.subr.mxu0 %v558
      %1194 = vmatpush1.msra.mxu0 %v557
      %1195 = vmatprep.subr.mxu0 %v552
      %1196 = vmatpush1.msra.mxu0 %v551
      %1197 = vmatprep.subr.mxu0 %v546
      %1198 = vmatpush1.msra.mxu0 %v545
      %1199 = vmatprep.subr.mxu0 %v540
      %1200 = vmatpush1.msra.mxu0 %v539
      %1201 = vmatprep.subr.mxu0 %v534
      %1202 = vmatpush1.msra.mxu0 %v533
      %1203 = vmatprep.subr.mxu0 %v528
      %1204 = vmatpush1.msra.mxu0 %v527
      %1205 = vmatprep.subr.mxu0 %v522
      %1206 = vmatpush1.msra.mxu0 %v521
      %1207 = vmatprep.subr.mxu0 %v516
      %1208 = vmatpush1.msra.mxu0 %v515
      %1209 = vmatprep.subr.mxu0 %v510
      %1210 = vmatpush1.msra.mxu0 %v509
      %1211 = vmatprep.subr.mxu0 %v504
      %1212 = vmatpush1.msra.mxu0 %v503
      %1213 = vmatprep.subr.mxu0 %v498
      %1214 = vmatpush1.msra.mxu0 %v497
      %1215 = vmatprep.subr.mxu0 %v492
      %1216 = vmatpush1.msra.mxu0 %v491
      %1217 = vmatprep.subr.mxu0 %v486
      %1218 = vmatpush1.msra.mxu0 %v485
      %1219 = vmatprep.subr.mxu0 %v480
      %1220 = vmatpush1.msra.mxu0 %v479
      %1221 = vmatprep.subr.mxu0 %v474
      %1222 = vmatpush1.msra.mxu0 %v473
      %1223 = vmatprep.subr.mxu0 %v660
      %1224 = vmatpush2.msra.mxu0 %v659
      %1225 = vmatprep.subr.mxu0 %v654
      %1226 = vmatpush2.msra.mxu0 %v653
      %1227 = vmatprep.subr.mxu0 %v648
      %1228 = vmatpush2.msra.mxu0 %v647
      %1229 = vmatprep.subr.mxu0 %v642
      %1230 = vmatpush2.msra.mxu0 %v641
      %1231 = vmatprep.subr.mxu0 %v636
      %1232 = vmatpush2.msra.mxu0 %v635
      %1233 = vmatprep.subr.mxu0 %v630
      %1234 = vmatpush2.msra.mxu0 %v629
      %1235 = vmatprep.subr.mxu0 %v624
      %1236 = vmatpush2.msra.mxu0 %v623
      %1237 = vmatprep.subr.mxu0 %v618
      %1238 = vmatpush2.msra.mxu0 %v617
      %1239 = vmatprep.subr.mxu0 %v612
      %1240 = vmatpush2.msra.mxu0 %v611
      %1241 = vmatprep.subr.mxu0 %v606
      %1242 = vmatpush2.msra.mxu0 %v605
      %1243 = vmatprep.subr.mxu0 %v600
      %1244 = vmatpush2.msra.mxu0 %v599
      %1245 = vmatprep.subr.mxu0 %v594
      %1246 = vmatpush2.msra.mxu0 %v593
      %1247 = vmatprep.subr.mxu0 %v588
      %1248 = vmatpush2.msra.mxu0 %v587
      %1249 = vmatprep.subr.mxu0 %v582
      %1250 = vmatpush2.msra.mxu0 %v581
      %1251 = vmatprep.subr.mxu0 %v576
      %1252 = vmatpush2.msra.mxu0 %v575
      %1253 = vmatprep.subr.mxu0 %v570
      %1254 = vmatpush2.msra.mxu0 %v569
      %1255 = vmatprep.mubr.f32.mxu0 %v901
      %1256 = vmatmul.mubr.f32.gmra.mxu0 %v893
      %v1257 = vpop.f32.mrf.mxu0
      %v1258 = vadd.f32 %v874, %v1257
      %v1259 = vpop.f32.mrf.mxu0
      %v1260 = vadd.f32 %v878, %v1259
      %1261 = vdwg.mxu0
      %1262 = vmatprep.subr.mxu0 %v756
      %1263 = vmatpush1.msra.mxu0 %v755
      %1264 = vmatprep.subr.mxu0 %v750
      %1265 = vmatpush1.msra.mxu0 %v749
      %1266 = vmatprep.subr.mxu0 %v744
      %1267 = vmatpush1.msra.mxu0 %v743
      %1268 = vmatprep.subr.mxu0 %v738
      %1269 = vmatpush1.msra.mxu0 %v737
      %1270 = vmatprep.subr.mxu0 %v732
      %1271 = vmatpush1.msra.mxu0 %v731
      %1272 = vmatprep.subr.mxu0 %v726
      %1273 = vmatpush1.msra.mxu0 %v725
      %1274 = vmatprep.subr.mxu0 %v720
      %1275 = vmatpush1.msra.mxu0 %v719
      %1276 = vmatprep.subr.mxu0 %v714
      %1277 = vmatpush1.msra.mxu0 %v713
      %1278 = vmatprep.subr.mxu0 %v708
      %1279 = vmatpush1.msra.mxu0 %v707
      %1280 = vmatprep.subr.mxu0 %v702
      %1281 = vmatpush1.msra.mxu0 %v701
      %1282 = vmatprep.subr.mxu0 %v696
      %1283 = vmatpush1.msra.mxu0 %v695
      %1284 = vmatprep.subr.mxu0 %v690
      %1285 = vmatpush1.msra.mxu0 %v689
      %1286 = vmatprep.subr.mxu0 %v684
      %1287 = vmatpush1.msra.mxu0 %v683
      %1288 = vmatprep.subr.mxu0 %v678
      %1289 = vmatpush1.msra.mxu0 %v677
      %1290 = vmatprep.subr.mxu0 %v672
      %1291 = vmatpush1.msra.mxu0 %v671
      %1292 = vmatprep.subr.mxu0 %v666
      %1293 = vmatpush1.msra.mxu0 %v665
      %1294 = vmatprep.subr.mxu0 %v852
      %1295 = vmatpush2.msra.mxu0 %v851
      %1296 = vmatprep.subr.mxu0 %v846
      %1297 = vmatpush2.msra.mxu0 %v845
      %1298 = vmatprep.subr.mxu0 %v840
      %1299 = vmatpush2.msra.mxu0 %v839
      %1300 = vmatprep.subr.mxu0 %v834
      %1301 = vmatpush2.msra.mxu0 %v833
      %1302 = vmatprep.subr.mxu0 %v828
      %1303 = vmatpush2.msra.mxu0 %v827
      %1304 = vmatprep.subr.mxu0 %v822
      %1305 = vmatpush2.msra.mxu0 %v821
      %1306 = vmatprep.subr.mxu0 %v816
      %1307 = vmatpush2.msra.mxu0 %v815
      %1308 = vmatprep.subr.mxu0 %v810
      %1309 = vmatpush2.msra.mxu0 %v809
      %1310 = vmatprep.subr.mxu0 %v804
      %1311 = vmatpush2.msra.mxu0 %v803
      %1312 = vmatprep.subr.mxu0 %v798
      %1313 = vmatpush2.msra.mxu0 %v797
      %1314 = vmatprep.subr.mxu0 %v792
      %1315 = vmatpush2.msra.mxu0 %v791
      %1316 = vmatprep.subr.mxu0 %v786
      %1317 = vmatpush2.msra.mxu0 %v785
      %1318 = vmatprep.subr.mxu0 %v780
      %1319 = vmatpush2.msra.mxu0 %v779
      %1320 = vmatprep.subr.mxu0 %v774
      %1321 = vmatpush2.msra.mxu0 %v773
      %1322 = vmatprep.subr.mxu0 %v768
      %1323 = vmatpush2.msra.mxu0 %v767
      %1324 = vmatprep.subr.mxu0 %v762
      %1325 = vmatpush2.msra.mxu0 %v761
      %1326 = vmatprep.mubr.f32.mxu0 %v902
      %1327 = vmatmul.mubr.f32.gmra.mxu0 %v900
      %v1328 = vpop.f32.mrf.mxu0
      %v1329 = vadd.f32 %v1258, %v1328
      %v1330 = vpop.f32.mrf.mxu0
      %v1331 = vadd.f32 %v1260, %v1330
      %1332 = vdwg.mxu0
      %v1333 = vmax.f32 %v1045, 0.0
      %v1334 = vmax.f32 %v1047, 0.0
      %v1335 = vmax.f32 %v1187, 0.0
      %v1336 = vmax.f32 %v1189, 0.0
      %v1337 = vmax.f32 %v1329, 0.0
      %v1338 = vmax.f32 %v1331, 0.0
      %v1339 = vld [vmem:[#allocation12] sm:$0xff]
      %v1340 = vld [vmem:[#allocation12 + $0x8] sm:$0xff]
      %v1341 = vld [vmem:[#allocation12 + $0x10] sm:$0xff]
      %v1342 = vld [vmem:[#allocation12 + $0x18] sm:$0xff]
      %v1343 = vld [vmem:[#allocation12 + $0x20] sm:$0xff]
      %v1344 = vld [vmem:[#allocation12 + $0x28] sm:$0xff]
      %v1345 = vld [vmem:[#allocation12 + $0x30] sm:$0xff]
      %v1346 = vld [vmem:[#allocation12 + $0x38] sm:$0xff]
      %v1347 = vld [vmem:[#allocation12 + $0x40] sm:$0xff]
      %v1348 = vld [vmem:[#allocation12 + $0x48] sm:$0xff]
      %v1349 = vld [vmem:[#allocation12 + $0x50] sm:$0xff]
      %v1350 = vld [vmem:[#allocation12 + $0x58] sm:$0xff]
      %v1351 = vld [vmem:[#allocation12 + $0x60] sm:$0xff]
      %v1352 = vld [vmem:[#allocation12 + $0x68] sm:$0xff]
      %v1353 = vld [vmem:[#allocation12 + $0x70] sm:$0xff]
      %v1354 = vld [vmem:[#allocation12 + $0x78] sm:$0xff]
      %v1355 = vld [vmem:[#allocation12 + $0x80] sm:$0xff]
      %v1356 = vld [vmem:[#allocation12 + $0x88] sm:$0xff]
      %v1357 = vld [vmem:[#allocation12 + $0x90] sm:$0xff]
      %v1358 = vld [vmem:[#allocation12 + $0x98] sm:$0xff]
      %v1359 = vld [vmem:[#allocation12 + $0xa0] sm:$0xff]
      %v1360 = vld [vmem:[#allocation12 + $0xa8] sm:$0xff]
      %v1361 = vld [vmem:[#allocation12 + $0xb0] sm:$0xff]
      %v1362 = vld [vmem:[#allocation12 + $0xb8] sm:$0xff]
      %v1363 = vld [vmem:[#allocation12 + $0xc0] sm:$0xff]
      %v1364 = vld [vmem:[#allocation12 + $0xc8] sm:$0xff]
      %v1365 = vld [vmem:[#allocation12 + $0xd0] sm:$0xff]
      %v1366 = vld [vmem:[#allocation12 + $0xd8] sm:$0xff]
      %v1367 = vld [vmem:[#allocation12 + $0xe0] sm:$0xff]
      %v1368 = vld [vmem:[#allocation12 + $0xe8] sm:$0xff]
      %v1369 = vld [vmem:[#allocation12 + $0xf0] sm:$0xff]
      %v1370 = vld [vmem:[#allocation12 + $0xf8] sm:$0xff]
      %v1371 = vld [vmem:[#allocation12 + $0x100] sm:$0xff]
      %v1372 = vld [vmem:[#allocation12 + $0x108] sm:$0xff]
      %v1373 = vld [vmem:[#allocation12 + $0x110] sm:$0xff]
      %v1374 = vld [vmem:[#allocation12 + $0x118] sm:$0xff]
      %v1375 = vld [vmem:[#allocation12 + $0x120] sm:$0xff]
      %v1376 = vld [vmem:[#allocation12 + $0x128] sm:$0xff]
      %v1377 = vld [vmem:[#allocation12 + $0x130] sm:$0xff]
      %v1378 = vld [vmem:[#allocation12 + $0x138] sm:$0xff]
      %v1379 = vld [vmem:[#allocation12 + $0x140] sm:$0xff]
      %v1380 = vld [vmem:[#allocation12 + $0x148] sm:$0xff]
      %v1381 = vld [vmem:[#allocation12 + $0x150] sm:$0xff]
      %v1382 = vld [vmem:[#allocation12 + $0x158] sm:$0xff]
      %v1383 = vld [vmem:[#allocation12 + $0x160] sm:$0xff]
      %v1384 = vld [vmem:[#allocation12 + $0x168] sm:$0xff]
      %v1385 = vld [vmem:[#allocation12 + $0x170] sm:$0xff]
      %v1386 = vld [vmem:[#allocation12 + $0x178] sm:$0xff]
      %v1387 = vld [vmem:[#allocation12 + $0x180] sm:$0xff]
      %v1388 = vld [vmem:[#allocation12 + $0x188] sm:$0xff]
      %v1389 = vld [vmem:[#allocation12 + $0x190] sm:$0xff]
      %v1390 = vld [vmem:[#allocation12 + $0x198] sm:$0xff]
      %v1391 = vld [vmem:[#allocation12 + $0x1a0] sm:$0xff]
      %v1392 = vld [vmem:[#allocation12 + $0x1a8] sm:$0xff]
      %v1393 = vld [vmem:[#allocation12 + $0x1b0] sm:$0xff]
      %v1394 = vld [vmem:[#allocation12 + $0x1b8] sm:$0xff]
      %v1395 = vld [vmem:[#allocation12 + $0x1c0] sm:$0xff]
      %v1396 = vld [vmem:[#allocation12 + $0x1c8] sm:$0xff]
      %v1397 = vld [vmem:[#allocation12 + $0x1d0] sm:$0xff]
      %v1398 = vld [vmem:[#allocation12 + $0x1d8] sm:$0xff]
      %v1399 = vld [vmem:[#allocation12 + $0x1e0] sm:$0xff]
      %v1400 = vld [vmem:[#allocation12 + $0x1e8] sm:$0xff]
      %v1401 = vld [vmem:[#allocation12 + $0x1f0] sm:$0xff]
      %v1402 = vld [vmem:[#allocation12 + $0x1f8] sm:$0xff]
      %v1403 = vld [vmem:[#allocation12 + $0x200] sm:$0xff]
      %v1404 = vld [vmem:[#allocation12 + $0x208] sm:$0xff]
      %v1405 = vld [vmem:[#allocation12 + $0x210] sm:$0xff]
      %v1406 = vld [vmem:[#allocation12 + $0x218] sm:$0xff]
      %v1407 = vld [vmem:[#allocation12 + $0x220] sm:$0xff]
      %v1408 = vld [vmem:[#allocation12 + $0x228] sm:$0xff]
      %v1409 = vld [vmem:[#allocation12 + $0x230] sm:$0xff]
      %v1410 = vld [vmem:[#allocation12 + $0x238] sm:$0xff]
      %v1411 = vld [vmem:[#allocation12 + $0x240] sm:$0xff]
      %v1412 = vld [vmem:[#allocation12 + $0x248] sm:$0xff]
      %v1413 = vld [vmem:[#allocation12 + $0x250] sm:$0xff]
      %v1414 = vld [vmem:[#allocation12 + $0x258] sm:$0xff]
      %v1415 = vld [vmem:[#allocation12 + $0x260] sm:$0xff]
      %v1416 = vld [vmem:[#allocation12 + $0x268] sm:$0xff]
      %v1417 = vld [vmem:[#allocation12 + $0x270] sm:$0xff]
      %v1418 = vld [vmem:[#allocation12 + $0x278] sm:$0xff]
      %v1419 = vld [vmem:[#allocation12 + $0x280] sm:$0xff]
      %v1420 = vld [vmem:[#allocation12 + $0x288] sm:$0xff]
      %v1421 = vld [vmem:[#allocation12 + $0x290] sm:$0xff]
      %v1422 = vld [vmem:[#allocation12 + $0x298] sm:$0xff]
      %v1423 = vld [vmem:[#allocation12 + $0x2a0] sm:$0xff]
      %v1424 = vld [vmem:[#allocation12 + $0x2a8] sm:$0xff]
      %v1425 = vld [vmem:[#allocation12 + $0x2b0] sm:$0xff]
      %v1426 = vld [vmem:[#allocation12 + $0x2b8] sm:$0xff]
      %v1427 = vld [vmem:[#allocation12 + $0x2c0] sm:$0xff]
      %v1428 = vld [vmem:[#allocation12 + $0x2c8] sm:$0xff]
      %v1429 = vld [vmem:[#allocation12 + $0x2d0] sm:$0xff]
      %v1430 = vld [vmem:[#allocation12 + $0x2d8] sm:$0xff]
      %v1431 = vld [vmem:[#allocation12 + $0x2e0] sm:$0xff]
      %v1432 = vld [vmem:[#allocation12 + $0x2e8] sm:$0xff]
      %v1433 = vld [vmem:[#allocation12 + $0x2f0] sm:$0xff]
      %v1434 = vld [vmem:[#allocation12 + $0x2f8] sm:$0xff]
      %v1435 = vld [vmem:[#allocation14] sm:$0x1]
      %v1437 = vlaneseq
      %v1438 = vshrl.u32 %v1437, 7
      %v1439 = vsub.s32 0, %v1438
      %v1440 = vrot.slane %v1435, %v1439
      %1442 = vmatprep.subr.mxu0 0.0
      %1443 = vmatpush1.msra.mxu0 %v1354
      %1444 = vmatprep.subr.mxu0 0.0
      %1445 = vmatpush1.msra.mxu0 %v1353
      %1446 = vmatprep.subr.mxu0 0.0
      %1447 = vmatpush1.msra.mxu0 %v1352
      %1448 = vmatprep.subr.mxu0 0.0
      %1449 = vmatpush1.msra.mxu0 %v1351
      %1450 = vmatprep.subr.mxu0 0.0
      %1451 = vmatpush1.msra.mxu0 %v1350
      %1452 = vmatprep.subr.mxu0 0.0
      %1453 = vmatpush1.msra.mxu0 %v1349
      %1454 = vmatprep.subr.mxu0 0.0
      %1455 = vmatpush1.msra.mxu0 %v1348
      %1456 = vmatprep.subr.mxu0 0.0
      %1457 = vmatpush1.msra.mxu0 %v1347
      %1458 = vmatprep.subr.mxu0 0.0
      %1459 = vmatpush1.msra.mxu0 %v1346
      %1460 = vmatprep.subr.mxu0 0.0
      %1461 = vmatpush1.msra.mxu0 %v1345
      %1462 = vmatprep.subr.mxu0 0.0
      %1463 = vmatpush1.msra.mxu0 %v1344
      %1464 = vmatprep.subr.mxu0 0.0
      %1465 = vmatpush1.msra.mxu0 %v1343
      %1466 = vmatprep.subr.mxu0 0.0
      %1467 = vmatpush1.msra.mxu0 %v1342
      %1468 = vmatprep.subr.mxu0 0.0
      %1469 = vmatpush1.msra.mxu0 %v1341
      %1470 = vmatprep.subr.mxu0 0.0
      %1471 = vmatpush1.msra.mxu0 %v1340
      %1472 = vmatprep.subr.mxu0 0.0
      %1473 = vmatpush1.msra.mxu0 %v1339
      %1474 = vmatprep.subr.mxu0 0.0
      %1475 = vmatpush2.msra.mxu0 %v1370
      %1476 = vmatprep.subr.mxu0 0.0
      %1477 = vmatpush2.msra.mxu0 %v1369
      %1478 = vmatprep.subr.mxu0 0.0
      %1479 = vmatpush2.msra.mxu0 %v1368
      %1480 = vmatprep.subr.mxu0 0.0
      %1481 = vmatpush2.msra.mxu0 %v1367
      %1482 = vmatprep.subr.mxu0 0.0
      %1483 = vmatpush2.msra.mxu0 %v1366
      %1484 = vmatprep.subr.mxu0 0.0
      %1485 = vmatpush2.msra.mxu0 %v1365
      %1486 = vmatprep.subr.mxu0 0.0
      %1487 = vmatpush2.msra.mxu0 %v1364
      %1488 = vmatprep.subr.mxu0 0.0
      %1489 = vmatpush2.msra.mxu0 %v1363
      %1490 = vmatprep.subr.mxu0 0.0
      %1491 = vmatpush2.msra.mxu0 %v1362
      %1492 = vmatprep.subr.mxu0 0.0
      %1493 = vmatpush2.msra.mxu0 %v1361
      %1494 = vmatprep.subr.mxu0 0.0
      %1495 = vmatpush2.msra.mxu0 %v1360
      %1496 = vmatprep.subr.mxu0 0.0
      %1497 = vmatpush2.msra.mxu0 %v1359
      %1498 = vmatprep.subr.mxu0 0.0
      %1499 = vmatpush2.msra.mxu0 %v1358
      %1500 = vmatprep.subr.mxu0 0.0
      %1501 = vmatpush2.msra.mxu0 %v1357
      %1502 = vmatprep.subr.mxu0 0.0
      %1503 = vmatpush2.msra.mxu0 %v1356
      %1504 = vmatprep.subr.mxu0 0.0
      %1505 = vmatpush2.msra.mxu0 %v1355
      %1506 = vmatprep.mubr.f32.mxu0 %v1334
      %1507 = vmatmul.mubr.f32.gmra.mxu0 %v1333
      %v1508 = vpop.f32.mrf.mxu0
      %v1509 = vadd.f32 %v1440, %v1508
      %v1510 = vpop.f32.mrf.mxu0
      %1511 = vdwg.mxu0
      %1512 = vmatprep.subr.mxu0 0.0
      %1513 = vmatpush1.msra.mxu0 %v1386
      %1514 = vmatprep.subr.mxu0 0.0
      %1515 = vmatpush1.msra.mxu0 %v1385
      %1516 = vmatprep.subr.mxu0 0.0
      %1517 = vmatpush1.msra.mxu0 %v1384
      %1518 = vmatprep.subr.mxu0 0.0
      %1519 = vmatpush1.msra.mxu0 %v1383
      %1520 = vmatprep.subr.mxu0 0.0
      %1521 = vmatpush1.msra.mxu0 %v1382
      %1522 = vmatprep.subr.mxu0 0.0
      %1523 = vmatpush1.msra.mxu0 %v1381
      %1524 = vmatprep.subr.mxu0 0.0
      %1525 = vmatpush1.msra.mxu0 %v1380
      %1526 = vmatprep.subr.mxu0 0.0
      %1527 = vmatpush1.msra.mxu0 %v1379
      %1528 = vmatprep.subr.mxu0 0.0
      %1529 = vmatpush1.msra.mxu0 %v1378
      %1530 = vmatprep.subr.mxu0 0.0
      %1531 = vmatpush1.msra.mxu0 %v1377
      %1532 = vmatprep.subr.mxu0 0.0
      %1533 = vmatpush1.msra.mxu0 %v1376
      %1534 = vmatprep.subr.mxu0 0.0
      %1535 = vmatpush1.msra.mxu0 %v1375
      %1536 = vmatprep.subr.mxu0 0.0
      %1537 = vmatpush1.msra.mxu0 %v1374
      %1538 = vmatprep.subr.mxu0 0.0
      %1539 = vmatpush1.msra.mxu0 %v1373
      %1540 = vmatprep.subr.mxu0 0.0
      %1541 = vmatpush1.msra.mxu0 %v1372
      %1542 = vmatprep.subr.mxu0 0.0
      %1543 = vmatpush1.msra.mxu0 %v1371
      %1544 = vmatprep.subr.mxu0 0.0
      %1545 = vmatpush2.msra.mxu0 %v1402
      %1546 = vmatprep.subr.mxu0 0.0
      %1547 = vmatpush2.msra.mxu0 %v1401
      %1548 = vmatprep.subr.mxu0 0.0
      %1549 = vmatpush2.msra.mxu0 %v1400
      %1550 = vmatprep.subr.mxu0 0.0
      %1551 = vmatpush2.msra.mxu0 %v1399
      %1552 = vmatprep.subr.mxu0 0.0
      %1553 = vmatpush2.msra.mxu0 %v1398
      %1554 = vmatprep.subr.mxu0 0.0
      %1555 = vmatpush2.msra.mxu0 %v1397
      %1556 = vmatprep.subr.mxu0 0.0
      %1557 = vmatpush2.msra.mxu0 %v1396
      %1558 = vmatprep.subr.mxu0 0.0
      %1559 = vmatpush2.msra.mxu0 %v1395
      %1560 = vmatprep.subr.mxu0 0.0
      %1561 = vmatpush2.msra.mxu0 %v1394
      %1562 = vmatprep.subr.mxu0 0.0
      %1563 = vmatpush2.msra.mxu0 %v1393
      %1564 = vmatprep.subr.mxu0 0.0
      %1565 = vmatpush2.msra.mxu0 %v1392
      %1566 = vmatprep.subr.mxu0 0.0
      %1567 = vmatpush2.msra.mxu0 %v1391
      %1568 = vmatprep.subr.mxu0 0.0
      %1569 = vmatpush2.msra.mxu0 %v1390
      %1570 = vmatprep.subr.mxu0 0.0
      %1571 = vmatpush2.msra.mxu0 %v1389
      %1572 = vmatprep.subr.mxu0 0.0
      %1573 = vmatpush2.msra.mxu0 %v1388
      %1574 = vmatprep.subr.mxu0 0.0
      %1575 = vmatpush2.msra.mxu0 %v1387
      %1576 = vmatprep.mubr.f32.mxu0 %v1336
      %1577 = vmatmul.mubr.f32.gmra.mxu0 %v1335
      %v1578 = vpop.f32.mrf.mxu0
      %v1579 = vadd.f32 %v1509, %v1578
      %v1580 = vpop.f32.mrf.mxu0
      %1581 = vdwg.mxu0
      %1582 = vmatprep.subr.mxu0 0.0
      %1583 = vmatpush1.msra.mxu0 %v1418
      %1584 = vmatprep.subr.mxu0 0.0
      %1585 = vmatpush1.msra.mxu0 %v1417
      %1586 = vmatprep.subr.mxu0 0.0
      %1587 = vmatpush1.msra.mxu0 %v1416
      %1588 = vmatprep.subr.mxu0 0.0
      %1589 = vmatpush1.msra.mxu0 %v1415
      %1590 = vmatprep.subr.mxu0 0.0
      %1591 = vmatpush1.msra.mxu0 %v1414
      %1592 = vmatprep.subr.mxu0 0.0
      %1593 = vmatpush1.msra.mxu0 %v1413
      %1594 = vmatprep.subr.mxu0 0.0
      %1595 = vmatpush1.msra.mxu0 %v1412
      %1596 = vmatprep.subr.mxu0 0.0
      %1597 = vmatpush1.msra.mxu0 %v1411
      %1598 = vmatprep.subr.mxu0 0.0
      %1599 = vmatpush1.msra.mxu0 %v1410
      %1600 = vmatprep.subr.mxu0 0.0
      %1601 = vmatpush1.msra.mxu0 %v1409
      %1602 = vmatprep.subr.mxu0 0.0
      %1603 = vmatpush1.msra.mxu0 %v1408
      %1604 = vmatprep.subr.mxu0 0.0
      %1605 = vmatpush1.msra.mxu0 %v1407
      %1606 = vmatprep.subr.mxu0 0.0
      %1607 = vmatpush1.msra.mxu0 %v1406
      %1608 = vmatprep.subr.mxu0 0.0
      %1609 = vmatpush1.msra.mxu0 %v1405
      %1610 = vmatprep.subr.mxu0 0.0
      %1611 = vmatpush1.msra.mxu0 %v1404
      %1612 = vmatprep.subr.mxu0 0.0
      %1613 = vmatpush1.msra.mxu0 %v1403
      %1614 = vmatprep.subr.mxu0 0.0
      %1615 = vmatpush2.msra.mxu0 %v1434
      %1616 = vmatprep.subr.mxu0 0.0
      %1617 = vmatpush2.msra.mxu0 %v1433
      %1618 = vmatprep.subr.mxu0 0.0
      %1619 = vmatpush2.msra.mxu0 %v1432
      %1620 = vmatprep.subr.mxu0 0.0
      %1621 = vmatpush2.msra.mxu0 %v1431
      %1622 = vmatprep.subr.mxu0 0.0
      %1623 = vmatpush2.msra.mxu0 %v1430
      %1624 = vmatprep.subr.mxu0 0.0
      %1625 = vmatpush2.msra.mxu0 %v1429
      %1626 = vmatprep.subr.mxu0 0.0
      %1627 = vmatpush2.msra.mxu0 %v1428
      %1628 = vmatprep.subr.mxu0 0.0
      %1629 = vmatpush2.msra.mxu0 %v1427
      %1630 = vmatprep.subr.mxu0 0.0
      %1631 = vmatpush2.msra.mxu0 %v1426
      %1632 = vmatprep.subr.mxu0 0.0
      %1633 = vmatpush2.msra.mxu0 %v1425
      %1634 = vmatprep.subr.mxu0 0.0
      %1635 = vmatpush2.msra.mxu0 %v1424
      %1636 = vmatprep.subr.mxu0 0.0
      %1637 = vmatpush2.msra.mxu0 %v1423
      %1638 = vmatprep.subr.mxu0 0.0
      %1639 = vmatpush2.msra.mxu0 %v1422
      %1640 = vmatprep.subr.mxu0 0.0
      %1641 = vmatpush2.msra.mxu0 %v1421
      %1642 = vmatprep.subr.mxu0 0.0
      %1643 = vmatpush2.msra.mxu0 %v1420
      %1644 = vmatprep.subr.mxu0 0.0
      %1645 = vmatpush2.msra.mxu0 %v1419
      %1646 = vmatprep.mubr.f32.mxu0 %v1338
      %1647 = vmatmul.mubr.f32.gmra.mxu0 %v1337
      %v1648 = vpop.f32.mrf.mxu0
      %v1649 = vadd.f32 %v1579, %v1648
      %v1650 = vpop.f32.mrf.mxu0
      %1651 = vdwg.mxu0
      %1652 = vst [vmem:[#allocation15] sm:$0x3] %v1649
    $region65: #{tpu_custom_call.1} parent=1 // pred_fallthru
      _
    // Predicated region
    $region66: #{tpu_custom_call.1} parent=1 // pred_check
      _
    $region67: #{tpu_custom_call.1} parent=1 // pred_check_branch
      %1654 = sbr.rel (0) target = $region69
    $region68: #{tpu_custom_call.1} parent=1 // pred_region
      %s1656 = ssub.s32 32, 32
      %1657 = vsyncadd [#allocation5], %s1656
      %s1659 = sshll.u32 [#allocation15], 4
      %s1660 = int_to_ptr.vmem [resolvable:$true] %s1659
      %1662 = dma.vmem_to_hbm [thread:$0]  %s1660, 32, %s7, [#allocation5]
    $region69: #{tpu_custom_call.1} parent=1 // pred_fallthru
      _
    // Predicated region
    $region70: #{tpu_custom_call.1} parent=1 // pred_check
      _
    $region71: #{tpu_custom_call.1} parent=1 // pred_check_branch
      %1664 = sbr.rel (0) target = $region73
    $region72: #{tpu_custom_call.1} parent=1 // pred_region
      %1665 = dma.done [#allocation5], 32
    $region73: #{tpu_custom_call.1} parent=1 // pred_fallthru
      _
    %1666 = vsyncpa [#allocation4], 1
    %1667 = vsyncpa [#allocation7], 1
    %1668 = vsyncpa [#allocation10], 1
    %1669 = vsyncpa [#allocation13], 1
    %1670 = vsyncpa [#allocation5], 1

// kernel: tpu_custom_call.1
$region0: #{tpu_custom_call.1}
  #allocation0 [shape = 'u32[]', space=smem, size = 0x4, offset = 0x4, fixed_abs, tag = 'smem constant byte address 0x4 - core index']
  #allocation1 [shape = 'u32[144,128]{1,0:T(1,128)}', space=vmem, size = 0x12000, scoped, tag = 'internal scratch']
  #allocation2 [shape = 'f32[2,512]{1,0:T(2,128)}', space=vmem, size = 0x1000, scoped, tag = 'scratch operand']
  %s0 = inlined_call_operand.hbm [shape: f32[2,256], index: 0, kind: input, shape index: {}]
  %s1 = inlined_call_operand.hbm [shape: f32[256,512], index: 1, kind: input, shape index: {}]
  %s2 = inlined_call_operand.hbm [shape: f32[1,512], index: 2, kind: input, shape index: {}]
  %s3 = inlined_call_operand.hbm [shape: f32[512,768], index: 3, kind: input, shape index: {}]
  %s4 = inlined_call_operand.hbm [shape: f32[1,768], index: 4, kind: input, shape index: {}]
  %s5 = inlined_call_operand.hbm [shape: f32[768,128], index: 5, kind: input, shape index: {}]
  %s6 = inlined_call_operand.hbm [shape: f32[1,128], index: 6, kind: input, shape index: {}]
  %s7 = inlined_call_operand.hbm [shape: f32[2,128], index: 7, kind: output, shape index: {}]
  %s8 = sld [smem:[#allocation0]]
  $region74: #{tpu_custom_call.1} parent=0
    _
  %s10 = ssub.s32 1, %s8
  %s11 = scalar_select 0, %s10, %s8
  $region1: #{tpu_custom_call.1} parent=0
    #allocation3 [shape = 'u8[2048]{0}', space=vmem, size = 0x800, scoped, tag = 'input window, operand 0, single buffered']
    #allocation4 [shape = 's32[1]{0}', space=sflag, size = 0x4, scoped, tag = 'scoped memory for tpu_custom_call.1']
    #allocation5 [shape = 's32[1]{0}', space=sflag, size = 0x4, scoped, tag = 'scoped memory for tpu_custom_call.1']
    #allocation6 [shape = 'u8[524288]{0}', space=vmem, size = 0x80000, scoped, tag = 'input window, operand 1, single buffered']
    #allocation7 [shape = 's32[1]{0}', space=sflag, size = 0x4, scoped, tag = 'scoped memory for tpu_custom_call.1']
    #allocation8 [shape = 'u8[2048]{0}', space=vmem, size = 0x800, scoped, tag = 'input window, operand 2, single buffered']
    #allocation9 [shape = 'u8[1572864]{0}', space=vmem, size = 0x180000, scoped, tag = 'input window, operand 3, single buffered']
    #allocation10 [shape = 's32[1]{0}', space=sflag, size = 0x4, scoped, tag = 'scoped memory for tpu_custom_call.1']
    #allocation11 [shape = 'u8[3072]{0}', space=vmem, size = 0xc00, scoped, tag = 'input window, operand 4, single buffered']
    #allocation12 [shape = 'u8[393216]{0}', space=vmem, size = 0x60000, scoped, tag = 'input window, operand 5, single buffered']
    #allocation13 [shape = 's32[1]{0}', space=sflag, size = 0x4, scoped, tag = 'scoped memory for tpu_custom_call.1']
    #allocation14 [shape = 'u8[512]{0}', space=vmem, size = 0x400, scoped, tag = 'input window, operand 6, single buffered']
    #allocation15 [shape = 'u8[1024]{0}', space=vmem, size = 0x400, scoped, tag = 'output window, operand 0, single buffered']
    %12 = vsyncpa [#allocation4], 0
    %13 = vsyncpa [#allocation7], 0
    %14 = vsyncpa [#allocation10], 0
    %15 = vsyncpa [#allocation13], 0
    %16 = vsyncpa [#allocation5], 0
    // Predicated region
    $region2: #{tpu_custom_call.1} parent=1 // pred_check
      _
    $region3: #{tpu_custom_call.1} parent=1 // pred_check_branch
      %18 = sbr.rel (0) target = $region5
    $region4: #{tpu_custom_call.1} parent=1 // pred_region
      %s20 = ssub.s32 64, 64
      %21 = vsyncadd [#allocation4], %s20
      %s23 = sshll.u32 [#allocation3], 4
      %s24 = int_to_ptr.vmem [resolvable:$true] %s23
      %26 = dma.hbm_to_vmem [thread:$0]  %s0, 64, %s24, [#allocation4]
    $region5: #{tpu_custom_call.1} parent=1 // pred_fallthru
      _
    // Predicated region
    $region6: #{tpu_custom_call.1} parent=1 // pred_check
      _
    $region7: #{tpu_custom_call.1} parent=1 // pred_check_branch
      %28 = sbr.rel (0) target = $region9
    $region8: #{tpu_custom_call.1} parent=1 // pred_region
      %s30 = ssub.s32 16384, 16384
      %31 = vsyncadd [#allocation7], %s30
      %s32 = sshll.u32 [#allocation6], 4
      %s33 = int_to_ptr.vmem [resolvable:$true] %s32
      %38 = dma.hbm_to_vmem [thread:$0]  %s1, 16384, %s33, [#allocation7], 512, 512, 32
    $region9: #{tpu_custom_call.1} parent=1 // pred_fallthru
      _
    // Predicated region
    $region10: #{tpu_custom_call.1} parent=1 // pred_check
      _
    $region11: #{tpu_custom_call.1} parent=1 // pred_check_branch
      %40 = sbr.rel (0) target = $region13
    $region12: #{tpu_custom_call.1} parent=1 // pred_region
      %s42 = ssub.s32 64, 64
      %43 = vsyncadd [#allocation7], %s42
      %s45 = sshll.u32 [#allocation8], 4
      %s46 = int_to_ptr.vmem [resolvable:$true] %s45
      %48 = dma.hbm_to_vmem [thread:$0]  %s2, 64, %s46, [#allocation7]
    $region13: #{tpu_custom_call.1} parent=1 // pred_fallthru
      _
    // Predicated region
    $region14: #{tpu_custom_call.1} parent=1 // pred_check
      _
    $region15: #{tpu_custom_call.1} parent=1 // pred_check_branch
      %50 = sbr.rel (0) target = $region17
    $region16: #{tpu_custom_call.1} parent=1 // pred_region
      %s52 = ssub.s32 49152, 49152
      %53 = vsyncadd [#allocation10], %s52
      %s54 = sshll.u32 [#allocation9], 4
      %s55 = int_to_ptr.vmem [resolvable:$true] %s54
      %60 = dma.hbm_to_vmem [thread:$0]  %s3, 49152, %s55, [#allocation10], 768, 768, 48
    $region17: #{tpu_custom_call.1} parent=1 // pred_fallthru
      _
    // Predicated region
    $region18: #{tpu_custom_call.1} parent=1 // pred_check
      _
    $region19: #{tpu_custom_call.1} parent=1 // pred_check_branch
      %62 = sbr.rel (0) target = $region21
    $region20: #{tpu_custom_call.1} parent=1 // pred_region
      %s64 = ssub.s32 96, 96
      %65 = vsyncadd [#allocation10], %s64
      %s67 = sshll.u32 [#allocation11], 4
      %s68 = int_to_ptr.vmem [resolvable:$true] %s67
      %70 = dma.hbm_to_vmem [thread:$0]  %s4, 96, %s68, [#allocation10]
    $region21: #{tpu_custom_call.1} parent=1 // pred_fallthru
      _
    // Predicated region
    $region22: #{tpu_custom_call.1} parent=1 // pred_check
      _
    $region23: #{tpu_custom_call.1} parent=1 // pred_check_branch
      %72 = sbr.rel (0) target = $region25
    $region24: #{tpu_custom_call.1} parent=1 // pred_region
      %s74 = ssub.s32 12288, 12288
      %75 = vsyncadd [#allocation13], %s74
      %s76 = sshll.u32 [#allocation12], 4
      %s77 = int_to_ptr.vmem [resolvable:$true] %s76
      %82 = dma.hbm_to_vmem [thread:$0]  %s5, 12288, %s77, [#allocation13], 128, 128, 8
    $region25: #{tpu_custom_call.1} parent=1 // pred_fallthru
      _
    // Predicated region
    $region26: #{tpu_custom_call.1} parent=1 // pred_check
      _
    $region27: #{tpu_custom_call.1} parent=1 // pred_check_branch
      %84 = sbr.rel (0) target = $region29
    $region28: #{tpu_custom_call.1} parent=1 // pred_region
      %s86 = ssub.s32 16, 16
      %87 = vsyncadd [#allocation13], %s86
      %s89 = sshll.u32 [#allocation14], 4
      %s90 = int_to_ptr.vmem [resolvable:$true] %s89
      %92 = dma.hbm_to_vmem [thread:$0]  %s6, 16, %s90, [#allocation13]
    $region29: #{tpu_custom_call.1} parent=1 // pred_fallthru
      _
    // Predicated region
    $region30: #{tpu_custom_call.1} parent=1 // pred_check
      _
    $region31: #{tpu_custom_call.1} parent=1 // pred_check_branch
      %94 = sbr.rel (0) target = $region33
    $region32: #{tpu_custom_call.1} parent=1 // pred_region
      %95 = dma.done [#allocation4], 64
    $region33: #{tpu_custom_call.1} parent=1 // pred_fallthru
      _
    // Predicated region
    $region34: #{tpu_custom_call.1} parent=1 // pred_check
      _
    $region35: #{tpu_custom_call.1} parent=1 // pred_check_branch
      %97 = sbr.rel (0) target = $region37
    $region36: #{tpu_custom_call.1} parent=1 // pred_region
      %98 = dma.done [#allocation7], 16384
    $region37: #{tpu_custom_call.1} parent=1 // pred_fallthru
      _
    // Predicated region
    $region38: #{tpu_custom_call.1} parent=1 // pred_check
      _
    $region39: #{tpu_custom_call.1} parent=1 // pred_check_branch
      %100 = sbr.rel (0) target = $region41
    $region40: #{tpu_custom_call.1} parent=1 // pred_region
      %101 = dma.done [#allocation7], 64
    $region41: #{tpu_custom_call.1} parent=1 // pred_fallthru
      _
    // Predicated region
    $region42: #{tpu_custom_call.1} parent=1 // pred_check
      _
    $region43: #{tpu_custom_call.1} parent=1 // pred_check_branch
      %103 = sbr.rel (0) target = $region45
    $region44: #{tpu_custom_call.1} parent=1 // pred_region
      %104 = dma.done [#allocation10], 49152
    $region45: #{tpu_custom_call.1} parent=1 // pred_fallthru
      _
    // Predicated region
    $region46: #{tpu_custom_call.1} parent=1 // pred_check
      _
    $region47: #{tpu_custom_call.1} parent=1 // pred_check_branch
      %106 = sbr.rel (0) target = $region49
    $region48: #{tpu_custom_call.1} parent=1 // pred_region
      %107 = dma.done [#allocation10], 96
    $region49: #{tpu_custom_call.1} parent=1 // pred_fallthru
      _
    // Predicated region
    $region50: #{tpu_custom_call.1} parent=1 // pred_check
      _
    $region51: #{tpu_custom_call.1} parent=1 // pred_check_branch
      %109 = sbr.rel (0) target = $region53
    $region52: #{tpu_custom_call.1} parent=1 // pred_region
      %110 = dma.done [#allocation13], 12288
    $region53: #{tpu_custom_call.1} parent=1 // pred_fallthru
      _
    // Predicated region
    $region54: #{tpu_custom_call.1} parent=1 // pred_check
      _
    $region55: #{tpu_custom_call.1} parent=1 // pred_check_branch
      %112 = sbr.rel (0) target = $region57
    $region56: #{tpu_custom_call.1} parent=1 // pred_region
      %113 = dma.done [#allocation13], 16
    $region57: #{tpu_custom_call.1} parent=1 // pred_fallthru
      _
    %p114 = scmp.eq.s32.totalorder 0, 0
    // Predicated region
    $region58: #{tpu_custom_call.1} parent=1 // pred_check
      %p115 = pneg %p114
    $region59: #{tpu_custom_call.1} parent=1 // pred_check_branch
      %117 = sbr.rel (%p115) target = $region61
    $region60: #{tpu_custom_call.1} parent=1 // pred_region
      %118 = vst [vmem:[#allocation2] sm:$0xff] 0.0
    $region61: #{tpu_custom_call.1} parent=1 // pred_fallthru
      _
    %v119 = vld [vmem:[#allocation3] sm:$0xf]
    %v120 = vmax.f32 %v119, 0.0
    %v121 = vld [vmem:[#allocation2] sm:$0xff]
    %v122 = vld [vmem:[#allocation6] sm:$0xff]
    %v123 = vld [vmem:[#allocation6 + $0x8] sm:$0xff]
    %v124 = vld [vmem:[#allocation6 + $0x10] sm:$0xff]
    %v125 = vld [vmem:[#allocation6 + $0x18] sm:$0xff]
    %v126 = vld [vmem:[#allocation6 + $0x20] sm:$0xff]
    %v127 = vld [vmem:[#allocation6 + $0x28] sm:$0xff]
    %v128 = vld [vmem:[#allocation6 + $0x30] sm:$0xff]
    %v129 = vld [vmem:[#allocation6 + $0x38] sm:$0xff]
    %v130 = vld [vmem:[#allocation6 + $0x40] sm:$0xff]
    %v131 = vld [vmem:[#allocation6 + $0x48] sm:$0xff]
    %v132 = vld [vmem:[#allocation6 + $0x50] sm:$0xff]
    %v133 = vld [vmem:[#allocation6 + $0x58] sm:$0xff]
    %v134 = vld [vmem:[#allocation6 + $0x60] sm:$0xff]
    %v135 = vld [vmem:[#allocation6 + $0x68] sm:$0xff]
    %v136 = vld [vmem:[#allocation6 + $0x70] sm:$0xff]
    %v137 = vld [vmem:[#allocation6 + $0x78] sm:$0xff]
    %v138 = vld [vmem:[#allocation6 + $0x80] sm:$0xff]
    %v139 = vld [vmem:[#allocation6 + $0x88] sm:$0xff]
    %v140 = vld [vmem:[#allocation6 + $0x90] sm:$0xff]
    %v141 = vld [vmem:[#allocation6 + $0x98] sm:$0xff]
    %v142 = vld [vmem:[#allocation6 + $0xa0] sm:$0xff]
    %v143 = vld [vmem:[#allocation6 + $0xa8] sm:$0xff]
    %v144 = vld [vmem:[#allocation6 + $0xb0] sm:$0xff]
    %v145 = vld [vmem:[#allocation6 + $0xb8] sm:$0xff]
    %v146 = vld [vmem:[#allocation6 + $0xc0] sm:$0xff]
    %v147 = vld [vmem:[#allocation6 + $0xc8] sm:$0xff]
    %v148 = vld [vmem:[#allocation6 + $0xd0] sm:$0xff]
    %v149 = vld [vmem:[#allocation6 + $0xd8] sm:$0xff]
    %v150 = vld [vmem:[#allocation6 + $0xe0] sm:$0xff]
    %v151 = vld [vmem:[#allocation6 + $0xe8] sm:$0xff]
    %v152 = vld [vmem:[#allocation6 + $0xf0] sm:$0xff]
    %v153 = vld [vmem:[#allocation6 + $0xf8] sm:$0xff]
    %v154 = vld [vmem:[#allocation6 + $0x100] sm:$0xff]
    %v155 = vld [vmem:[#allocation6 + $0x108] sm:$0xff]
    %v156 = vld [vmem:[#allocation6 + $0x110] sm:$0xff]
    %v157 = vld [vmem:[#allocation6 + $0x118] sm:$0xff]
    %v158 = vld [vmem:[#allocation6 + $0x120] sm:$0xff]
    %v159 = vld [vmem:[#allocation6 + $0x128] sm:$0xff]
    %v160 = vld [vmem:[#allocation6 + $0x130] sm:$0xff]
    %v161 = vld [vmem:[#allocation6 + $0x138] sm:$0xff]
    %v162 = vld [vmem:[#allocation6 + $0x140] sm:$0xff]
    %v163 = vld [vmem:[#allocation6 + $0x148] sm:$0xff]
    %v164 = vld [vmem:[#allocation6 + $0x150] sm:$0xff]
    %v165 = vld [vmem:[#allocation6 + $0x158] sm:$0xff]
    %v166 = vld [vmem:[#allocation6 + $0x160] sm:$0xff]
    %v167 = vld [vmem:[#allocation6 + $0x168] sm:$0xff]
    %v168 = vld [vmem:[#allocation6 + $0x170] sm:$0xff]
    %v169 = vld [vmem:[#allocation6 + $0x178] sm:$0xff]
    %v170 = vld [vmem:[#allocation6 + $0x180] sm:$0xff]
    %v171 = vld [vmem:[#allocation6 + $0x188] sm:$0xff]
    %v172 = vld [vmem:[#allocation6 + $0x190] sm:$0xff]
    %v173 = vld [vmem:[#allocation6 + $0x198] sm:$0xff]
    %v174 = vld [vmem:[#allocation6 + $0x1a0] sm:$0xff]
    %v175 = vld [vmem:[#allocation6 + $0x1a8] sm:$0xff]
    %v176 = vld [vmem:[#allocation6 + $0x1b0] sm:$0xff]
    %v177 = vld [vmem:[#allocation6 + $0x1b8] sm:$0xff]
    %v178 = vld [vmem:[#allocation6 + $0x1c0] sm:$0xff]
    %v179 = vld [vmem:[#allocation6 + $0x1c8] sm:$0xff]
    %v180 = vld [vmem:[#allocation6 + $0x1d0] sm:$0xff]
    %v181 = vld [vmem:[#allocation6 + $0x1d8] sm:$0xff]
    %v182 = vld [vmem:[#allocation6 + $0x1e0] sm:$0xff]
    %v183 = vld [vmem:[#allocation6 + $0x1e8] sm:$0xff]
    %v184 = vld [vmem:[#allocation6 + $0x1f0] sm:$0xff]
    %v185 = vld [vmem:[#allocation6 + $0x1f8] sm:$0xff]
    %v186 = vld [vmem:[#allocation6 + $0x200] sm:$0xff]
    %v187 = vld [vmem:[#allocation6 + $0x208] sm:$0xff]
    %v188 = vld [vmem:[#allocation6 + $0x210] sm:$0xff]
    %v189 = vld [vmem:[#allocation6 + $0x218] sm:$0xff]
    %v190 = vld [vmem:[#allocation6 + $0x220] sm:$0xff]
    %v191 = vld [vmem:[#allocation6 + $0x228] sm:$0xff]
    %v192 = vld [vmem:[#allocation6 + $0x230] sm:$0xff]
    %v193 = vld [vmem:[#allocation6 + $0x238] sm:$0xff]
    %v194 = vld [vmem:[#allocation6 + $0x240] sm:$0xff]
    %v195 = vld [vmem:[#allocation6 + $0x248] sm:$0xff]
    %v196 = vld [vmem:[#allocation6 + $0x250] sm:$0xff]
    %v197 = vld [vmem:[#allocation6 + $0x258] sm:$0xff]
    %v198 = vld [vmem:[#allocation6 + $0x260] sm:$0xff]
    %v199 = vld [vmem:[#allocation6 + $0x268] sm:$0xff]
    %v200 = vld [vmem:[#allocation6 + $0x270] sm:$0xff]
    %v201 = vld [vmem:[#allocation6 + $0x278] sm:$0xff]
    %v202 = vld [vmem:[#allocation6 + $0x280] sm:$0xff]
    %v203 = vld [vmem:[#allocation6 + $0x288] sm:$0xff]
    %v204 = vld [vmem:[#allocation6 + $0x290] sm:$0xff]
    %v205 = vld [vmem:[#allocation6 + $0x298] sm:$0xff]
    %v206 = vld [vmem:[#allocation6 + $0x2a0] sm:$0xff]
    %v207 = vld [vmem:[#allocation6 + $0x2a8] sm:$0xff]
    %v208 = vld [vmem:[#allocation6 + $0x2b0] sm:$0xff]
    %v209 = vld [vmem:[#allocation6 + $0x2b8] sm:$0xff]
    %v210 = vld [vmem:[#allocation6 + $0x2c0] sm:$0xff]
    %v211 = vld [vmem:[#allocation6 + $0x2c8] sm:$0xff]
    %v212 = vld [vmem:[#allocation6 + $0x2d0] sm:$0xff]
    %v213 = vld [vmem:[#allocation6 + $0x2d8] sm:$0xff]
    %v214 = vld [vmem:[#allocation6 + $0x2e0] sm:$0xff]
    %v215 = vld [vmem:[#allocation6 + $0x2e8] sm:$0xff]
    %v216 = vld [vmem:[#allocation6 + $0x2f0] sm:$0xff]
    %v217 = vld [vmem:[#allocation6 + $0x2f8] sm:$0xff]
    %v218 = vld [vmem:[#allocation6 + $0x300] sm:$0xff]
    %v219 = vld [vmem:[#allocation6 + $0x308] sm:$0xff]
    %v220 = vld [vmem:[#allocation6 + $0x310] sm:$0xff]
    %v221 = vld [vmem:[#allocation6 + $0x318] sm:$0xff]
    %v222 = vld [vmem:[#allocation6 + $0x320] sm:$0xff]
    %v223 = vld [vmem:[#allocation6 + $0x328] sm:$0xff]
    %v224 = vld [vmem:[#allocation6 + $0x330] sm:$0xff]
    %v225 = vld [vmem:[#allocation6 + $0x338] sm:$0xff]
    %v226 = vld [vmem:[#allocation6 + $0x340] sm:$0xff]
    %v227 = vld [vmem:[#allocation6 + $0x348] sm:$0xff]
    %v228 = vld [vmem:[#allocation6 + $0x350] sm:$0xff]
    %v229 = vld [vmem:[#allocation6 + $0x358] sm:$0xff]
    %v230 = vld [vmem:[#allocation6 + $0x360] sm:$0xff]
    %v231 = vld [vmem:[#allocation6 + $0x368] sm:$0xff]
    %v232 = vld [vmem:[#allocation6 + $0x370] sm:$0xff]
    %v233 = vld [vmem:[#allocation6 + $0x378] sm:$0xff]
    %v234 = vld [vmem:[#allocation6 + $0x380] sm:$0xff]
    %v235 = vld [vmem:[#allocation6 + $0x388] sm:$0xff]
    %v236 = vld [vmem:[#allocation6 + $0x390] sm:$0xff]
    %v237 = vld [vmem:[#allocation6 + $0x398] sm:$0xff]
    %v238 = vld [vmem:[#allocation6 + $0x3a0] sm:$0xff]
    %v239 = vld [vmem:[#allocation6 + $0x3a8] sm:$0xff]
    %v240 = vld [vmem:[#allocation6 + $0x3b0] sm:$0xff]
    %v241 = vld [vmem:[#allocation6 + $0x3b8] sm:$0xff]
    %v242 = vld [vmem:[#allocation6 + $0x3c0] sm:$0xff]
    %v243 = vld [vmem:[#allocation6 + $0x3c8] sm:$0xff]
    %v244 = vld [vmem:[#allocation6 + $0x3d0] sm:$0xff]
    %v245 = vld [vmem:[#allocation6 + $0x3d8] sm:$0xff]
    %v246 = vld [vmem:[#allocation6 + $0x3e0] sm:$0xff]
    %v247 = vld [vmem:[#allocation6 + $0x3e8] sm:$0xff]
    %v248 = vld [vmem:[#allocation6 + $0x3f0] sm:$0xff]
    %v249 = vld [vmem:[#allocation6 + $0x3f8] sm:$0xff]
    %v252 = vunpack.c.l.s4 1983009808
    %v253 = vunpack.c.0.s8 %v252
    %v254 = vlaneseq
    %v255 = vshrl.u32 %v254, 7
    %v256 = vsub.s32 %v253, %v255
    %v257 = vrot.slane %v120, %v256
    %v258 = vcombine.high %v257, %v257
    %261 = vmatprep.subr.mxu0 %v183
    %262 = vmatpush1.msra.mxu0 %v182
    %263 = vmatprep.subr.mxu0 %v179
    %264 = vmatpush1.msra.mxu0 %v178
    %265 = vmatprep.subr.mxu0 %v175
    %266 = vmatpush1.msra.mxu0 %v174
    %267 = vmatprep.subr.mxu0 %v171
    %268 = vmatpush1.msra.mxu0 %v170
    %269 = vmatprep.subr.mxu0 %v167
    %270 = vmatpush1.msra.mxu0 %v166
    %271 = vmatprep.subr.mxu0 %v163
    %272 = vmatpush1.msra.mxu0 %v162
    %273 = vmatprep.subr.mxu0 %v159
    %274 = vmatpush1.msra.mxu0 %v158
    %275 = vmatprep.subr.mxu0 %v155
    %276 = vmatpush1.msra.mxu0 %v154
    %277 = vmatprep.subr.mxu0 %v151
    %278 = vmatpush1.msra.mxu0 %v150
    %279 = vmatprep.subr.mxu0 %v147
    %280 = vmatpush1.msra.mxu0 %v146
    %281 = vmatprep.subr.mxu0 %v143
    %282 = vmatpush1.msra.mxu0 %v142
    %283 = vmatprep.subr.mxu0 %v139
    %284 = vmatpush1.msra.mxu0 %v138
    %285 = vmatprep.subr.mxu0 %v135
    %286 = vmatpush1.msra.mxu0 %v134
    %287 = vmatprep.subr.mxu0 %v131
    %288 = vmatpush1.msra.mxu0 %v130
    %289 = vmatprep.subr.mxu0 %v127
    %290 = vmatpush1.msra.mxu0 %v126
    %291 = vmatprep.subr.mxu0 %v123
    %292 = vmatpush1.msra.mxu0 %v122
    %293 = vmatprep.subr.mxu0 %v247
    %294 = vmatpush2.msra.mxu0 %v246
    %295 = vmatprep.subr.mxu0 %v243
    %296 = vmatpush2.msra.mxu0 %v242
    %297 = vmatprep.subr.mxu0 %v239
    %298 = vmatpush2.msra.mxu0 %v238
    %299 = vmatprep.subr.mxu0 %v235
    %300 = vmatpush2.msra.mxu0 %v234
    %301 = vmatprep.subr.mxu0 %v231
    %302 = vmatpush2.msra.mxu0 %v230
    %303 = vmatprep.subr.mxu0 %v227
    %304 = vmatpush2.msra.mxu0 %v226
    %305 = vmatprep.subr.mxu0 %v223
    %306 = vmatpush2.msra.mxu0 %v222
    %307 = vmatprep.subr.mxu0 %v219
    %308 = vmatpush2.msra.mxu0 %v218
    %309 = vmatprep.subr.mxu0 %v215
    %310 = vmatpush2.msra.mxu0 %v214
    %311 = vmatprep.subr.mxu0 %v211
    %312 = vmatpush2.msra.mxu0 %v210
    %313 = vmatprep.subr.mxu0 %v207
    %314 = vmatpush2.msra.mxu0 %v206
    %315 = vmatprep.subr.mxu0 %v203
    %316 = vmatpush2.msra.mxu0 %v202
    %317 = vmatprep.subr.mxu0 %v199
    %318 = vmatpush2.msra.mxu0 %v198
    %319 = vmatprep.subr.mxu0 %v195
    %320 = vmatpush2.msra.mxu0 %v194
    %321 = vmatprep.subr.mxu0 %v191
    %322 = vmatpush2.msra.mxu0 %v190
    %323 = vmatprep.subr.mxu0 %v187
    %324 = vmatpush2.msra.mxu0 %v186
    %325 = vmatprep.mubr.f32.mxu0 %v258
    %326 = vmatmul.mubr.f32.gmra.mxu0 %v257
    %v327 = vpop.f32.mrf.mxu0
    %v328 = vadd.f32 0.0, %v327
    %v329 = vpop.f32.mrf.mxu0
    %v330 = vadd.f32 0.0, %v329
    %331 = vdwg.mxu0
    %332 = vmatprep.subr.mxu0 %v185
    %333 = vmatpush1.msra.mxu0 %v184
    %334 = vmatprep.subr.mxu0 %v181
    %335 = vmatpush1.msra.mxu0 %v180
    %336 = vmatprep.subr.mxu0 %v177
    %337 = vmatpush1.msra.mxu0 %v176
    %338 = vmatprep.subr.mxu0 %v173
    %339 = vmatpush1.msra.mxu0 %v172
    %340 = vmatprep.subr.mxu0 %v169
    %341 = vmatpush1.msra.mxu0 %v168
    %342 = vmatprep.subr.mxu0 %v165
    %343 = vmatpush1.msra.mxu0 %v164
    %344 = vmatprep.subr.mxu0 %v161
    %345 = vmatpush1.msra.mxu0 %v160
    %346 = vmatprep.subr.mxu0 %v157
    %347 = vmatpush1.msra.mxu0 %v156
    %348 = vmatprep.subr.mxu0 %v153
    %349 = vmatpush1.msra.mxu0 %v152
    %350 = vmatprep.subr.mxu0 %v149
    %351 = vmatpush1.msra.mxu0 %v148
    %352 = vmatprep.subr.mxu0 %v145
    %353 = vmatpush1.msra.mxu0 %v144
    %354 = vmatprep.subr.mxu0 %v141
    %355 = vmatpush1.msra.mxu0 %v140
    %356 = vmatprep.subr.mxu0 %v137
    %357 = vmatpush1.msra.mxu0 %v136
    %358 = vmatprep.subr.mxu0 %v133
    %359 = vmatpush1.msra.mxu0 %v132
    %360 = vmatprep.subr.mxu0 %v129
    %361 = vmatpush1.msra.mxu0 %v128
    %362 = vmatprep.subr.mxu0 %v125
    %363 = vmatpush1.msra.mxu0 %v124
    %364 = vmatprep.subr.mxu0 %v249
    %365 = vmatpush2.msra.mxu0 %v248
    %366 = vmatprep.subr.mxu0 %v245
    %367 = vmatpush2.msra.mxu0 %v244
    %368 = vmatprep.subr.mxu0 %v241
    %369 = vmatpush2.msra.mxu0 %v240
    %370 = vmatprep.subr.mxu0 %v237
    %371 = vmatpush2.msra.mxu0 %v236
    %372 = vmatprep.subr.mxu0 %v233
    %373 = vmatpush2.msra.mxu0 %v232
    %374 = vmatprep.subr.mxu0 %v229
    %375 = vmatpush2.msra.mxu0 %v228
    %376 = vmatprep.subr.mxu0 %v225
    %377 = vmatpush2.msra.mxu0 %v224
    %378 = vmatprep.subr.mxu0 %v221
    %379 = vmatpush2.msra.mxu0 %v220
    %380 = vmatprep.subr.mxu0 %v217
    %381 = vmatpush2.msra.mxu0 %v216
    %382 = vmatprep.subr.mxu0 %v213
    %383 = vmatpush2.msra.mxu0 %v212
    %384 = vmatprep.subr.mxu0 %v209
    %385 = vmatpush2.msra.mxu0 %v208
    %386 = vmatprep.subr.mxu0 %v205
    %387 = vmatpush2.msra.mxu0 %v204
    %388 = vmatprep.subr.mxu0 %v201
    %389 = vmatpush2.msra.mxu0 %v200
    %390 = vmatprep.subr.mxu0 %v197
    %391 = vmatpush2.msra.mxu0 %v196
    %392 = vmatprep.subr.mxu0 %v193
    %393 = vmatpush2.msra.mxu0 %v192
    %394 = vmatprep.subr.mxu0 %v189
    %395 = vmatpush2.msra.mxu0 %v188
    %396 = vmatprep.mubr.f32.mxu0 %v258
    %397 = vmatmul.mubr.f32.gmra.mxu0 %v257
    %v398 = vpop.f32.mrf.mxu0
    %v399 = vadd.f32 0.0, %v398
    %v400 = vpop.f32.mrf.mxu0
    %v401 = vadd.f32 0.0, %v400
    %402 = vdwg.mxu0
    %v407 = vcombine.low %v328, %v330
    %v408 = vcombine.low %v399, %v401
    %v410 = vunpack.c.l.s4 1983009808
    %v411 = vunpack.c.0.s8 %v410
    %v412 = vlaneseq
    %v413 = vshrl.u32 %v412, 7
    %v414 = vsub.s32 %v411, %v413
    %v415 = vrot.slane %v407, %v414
    %v417 = vunpack.c.l.s4 1983009808
    %v418 = vunpack.c.0.s8 %v417
    %v419 = vlaneseq
    %v420 = vshrl.u32 %v419, 7
    %v421 = vsub.s32 %v418, %v420
    %v422 = vrot.slane %v408, %v421
    %v423 = vcombine.low %v415, %v422
    %v425 = vadd.f32 %v121, %v423
    %426 = vst [vmem:[#allocation2] sm:$0xff] %v425
    // Predicated region
    $region62: #{tpu_custom_call.1} parent=1 // pred_check
      %p427 = pneg %p114
    $region63: #{tpu_custom_call.1} parent=1 // pred_check_branch
      %429 = sbr.rel (%p427) target = $region65
    $region64: #{tpu_custom_call.1} parent=1 // pred_region
      %v430 = vld [vmem:[#allocation2] sm:$0xff]
      %v431 = vld [vmem:[#allocation8] sm:$0xf]
      %v433 = vlaneseq
      %v434 = vshrl.u32 %v433, 7
      %v435 = vsub.s32 0, %v434
      %v436 = vrot.slane %v431, %v435
      %v437 = vlaneseq
      %v438 = vshrl.u32 %v437, 7
      %v439 = vsub.s32 1, %v438
      %v440 = vrot.slane %v431, %v439
      %v441 = vlaneseq
      %v442 = vshrl.u32 %v441, 7
      %v443 = vsub.s32 2, %v442
      %v444 = vrot.slane %v431, %v443
      %v445 = vlaneseq
      %v446 = vshrl.u32 %v445, 7
      %v447 = vsub.s32 3, %v446
      %v448 = vrot.slane %v431, %v447
      %v449 = vcombine.low %v436, %v440
      %v450 = vcombine.low %v444, %v448
      %v452 = vunpack.c.l.s4 1983009808
      %v453 = vunpack.c.0.s8 %v452
      %v454 = vlaneseq
      %v455 = vshrl.u32 %v454, 7
      %v456 = vsub.s32 %v453, %v455
      %v457 = vrot.slane %v449, %v456
      %v459 = vunpack.c.l.s4 1983009808
      %v460 = vunpack.c.0.s8 %v459
      %v461 = vlaneseq
      %v462 = vshrl.u32 %v461, 7
      %v463 = vsub.s32 %v460, %v462
      %v464 = vrot.slane %v450, %v463
      %v465 = vcombine.low %v457, %v464
      %v467 = vadd.f32 %v430, %v465
      %v468 = vmax.f32 %v467, 0.0
      %v469 = vld [vmem:[#allocation9] sm:$0xff]
      %v470 = vld [vmem:[#allocation9 + $0x8] sm:$0xff]
      %v471 = vld [vmem:[#allocation9 + $0x10] sm:$0xff]
      %v472 = vld [vmem:[#allocation9 + $0x18] sm:$0xff]
      %v473 = vld [vmem:[#allocation9 + $0x20] sm:$0xff]
      %v474 = vld [vmem:[#allocation9 + $0x28] sm:$0xff]
      %v475 = vld [vmem:[#allocation9 + $0x30] sm:$0xff]
      %v476 = vld [vmem:[#allocation9 + $0x38] sm:$0xff]
      %v477 = vld [vmem:[#allocation9 + $0x40] sm:$0xff]
      %v478 = vld [vmem:[#allocation9 + $0x48] sm:$0xff]
      %v479 = vld [vmem:[#allocation9 + $0x50] sm:$0xff]
      %v480 = vld [vmem:[#allocation9 + $0x58] sm:$0xff]
      %v481 = vld [vmem:[#allocation9 + $0x60] sm:$0xff]
      %v482 = vld [vmem:[#allocation9 + $0x68] sm:$0xff]
      %v483 = vld [vmem:[#allocation9 + $0x70] sm:$0xff]
      %v484 = vld [vmem:[#allocation9 + $0x78] sm:$0xff]
      %v485 = vld [vmem:[#allocation9 + $0x80] sm:$0xff]
      %v486 = vld [vmem:[#allocation9 + $0x88] sm:$0xff]
      %v487 = vld [vmem:[#allocation9 + $0x90] sm:$0xff]
      %v488 = vld [vmem:[#allocation9 + $0x98] sm:$0xff]
      %v489 = vld [vmem:[#allocation9 + $0xa0] sm:$0xff]
      %v490 = vld [vmem:[#allocation9 + $0xa8] sm:$0xff]
      %v491 = vld [vmem:[#allocation9 + $0xb0] sm:$0xff]
      %v492 = vld [vmem:[#allocation9 + $0xb8] sm:$0xff]
      %v493 = vld [vmem:[#allocation9 + $0xc0] sm:$0xff]
      %v494 = vld [vmem:[#allocation9 + $0xc8] sm:$0xff]
      %v495 = vld [vmem:[#allocation9 + $0xd0] sm:$0xff]
      %v496 = vld [vmem:[#allocation9 + $0xd8] sm:$0xff]
      %v497 = vld [vmem:[#allocation9 + $0xe0] sm:$0xff]
      %v498 = vld [vmem:[#allocation9 + $0xe8] sm:$0xff]
      %v499 = vld [vmem:[#allocation9 + $0xf0] sm:$0xff]
      %v500 = vld [vmem:[#allocation9 + $0xf8] sm:$0xff]
      %v501 = vld [vmem:[#allocation9 + $0x100] sm:$0xff]
      %v502 = vld [vmem:[#allocation9 + $0x108] sm:$0xff]
      %v503 = vld [vmem:[#allocation9 + $0x110] sm:$0xff]
      %v504 = vld [vmem:[#allocation9 + $0x118] sm:$0xff]
      %v505 = vld [vmem:[#allocation9 + $0x120] sm:$0xff]
      %v506 = vld [vmem:[#allocation9 + $0x128] sm:$0xff]
      %v507 = vld [vmem:[#allocation9 + $0x130] sm:$0xff]
      %v508 = vld [vmem:[#allocation9 + $0x138] sm:$0xff]
      %v509 = vld [vmem:[#allocation9 + $0x140] sm:$0xff]
      %v510 = vld [vmem:[#allocation9 + $0x148] sm:$0xff]
      %v511 = vld [vmem:[#allocation9 + $0x150] sm:$0xff]
      %v512 = vld [vmem:[#allocation9 + $0x158] sm:$0xff]
      %v513 = vld [vmem:[#allocation9 + $0x160] sm:$0xff]
      %v514 = vld [vmem:[#allocation9 + $0x168] sm:$0xff]
      %v515 = vld [vmem:[#allocation9 + $0x170] sm:$0xff]
      %v516 = vld [vmem:[#allocation9 + $0x178] sm:$0xff]
      %v517 = vld [vmem:[#allocation9 + $0x180] sm:$0xff]
      %v518 = vld [vmem:[#allocation9 + $0x188] sm:$0xff]
      %v519 = vld [vmem:[#allocation9 + $0x190] sm:$0xff]
      %v520 = vld [vmem:[#allocation9 + $0x198] sm:$0xff]
      %v521 = vld [vmem:[#allocation9 + $0x1a0] sm:$0xff]
      %v522 = vld [vmem:[#allocation9 + $0x1a8] sm:$0xff]
      %v523 = vld [vmem:[#allocation9 + $0x1b0] sm:$0xff]
      %v524 = vld [vmem:[#allocation9 + $0x1b8] sm:$0xff]
      %v525 = vld [vmem:[#allocation9 + $0x1c0] sm:$0xff]
      %v526 = vld [vmem:[#allocation9 + $0x1c8] sm:$0xff]
      %v527 = vld [vmem:[#allocation9 + $0x1d0] sm:$0xff]
      %v528 = vld [vmem:[#allocation9 + $0x1d8] sm:$0xff]
      %v529 = vld [vmem:[#allocation9 + $0x1e0] sm:$0xff]
      %v530 = vld [vmem:[#allocation9 + $0x1e8] sm:$0xff]
      %v531 = vld [vmem:[#allocation9 + $0x1f0] sm:$0xff]
      %v532 = vld [vmem:[#allocation9 + $0x1f8] sm:$0xff]
      %v533 = vld [vmem:[#allocation9 + $0x200] sm:$0xff]
      %v534 = vld [vmem:[#allocation9 + $0x208] sm:$0xff]
      %v535 = vld [vmem:[#allocation9 + $0x210] sm:$0xff]
      %v536 = vld [vmem:[#allocation9 + $0x218] sm:$0xff]
      %v537 = vld [vmem:[#allocation9 + $0x220] sm:$0xff]
      %v538 = vld [vmem:[#allocation9 + $0x228] sm:$0xff]
      %v539 = vld [vmem:[#allocation9 + $0x230] sm:$0xff]
      %v540 = vld [vmem:[#allocation9 + $0x238] sm:$0xff]
      %v541 = vld [vmem:[#allocation9 + $0x240] sm:$0xff]
      %v542 = vld [vmem:[#allocation9 + $0x248] sm:$0xff]
      %v543 = vld [vmem:[#allocation9 + $0x250] sm:$0xff]
      %v544 = vld [vmem:[#allocation9 + $0x258] sm:$0xff]
      %v545 = vld [vmem:[#allocation9 + $0x260] sm:$0xff]
      %v546 = vld [vmem:[#allocation9 + $0x268] sm:$0xff]
      %v547 = vld [vmem:[#allocation9 + $0x270] sm:$0xff]
      %v548 = vld [vmem:[#allocation9 + $0x278] sm:$0xff]
      %v549 = vld [vmem:[#allocation9 + $0x280] sm:$0xff]
      %v550 = vld [vmem:[#allocation9 + $0x288] sm:$0xff]
      %v551 = vld [vmem:[#allocation9 + $0x290] sm:$0xff]
      %v552 = vld [vmem:[#allocation9 + $0x298] sm:$0xff]
      %v553 = vld [vmem:[#allocation9 + $0x2a0] sm:$0xff]
      %v554 = vld [vmem:[#allocation9 + $0x2a8] sm:$0xff]
      %v555 = vld [vmem:[#allocation9 + $0x2b0] sm:$0xff]
      %v556 = vld [vmem:[#allocation9 + $0x2b8] sm:$0xff]
      %v557 = vld [vmem:[#allocation9 + $0x2c0] sm:$0xff]
      %v558 = vld [vmem:[#allocation9 + $0x2c8] sm:$0xff]
      %v559 = vld [vmem:[#allocation9 + $0x2d0] sm:$0xff]
      %v560 = vld [vmem:[#allocation9 + $0x2d8] sm:$0xff]
      %v561 = vld [vmem:[#allocation9 + $0x2e0] sm:$0xff]
      %v562 = vld [vmem:[#allocation9 + $0x2e8] sm:$0xff]
      %v563 = vld [vmem:[#allocation9 + $0x2f0] sm:$0xff]
      %v564 = vld [vmem:[#allocation9 + $0x2f8] sm:$0xff]
      %v565 = vld [vmem:[#allocation9 + $0x300] sm:$0xff]
      %v566 = vld [vmem:[#allocation9 + $0x308] sm:$0xff]
      %v567 = vld [vmem:[#allocation9 + $0x310] sm:$0xff]
      %v568 = vld [vmem:[#allocation9 + $0x318] sm:$0xff]
      %v569 = vld [vmem:[#allocation9 + $0x320] sm:$0xff]
      %v570 = vld [vmem:[#allocation9 + $0x328] sm:$0xff]
      %v571 = vld [vmem:[#allocation9 + $0x330] sm:$0xff]
      %v572 = vld [vmem:[#allocation9 + $0x338] sm:$0xff]
      %v573 = vld [vmem:[#allocation9 + $0x340] sm:$0xff]
      %v574 = vld [vmem:[#allocation9 + $0x348] sm:$0xff]
      %v575 = vld [vmem:[#allocation9 + $0x350] sm:$0xff]
      %v576 = vld [vmem:[#allocation9 + $0x358] sm:$0xff]
      %v577 = vld [vmem:[#allocation9 + $0x360] sm:$0xff]
      %v578 = vld [vmem:[#allocation9 + $0x368] sm:$0xff]
      %v579 = vld [vmem:[#allocation9 + $0x370] sm:$0xff]
      %v580 = vld [vmem:[#allocation9 + $0x378] sm:$0xff]
      %v581 = vld [vmem:[#allocation9 + $0x380] sm:$0xff]
      %v582 = vld [vmem:[#allocation9 + $0x388] sm:$0xff]
      %v583 = vld [vmem:[#allocation9 + $0x390] sm:$0xff]
      %v584 = vld [vmem:[#allocation9 + $0x398] sm:$0xff]
      %v585 = vld [vmem:[#allocation9 + $0x3a0] sm:$0xff]
      %v586 = vld [vmem:[#allocation9 + $0x3a8] sm:$0xff]
      %v587 = vld [vmem:[#allocation9 + $0x3b0] sm:$0xff]
      %v588 = vld [vmem:[#allocation9 + $0x3b8] sm:$0xff]
      %v589 = vld [vmem:[#allocation9 + $0x3c0] sm:$0xff]
      %v590 = vld [vmem:[#allocation9 + $0x3c8] sm:$0xff]
      %v591 = vld [vmem:[#allocation9 + $0x3d0] sm:$0xff]
      %v592 = vld [vmem:[#allocation9 + $0x3d8] sm:$0xff]
      %v593 = vld [vmem:[#allocation9 + $0x3e0] sm:$0xff]
      %v594 = vld [vmem:[#allocation9 + $0x3e8] sm:$0xff]
      %v595 = vld [vmem:[#allocation9 + $0x3f0] sm:$0xff]
      %v596 = vld [vmem:[#allocation9 + $0x3f8] sm:$0xff]
      %v597 = vld [vmem:[#allocation9 + $0x400] sm:$0xff]
      %v598 = vld [vmem:[#allocation9 + $0x408] sm:$0xff]
      %v599 = vld [vmem:[#allocation9 + $0x410] sm:$0xff]
      %v600 = vld [vmem:[#allocation9 + $0x418] sm:$0xff]
      %v601 = vld [vmem:[#allocation9 + $0x420] sm:$0xff]
      %v602 = vld [vmem:[#allocation9 + $0x428] sm:$0xff]
      %v603 = vld [vmem:[#allocation9 + $0x430] sm:$0xff]
      %v604 = vld [vmem:[#allocation9 + $0x438] sm:$0xff]
      %v605 = vld [vmem:[#allocation9 + $0x440] sm:$0xff]
      %v606 = vld [vmem:[#allocation9 + $0x448] sm:$0xff]
      %v607 = vld [vmem:[#allocation9 + $0x450] sm:$0xff]
      %v608 = vld [vmem:[#allocation9 + $0x458] sm:$0xff]
      %v609 = vld [vmem:[#allocation9 + $0x460] sm:$0xff]
      %v610 = vld [vmem:[#allocation9 + $0x468] sm:$0xff]
      %v611 = vld [vmem:[#allocation9 + $0x470] sm:$0xff]
      %v612 = vld [vmem:[#allocation9 + $0x478] sm:$0xff]
      %v613 = vld [vmem:[#allocation9 + $0x480] sm:$0xff]
      %v614 = vld [vmem:[#allocation9 + $0x488] sm:$0xff]
      %v615 = vld [vmem:[#allocation9 + $0x490] sm:$0xff]
      %v616 = vld [vmem:[#allocation9 + $0x498] sm:$0xff]
      %v617 = vld [vmem:[#allocation9 + $0x4a0] sm:$0xff]
      %v618 = vld [vmem:[#allocation9 + $0x4a8] sm:$0xff]
      %v619 = vld [vmem:[#allocation9 + $0x4b0] sm:$0xff]
      %v620 = vld [vmem:[#allocation9 + $0x4b8] sm:$0xff]
      %v621 = vld [vmem:[#allocation9 + $0x4c0] sm:$0xff]
      %v622 = vld [vmem:[#allocation9 + $0x4c8] sm:$0xff]
      %v623 = vld [vmem:[#allocation9 + $0x4d0] sm:$0xff]
      %v624 = vld [vmem:[#allocation9 + $0x4d8] sm:$0xff]
      %v625 = vld [vmem:[#allocation9 + $0x4e0] sm:$0xff]
      %v626 = vld [vmem:[#allocation9 + $0x4e8] sm:$0xff]
      %v627 = vld [vmem:[#allocation9 + $0x4f0] sm:$0xff]
      %v628 = vld [vmem:[#allocation9 + $0x4f8] sm:$0xff]
      %v629 = vld [vmem:[#allocation9 + $0x500] sm:$0xff]
      %v630 = vld [vmem:[#allocation9 + $0x508] sm:$0xff]
      %v631 = vld [vmem:[#allocation9 + $0x510] sm:$0xff]
      %v632 = vld [vmem:[#allocation9 + $0x518] sm:$0xff]
      %v633 = vld [vmem:[#allocation9 + $0x520] sm:$0xff]
      %v634 = vld [vmem:[#allocation9 + $0x528] sm:$0xff]
      %v635 = vld [vmem:[#allocation9 + $0x530] sm:$0xff]
      %v636 = vld [vmem:[#allocation9 + $0x538] sm:$0xff]
      %v637 = vld [vmem:[#allocation9 + $0x540] sm:$0xff]
      %v638 = vld [vmem:[#allocation9 + $0x548] sm:$0xff]
      %v639 = vld [vmem:[#allocation9 + $0x550] sm:$0xff]
      %v640 = vld [vmem:[#allocation9 + $0x558] sm:$0xff]
      %v641 = vld [vmem:[#allocation9 + $0x560] sm:$0xff]
      %v642 = vld [vmem:[#allocation9 + $0x568] sm:$0xff]
      %v643 = vld [vmem:[#allocation9 + $0x570] sm:$0xff]
      %v644 = vld [vmem:[#allocation9 + $0x578] sm:$0xff]
      %v645 = vld [vmem:[#allocation9 + $0x580] sm:$0xff]
      %v646 = vld [vmem:[#allocation9 + $0x588] sm:$0xff]
      %v647 = vld [vmem:[#allocation9 + $0x590] sm:$0xff]
      %v648 = vld [vmem:[#allocation9 + $0x598] sm:$0xff]
      %v649 = vld [vmem:[#allocation9 + $0x5a0] sm:$0xff]
      %v650 = vld [vmem:[#allocation9 + $0x5a8] sm:$0xff]
      %v651 = vld [vmem:[#allocation9 + $0x5b0] sm:$0xff]
      %v652 = vld [vmem:[#allocation9 + $0x5b8] sm:$0xff]
      %v653 = vld [vmem:[#allocation9 + $0x5c0] sm:$0xff]
      %v654 = vld [vmem:[#allocation9 + $0x5c8] sm:$0xff]
      %v655 = vld [vmem:[#allocation9 + $0x5d0] sm:$0xff]
      %v656 = vld [vmem:[#allocation9 + $0x5d8] sm:$0xff]
      %v657 = vld [vmem:[#allocation9 + $0x5e0] sm:$0xff]
      %v658 = vld [vmem:[#allocation9 + $0x5e8] sm:$0xff]
      %v659 = vld [vmem:[#allocation9 + $0x5f0] sm:$0xff]
      %v660 = vld [vmem:[#allocation9 + $0x5f8] sm:$0xff]
      %v661 = vld [vmem:[#allocation9 + $0x600] sm:$0xff]
      %v662 = vld [vmem:[#allocation9 + $0x608] sm:$0xff]
      %v663 = vld [vmem:[#allocation9 + $0x610] sm:$0xff]
      %v664 = vld [vmem:[#allocation9 + $0x618] sm:$0xff]
      %v665 = vld [vmem:[#allocation9 + $0x620] sm:$0xff]
      %v666 = vld [vmem:[#allocation9 + $0x628] sm:$0xff]
      %v667 = vld [vmem:[#allocation9 + $0x630] sm:$0xff]
      %v668 = vld [vmem:[#allocation9 + $0x638] sm:$0xff]
      %v669 = vld [vmem:[#allocation9 + $0x640] sm:$0xff]
      %v670 = vld [vmem:[#allocation9 + $0x648] sm:$0xff]
      %v671 = vld [vmem:[#allocation9 + $0x650] sm:$0xff]
      %v672 = vld [vmem:[#allocation9 + $0x658] sm:$0xff]
      %v673 = vld [vmem:[#allocation9 + $0x660] sm:$0xff]
      %v674 = vld [vmem:[#allocation9 + $0x668] sm:$0xff]
      %v675 = vld [vmem:[#allocation9 + $0x670] sm:$0xff]
      %v676 = vld [vmem:[#allocation9 + $0x678] sm:$0xff]
      %v677 = vld [vmem:[#allocation9 + $0x680] sm:$0xff]
      %v678 = vld [vmem:[#allocation9 + $0x688] sm:$0xff]
      %v679 = vld [vmem:[#allocation9 + $0x690] sm:$0xff]
      %v680 = vld [vmem:[#allocation9 + $0x698] sm:$0xff]
      %v681 = vld [vmem:[#allocation9 + $0x6a0] sm:$0xff]
      %v682 = vld [vmem:[#allocation9 + $0x6a8] sm:$0xff]
      %v683 = vld [vmem:[#allocation9 + $0x6b0] sm:$0xff]
      %v684 = vld [vmem:[#allocation9 + $0x6b8] sm:$0xff]
      %v685 = vld [vmem:[#allocation9 + $0x6c0] sm:$0xff]
      %v686 = vld [vmem:[#allocation9 + $0x6c8] sm:$0xff]
      %v687 = vld [vmem:[#allocation9 + $0x6d0] sm:$0xff]
      %v688 = vld [vmem:[#allocation9 + $0x6d8] sm:$0xff]
      %v689 = vld [vmem:[#allocation9 + $0x6e0] sm:$0xff]
      %v690 = vld [vmem:[#allocation9 + $0x6e8] sm:$0xff]
      %v691 = vld [vmem:[#allocation9 + $0x6f0] sm:$0xff]
      %v692 = vld [vmem:[#allocation9 + $0x6f8] sm:$0xff]
      %v693 = vld [vmem:[#allocation9 + $0x700] sm:$0xff]
      %v694 = vld [vmem:[#allocation9 + $0x708] sm:$0xff]
      %v695 = vld [vmem:[#allocation9 + $0x710] sm:$0xff]
      %v696 = vld [vmem:[#allocation9 + $0x718] sm:$0xff]
      %v697 = vld [vmem:[#allocation9 + $0x720] sm:$0xff]
      %v698 = vld [vmem:[#allocation9 + $0x728] sm:$0xff]
      %v699 = vld [vmem:[#allocation9 + $0x730] sm:$0xff]
      %v700 = vld [vmem:[#allocation9 + $0x738] sm:$0xff]
      %v701 = vld [vmem:[#allocation9 + $0x740] sm:$0xff]
      %v702 = vld [vmem:[#allocation9 + $0x748] sm:$0xff]
      %v703 = vld [vmem:[#allocation9 + $0x750] sm:$0xff]
      %v704 = vld [vmem:[#allocation9 + $0x758] sm:$0xff]
      %v705 = vld [vmem:[#allocation9 + $0x760] sm:$0xff]
      %v706 = vld [vmem:[#allocation9 + $0x768] sm:$0xff]
      %v707 = vld [vmem:[#allocation9 + $0x770] sm:$0xff]
      %v708 = vld [vmem:[#allocation9 + $0x778] sm:$0xff]
      %v709 = vld [vmem:[#allocation9 + $0x780] sm:$0xff]
      %v710 = vld [vmem:[#allocation9 + $0x788] sm:$0xff]
      %v711 = vld [vmem:[#allocation9 + $0x790] sm:$0xff]
      %v712 = vld [vmem:[#allocation9 + $0x798] sm:$0xff]
      %v713 = vld [vmem:[#allocation9 + $0x7a0] sm:$0xff]
      %v714 = vld [vmem:[#allocation9 + $0x7a8] sm:$0xff]
      %v715 = vld [vmem:[#allocation9 + $0x7b0] sm:$0xff]
      %v716 = vld [vmem:[#allocation9 + $0x7b8] sm:$0xff]
      %v717 = vld [vmem:[#allocation9 + $0x7c0] sm:$0xff]
      %v718 = vld [vmem:[#allocation9 + $0x7c8] sm:$0xff]
      %v719 = vld [vmem:[#allocation9 + $0x7d0] sm:$0xff]
      %v720 = vld [vmem:[#allocation9 + $0x7d8] sm:$0xff]
      %v721 = vld [vmem:[#allocation9 + $0x7e0] sm:$0xff]
      %v722 = vld [vmem:[#allocation9 + $0x7e8] sm:$0xff]
      %v723 = vld [vmem:[#allocation9 + $0x7f0] sm:$0xff]
      %v724 = vld [vmem:[#allocation9 + $0x7f8] sm:$0xff]
      %v725 = vld [vmem:[#allocation9 + $0x800] sm:$0xff]
      %v726 = vld [vmem:[#allocation9 + $0x808] sm:$0xff]
      %v727 = vld [vmem:[#allocation9 + $0x810] sm:$0xff]
      %v728 = vld [vmem:[#allocation9 + $0x818] sm:$0xff]
      %v729 = vld [vmem:[#allocation9 + $0x820] sm:$0xff]
      %v730 = vld [vmem:[#allocation9 + $0x828] sm:$0xff]
      %v731 = vld [vmem:[#allocation9 + $0x830] sm:$0xff]
      %v732 = vld [vmem:[#allocation9 + $0x838] sm:$0xff]
      %v733 = vld [vmem:[#allocation9 + $0x840] sm:$0xff]
      %v734 = vld [vmem:[#allocation9 + $0x848] sm:$0xff]
      %v735 = vld [vmem:[#allocation9 + $0x850] sm:$0xff]
      %v736 = vld [vmem:[#allocation9 + $0x858] sm:$0xff]
      %v737 = vld [vmem:[#allocation9 + $0x860] sm:$0xff]
      %v738 = vld [vmem:[#allocation9 + $0x868] sm:$0xff]
      %v739 = vld [vmem:[#allocation9 + $0x870] sm:$0xff]
      %v740 = vld [vmem:[#allocation9 + $0x878] sm:$0xff]
      %v741 = vld [vmem:[#allocation9 + $0x880] sm:$0xff]
      %v742 = vld [vmem:[#allocation9 + $0x888] sm:$0xff]
      %v743 = vld [vmem:[#allocation9 + $0x890] sm:$0xff]
      %v744 = vld [vmem:[#allocation9 + $0x898] sm:$0xff]
      %v745 = vld [vmem:[#allocation9 + $0x8a0] sm:$0xff]
      %v746 = vld [vmem:[#allocation9 + $0x8a8] sm:$0xff]
      %v747 = vld [vmem:[#allocation9 + $0x8b0] sm:$0xff]
      %v748 = vld [vmem:[#allocation9 + $0x8b8] sm:$0xff]
      %v749 = vld [vmem:[#allocation9 + $0x8c0] sm:$0xff]
      %v750 = vld [vmem:[#allocation9 + $0x8c8] sm:$0xff]
      %v751 = vld [vmem:[#allocation9 + $0x8d0] sm:$0xff]
      %v752 = vld [vmem:[#allocation9 + $0x8d8] sm:$0xff]
      %v753 = vld [vmem:[#allocation9 + $0x8e0] sm:$0xff]
      %v754 = vld [vmem:[#allocation9 + $0x8e8] sm:$0xff]
      %v755 = vld [vmem:[#allocation9 + $0x8f0] sm:$0xff]
      %v756 = vld [vmem:[#allocation9 + $0x8f8] sm:$0xff]
      %v757 = vld [vmem:[#allocation9 + $0x900] sm:$0xff]
      %v758 = vld [vmem:[#allocation9 + $0x908] sm:$0xff]
      %v759 = vld [vmem:[#allocation9 + $0x910] sm:$0xff]
      %v760 = vld [vmem:[#allocation9 + $0x918] sm:$0xff]
      %v761 = vld [vmem:[#allocation9 + $0x920] sm:$0xff]
      %v762 = vld [vmem:[#allocation9 + $0x928] sm:$0xff]
      %v763 = vld [vmem:[#allocation9 + $0x930] sm:$0xff]
      %v764 = vld [vmem:[#allocation9 + $0x938] sm:$0xff]
      %v765 = vld [vmem:[#allocation9 + $0x940] sm:$0xff]
      %v766 = vld [vmem:[#allocation9 + $0x948] sm:$0xff]
      %v767 = vld [vmem:[#allocation9 + $0x950] sm:$0xff]
      %v768 = vld [vmem:[#allocation9 + $0x958] sm:$0xff]
      %v769 = vld [vmem:[#allocation9 + $0x960] sm:$0xff]
      %v770 = vld [vmem:[#allocation9 + $0x968] sm:$0xff]
      %v771 = vld [vmem:[#allocation9 + $0x970] sm:$0xff]
      %v772 = vld [vmem:[#allocation9 + $0x978] sm:$0xff]
      %v773 = vld [vmem:[#allocation9 + $0x980] sm:$0xff]
      %v774 = vld [vmem:[#allocation9 + $0x988] sm:$0xff]
      %v775 = vld [vmem:[#allocation9 + $0x990] sm:$0xff]
      %v776 = vld [vmem:[#allocation9 + $0x998] sm:$0xff]
      %v777 = vld [vmem:[#allocation9 + $0x9a0] sm:$0xff]
      %v778 = vld [vmem:[#allocation9 + $0x9a8] sm:$0xff]
      %v779 = vld [vmem:[#allocation9 + $0x9b0] sm:$0xff]
      %v780 = vld [vmem:[#allocation9 + $0x9b8] sm:$0xff]
      %v781 = vld [vmem:[#allocation9 + $0x9c0] sm:$0xff]
      %v782 = vld [vmem:[#allocation9 + $0x9c8] sm:$0xff]
      %v783 = vld [vmem:[#allocation9 + $0x9d0] sm:$0xff]
      %v784 = vld [vmem:[#allocation9 + $0x9d8] sm:$0xff]
      %v785 = vld [vmem:[#allocation9 + $0x9e0] sm:$0xff]
      %v786 = vld [vmem:[#allocation9 + $0x9e8] sm:$0xff]
      %v787 = vld [vmem:[#allocation9 + $0x9f0] sm:$0xff]
      %v788 = vld [vmem:[#allocation9 + $0x9f8] sm:$0xff]
      %v789 = vld [vmem:[#allocation9 + $0xa00] sm:$0xff]
      %v790 = vld [vmem:[#allocation9 + $0xa08] sm:$0xff]
      %v791 = vld [vmem:[#allocation9 + $0xa10] sm:$0xff]
      %v792 = vld [vmem:[#allocation9 + $0xa18] sm:$0xff]
      %v793 = vld [vmem:[#allocation9 + $0xa20] sm:$0xff]
      %v794 = vld [vmem:[#allocation9 + $0xa28] sm:$0xff]
      %v795 = vld [vmem:[#allocation9 + $0xa30] sm:$0xff]
      %v796 = vld [vmem:[#allocation9 + $0xa38] sm:$0xff]
      %v797 = vld [vmem:[#allocation9 + $0xa40] sm:$0xff]
      %v798 = vld [vmem:[#allocation9 + $0xa48] sm:$0xff]
      %v799 = vld [vmem:[#allocation9 + $0xa50] sm:$0xff]
      %v800 = vld [vmem:[#allocation9 + $0xa58] sm:$0xff]
      %v801 = vld [vmem:[#allocation9 + $0xa60] sm:$0xff]
      %v802 = vld [vmem:[#allocation9 + $0xa68] sm:$0xff]
      %v803 = vld [vmem:[#allocation9 + $0xa70] sm:$0xff]
      %v804 = vld [vmem:[#allocation9 + $0xa78] sm:$0xff]
      %v805 = vld [vmem:[#allocation9 + $0xa80] sm:$0xff]
      %v806 = vld [vmem:[#allocation9 + $0xa88] sm:$0xff]
      %v807 = vld [vmem:[#allocation9 + $0xa90] sm:$0xff]
      %v808 = vld [vmem:[#allocation9 + $0xa98] sm:$0xff]
      %v809 = vld [vmem:[#allocation9 + $0xaa0] sm:$0xff]
      %v810 = vld [vmem:[#allocation9 + $0xaa8] sm:$0xff]
      %v811 = vld [vmem:[#allocation9 + $0xab0] sm:$0xff]
      %v812 = vld [vmem:[#allocation9 + $0xab8] sm:$0xff]
      %v813 = vld [vmem:[#allocation9 + $0xac0] sm:$0xff]
      %v814 = vld [vmem:[#allocation9 + $0xac8] sm:$0xff]
      %v815 = vld [vmem:[#allocation9 + $0xad0] sm:$0xff]
      %v816 = vld [vmem:[#allocation9 + $0xad8] sm:$0xff]
      %v817 = vld [vmem:[#allocation9 + $0xae0] sm:$0xff]
      %v818 = vld [vmem:[#allocation9 + $0xae8] sm:$0xff]
      %v819 = vld [vmem:[#allocation9 + $0xaf0] sm:$0xff]
      %v820 = vld [vmem:[#allocation9 + $0xaf8] sm:$0xff]
      %v821 = vld [vmem:[#allocation9 + $0xb00] sm:$0xff]
      %v822 = vld [vmem:[#allocation9 + $0xb08] sm:$0xff]
      %v823 = vld [vmem:[#allocation9 + $0xb10] sm:$0xff]
      %v824 = vld [vmem:[#allocation9 + $0xb18] sm:$0xff]
      %v825 = vld [vmem:[#allocation9 + $0xb20] sm:$0xff]
      %v826 = vld [vmem:[#allocation9 + $0xb28] sm:$0xff]
      %v827 = vld [vmem:[#allocation9 + $0xb30] sm:$0xff]
      %v828 = vld [vmem:[#allocation9 + $0xb38] sm:$0xff]
      %v829 = vld [vmem:[#allocation9 + $0xb40] sm:$0xff]
      %v830 = vld [vmem:[#allocation9 + $0xb48] sm:$0xff]
      %v831 = vld [vmem:[#allocation9 + $0xb50] sm:$0xff]
      %v832 = vld [vmem:[#allocation9 + $0xb58] sm:$0xff]
      %v833 = vld [vmem:[#allocation9 + $0xb60] sm:$0xff]
      %v834 = vld [vmem:[#allocation9 + $0xb68] sm:$0xff]
      %v835 = vld [vmem:[#allocation9 + $0xb70] sm:$0xff]
      %v836 = vld [vmem:[#allocation9 + $0xb78] sm:$0xff]
      %v837 = vld [vmem:[#allocation9 + $0xb80] sm:$0xff]
      %v838 = vld [vmem:[#allocation9 + $0xb88] sm:$0xff]
      %v839 = vld [vmem:[#allocation9 + $0xb90] sm:$0xff]
      %v840 = vld [vmem:[#allocation9 + $0xb98] sm:$0xff]
      %v841 = vld [vmem:[#allocation9 + $0xba0] sm:$0xff]
      %v842 = vld [vmem:[#allocation9 + $0xba8] sm:$0xff]
      %v843 = vld [vmem:[#allocation9 + $0xbb0] sm:$0xff]
      %v844 = vld [vmem:[#allocation9 + $0xbb8] sm:$0xff]
      %v845 = vld [vmem:[#allocation9 + $0xbc0] sm:$0xff]
      %v846 = vld [vmem:[#allocation9 + $0xbc8] sm:$0xff]
      %v847 = vld [vmem:[#allocation9 + $0xbd0] sm:$0xff]
      %v848 = vld [vmem:[#allocation9 + $0xbd8] sm:$0xff]
      %v849 = vld [vmem:[#allocation9 + $0xbe0] sm:$0xff]
      %v850 = vld [vmem:[#allocation9 + $0xbe8] sm:$0xff]
      %v851 = vld [vmem:[#allocation9 + $0xbf0] sm:$0xff]
      %v852 = vld [vmem:[#allocation9 + $0xbf8] sm:$0xff]
      %v853 = vld [vmem:[#allocation11] sm:$0x3f]
      %v855 = vlaneseq
      %v856 = vshrl.u32 %v855, 7
      %v857 = vsub.s32 0, %v856
      %v858 = vrot.slane %v853, %v857
      %v859 = vlaneseq
      %v860 = vshrl.u32 %v859, 7
      %v861 = vsub.s32 1, %v860
      %v862 = vrot.slane %v853, %v861
      %v863 = vlaneseq
      %v864 = vshrl.u32 %v863, 7
      %v865 = vsub.s32 2, %v864
      %v866 = vrot.slane %v853, %v865
      %v867 = vlaneseq
      %v868 = vshrl.u32 %v867, 7
      %v869 = vsub.s32 3, %v868
      %v870 = vrot.slane %v853, %v869
      %v871 = vlaneseq
      %v872 = vshrl.u32 %v871, 7
      %v873 = vsub.s32 4, %v872
      %v874 = vrot.slane %v853, %v873
      %v875 = vlaneseq
      %v876 = vshrl.u32 %v875, 7
      %v877 = vsub.s32 5, %v876
      %v878 = vrot.slane %v853, %v877
      %v886 = vcombine.high %v468, %v468
      %v888 = vunpack.c.l.s4 1983009808
      %v889 = vunpack.c.0.s8 %v888
      %v890 = vlaneseq
      %v891 = vshrl.u32 %v890, 7
      %v892 = vsub.s32 %v889, %v891
      %v893 = vrot.slane %v468, %v892
      %v895 = vunpack.c.l.s4 1983009808
      %v896 = vunpack.c.0.s8 %v895
      %v897 = vlaneseq
      %v898 = vshrl.u32 %v897, 7
      %v899 = vsub.s32 %v896, %v898
      %v900 = vrot.slane %v886, %v899
      %v901 = vcombine.high %v893, %v893
      %v902 = vcombine.high %v900, %v900
      %907 = vmatprep.subr.mxu0 %v560
      %908 = vmatpush1.msra.mxu0 %v559
      %909 = vmatprep.subr.mxu0 %v554
      %910 = vmatpush1.msra.mxu0 %v553
      %911 = vmatprep.subr.mxu0 %v548
      %912 = vmatpush1.msra.mxu0 %v547
      %913 = vmatprep.subr.mxu0 %v542
      %914 = vmatpush1.msra.mxu0 %v541
      %915 = vmatprep.subr.mxu0 %v536
      %916 = vmatpush1.msra.mxu0 %v535
      %917 = vmatprep.subr.mxu0 %v530
      %918 = vmatpush1.msra.mxu0 %v529
      %919 = vmatprep.subr.mxu0 %v524
      %920 = vmatpush1.msra.mxu0 %v523
      %921 = vmatprep.subr.mxu0 %v518
      %922 = vmatpush1.msra.mxu0 %v517
      %923 = vmatprep.subr.mxu0 %v512
      %924 = vmatpush1.msra.mxu0 %v511
      %925 = vmatprep.subr.mxu0 %v506
      %926 = vmatpush1.msra.mxu0 %v505
      %927 = vmatprep.subr.mxu0 %v500
      %928 = vmatpush1.msra.mxu0 %v499
      %929 = vmatprep.subr.mxu0 %v494
      %930 = vmatpush1.msra.mxu0 %v493
      %931 = vmatprep.subr.mxu0 %v488
      %932 = vmatpush1.msra.mxu0 %v487
      %933 = vmatprep.subr.mxu0 %v482
      %934 = vmatpush1.msra.mxu0 %v481
      %935 = vmatprep.subr.mxu0 %v476
      %936 = vmatpush1.msra.mxu0 %v475
      %937 = vmatprep.subr.mxu0 %v470
      %938 = vmatpush1.msra.mxu0 %v469
      %939 = vmatprep.subr.mxu0 %v656
      %940 = vmatpush2.msra.mxu0 %v655
      %941 = vmatprep.subr.mxu0 %v650
      %942 = vmatpush2.msra.mxu0 %v649
      %943 = vmatprep.subr.mxu0 %v644
      %944 = vmatpush2.msra.mxu0 %v643
      %945 = vmatprep.subr.mxu0 %v638
      %946 = vmatpush2.msra.mxu0 %v637
      %947 = vmatprep.subr.mxu0 %v632
      %948 = vmatpush2.msra.mxu0 %v631
      %949 = vmatprep.subr.mxu0 %v626
      %950 = vmatpush2.msra.mxu0 %v625
      %951 = vmatprep.subr.mxu0 %v620
      %952 = vmatpush2.msra.mxu0 %v619
      %953 = vmatprep.subr.mxu0 %v614
      %954 = vmatpush2.msra.mxu0 %v613
      %955 = vmatprep.subr.mxu0 %v608
      %956 = vmatpush2.msra.mxu0 %v607
      %957 = vmatprep.subr.mxu0 %v602
      %958 = vmatpush2.msra.mxu0 %v601
      %959 = vmatprep.subr.mxu0 %v596
      %960 = vmatpush2.msra.mxu0 %v595
      %961 = vmatprep.subr.mxu0 %v590
      %962 = vmatpush2.msra.mxu0 %v589
      %963 = vmatprep.subr.mxu0 %v584
      %964 = vmatpush2.msra.mxu0 %v583
      %965 = vmatprep.subr.mxu0 %v578
      %966 = vmatpush2.msra.mxu0 %v577
      %967 = vmatprep.subr.mxu0 %v572
      %968 = vmatpush2.msra.mxu0 %v571
      %969 = vmatprep.subr.mxu0 %v566
      %970 = vmatpush2.msra.mxu0 %v565
      %971 = vmatprep.mubr.f32.mxu0 %v901
      %972 = vmatmul.mubr.f32.gmra.mxu0 %v893
      %v973 = vpop.f32.mrf.mxu0
      %v974 = vadd.f32 %v858, %v973
      %v975 = vpop.f32.mrf.mxu0
      %v976 = vadd.f32 %v862, %v975
      %977 = vdwg.mxu0
      %978 = vmatprep.subr.mxu0 %v752
      %979 = vmatpush1.msra.mxu0 %v751
      %980 = vmatprep.subr.mxu0 %v746
      %981 = vmatpush1.msra.mxu0 %v745
      %982 = vmatprep.subr.mxu0 %v740
      %983 = vmatpush1.msra.mxu0 %v739
      %984 = vmatprep.subr.mxu0 %v734
      %985 = vmatpush1.msra.mxu0 %v733
      %986 = vmatprep.subr.mxu0 %v728
      %987 = vmatpush1.msra.mxu0 %v727
      %988 = vmatprep.subr.mxu0 %v722
      %989 = vmatpush1.msra.mxu0 %v721
      %990 = vmatprep.subr.mxu0 %v716
      %991 = vmatpush1.msra.mxu0 %v715
      %992 = vmatprep.subr.mxu0 %v710
      %993 = vmatpush1.msra.mxu0 %v709
      %994 = vmatprep.subr.mxu0 %v704
      %995 = vmatpush1.msra.mxu0 %v703
      %996 = vmatprep.subr.mxu0 %v698
      %997 = vmatpush1.msra.mxu0 %v697
      %998 = vmatprep.subr.mxu0 %v692
      %999 = vmatpush1.msra.mxu0 %v691
      %1000 = vmatprep.subr.mxu0 %v686
      %1001 = vmatpush1.msra.mxu0 %v685
      %1002 = vmatprep.subr.mxu0 %v680
      %1003 = vmatpush1.msra.mxu0 %v679
      %1004 = vmatprep.subr.mxu0 %v674
      %1005 = vmatpush1.msra.mxu0 %v673
      %1006 = vmatprep.subr.mxu0 %v668
      %1007 = vmatpush1.msra.mxu0 %v667
      %1008 = vmatprep.subr.mxu0 %v662
      %1009 = vmatpush1.msra.mxu0 %v661
      %1010 = vmatprep.subr.mxu0 %v848
      %1011 = vmatpush2.msra.mxu0 %v847
      %1012 = vmatprep.subr.mxu0 %v842
      %1013 = vmatpush2.msra.mxu0 %v841
      %1014 = vmatprep.subr.mxu0 %v836
      %1015 = vmatpush2.msra.mxu0 %v835
      %1016 = vmatprep.subr.mxu0 %v830
      %1017 = vmatpush2.msra.mxu0 %v829
      %1018 = vmatprep.subr.mxu0 %v824
      %1019 = vmatpush2.msra.mxu0 %v823
      %1020 = vmatprep.subr.mxu0 %v818
      %1021 = vmatpush2.msra.mxu0 %v817
      %1022 = vmatprep.subr.mxu0 %v812
      %1023 = vmatpush2.msra.mxu0 %v811
      %1024 = vmatprep.subr.mxu0 %v806
      %1025 = vmatpush2.msra.mxu0 %v805
      %1026 = vmatprep.subr.mxu0 %v800
      %1027 = vmatpush2.msra.mxu0 %v799
      %1028 = vmatprep.subr.mxu0 %v794
      %1029 = vmatpush2.msra.mxu0 %v793
      %1030 = vmatprep.subr.mxu0 %v788
      %1031 = vmatpush2.msra.mxu0 %v787
      %1032 = vmatprep.subr.mxu0 %v782
      %1033 = vmatpush2.msra.mxu0 %v781
      %1034 = vmatprep.subr.mxu0 %v776
      %1035 = vmatpush2.msra.mxu0 %v775
      %1036 = vmatprep.subr.mxu0 %v770
      %1037 = vmatpush2.msra.mxu0 %v769
      %1038 = vmatprep.subr.mxu0 %v764
      %1039 = vmatpush2.msra.mxu0 %v763
      %1040 = vmatprep.subr.mxu0 %v758
      %1041 = vmatpush2.msra.mxu0 %v757
      %1042 = vmatprep.mubr.f32.mxu0 %v902
      %1043 = vmatmul.mubr.f32.gmra.mxu0 %v900
      %v1044 = vpop.f32.mrf.mxu0
      %v1045 = vadd.f32 %v974, %v1044
      %v1046 = vpop.f32.mrf.mxu0
      %v1047 = vadd.f32 %v976, %v1046
      %1048 = vdwg.mxu0
      %1049 = vmatprep.subr.mxu0 %v562
      %1050 = vmatpush1.msra.mxu0 %v561
      %1051 = vmatprep.subr.mxu0 %v556
      %1052 = vmatpush1.msra.mxu0 %v555
      %1053 = vmatprep.subr.mxu0 %v550
      %1054 = vmatpush1.msra.mxu0 %v549
      %1055 = vmatprep.subr.mxu0 %v544
      %1056 = vmatpush1.msra.mxu0 %v543
      %1057 = vmatprep.subr.mxu0 %v538
      %1058 = vmatpush1.msra.mxu0 %v537
      %1059 = vmatprep.subr.mxu0 %v532
      %1060 = vmatpush1.msra.mxu0 %v531
      %1061 = vmatprep.subr.mxu0 %v526
      %1062 = vmatpush1.msra.mxu0 %v525
      %1063 = vmatprep.subr.mxu0 %v520
      %1064 = vmatpush1.msra.mxu0 %v519
      %1065 = vmatprep.subr.mxu0 %v514
      %1066 = vmatpush1.msra.mxu0 %v513
      %1067 = vmatprep.subr.mxu0 %v508
      %1068 = vmatpush1.msra.mxu0 %v507
      %1069 = vmatprep.subr.mxu0 %v502
      %1070 = vmatpush1.msra.mxu0 %v501
      %1071 = vmatprep.subr.mxu0 %v496
      %1072 = vmatpush1.msra.mxu0 %v495
      %1073 = vmatprep.subr.mxu0 %v490
      %1074 = vmatpush1.msra.mxu0 %v489
      %1075 = vmatprep.subr.mxu0 %v484
      %1076 = vmatpush1.msra.mxu0 %v483
      %1077 = vmatprep.subr.mxu0 %v478
      %1078 = vmatpush1.msra.mxu0 %v477
      %1079 = vmatprep.subr.mxu0 %v472
      %1080 = vmatpush1.msra.mxu0 %v471
      %1081 = vmatprep.subr.mxu0 %v658
      %1082 = vmatpush2.msra.mxu0 %v657
      %1083 = vmatprep.subr.mxu0 %v652
      %1084 = vmatpush2.msra.mxu0 %v651
      %1085 = vmatprep.subr.mxu0 %v646
      %1086 = vmatpush2.msra.mxu0 %v645
      %1087 = vmatprep.subr.mxu0 %v640
      %1088 = vmatpush2.msra.mxu0 %v639
      %1089 = vmatprep.subr.mxu0 %v634
      %1090 = vmatpush2.msra.mxu0 %v633
      %1091 = vmatprep.subr.mxu0 %v628
      %1092 = vmatpush2.msra.mxu0 %v627
      %1093 = vmatprep.subr.mxu0 %v622
      %1094 = vmatpush2.msra.mxu0 %v621
      %1095 = vmatprep.subr.mxu0 %v616
      %1096 = vmatpush2.msra.mxu0 %v615
      %1097 = vmatprep.subr.mxu0 %v610
      %1098 = vmatpush2.msra.mxu0 %v609
      %1099 = vmatprep.subr.mxu0 %v604
      %1100 = vmatpush2.msra.mxu0 %v603
      %1101 = vmatprep.subr.mxu0 %v598
      %1102 = vmatpush2.msra.mxu0 %v597
      %1103 = vmatprep.subr.mxu0 %v592
      %1104 = vmatpush2.msra.mxu0 %v591
      %1105 = vmatprep.subr.mxu0 %v586
      %1106 = vmatpush2.msra.mxu0 %v585
      %1107 = vmatprep.subr.mxu0 %v580
      %1108 = vmatpush2.msra.mxu0 %v579
      %1109 = vmatprep.subr.mxu0 %v574
      %1110 = vmatpush2.msra.mxu0 %v573
      %1111 = vmatprep.subr.mxu0 %v568
      %1112 = vmatpush2.msra.mxu0 %v567
      %1113 = vmatprep.mubr.f32.mxu0 %v901
      %1114 = vmatmul.mubr.f32.gmra.mxu0 %v893
      %v1115 = vpop.f32.mrf.mxu0
      %v1116 = vadd.f32 %v866, %v1115
      %v1117 = vpop.f32.mrf.mxu0
      %v1118 = vadd.f32 %v870, %v1117
      %1119 = vdwg.mxu0
      %1120 = vmatprep.subr.mxu0 %v754
      %1121 = vmatpush1.msra.mxu0 %v753
      %1122 = vmatprep.subr.mxu0 %v748
      %1123 = vmatpush1.msra.mxu0 %v747
      %1124 = vmatprep.subr.mxu0 %v742
      %1125 = vmatpush1.msra.mxu0 %v741
      %1126 = vmatprep.subr.mxu0 %v736
      %1127 = vmatpush1.msra.mxu0 %v735
      %1128 = vmatprep.subr.mxu0 %v730
      %1129 = vmatpush1.msra.mxu0 %v729
      %1130 = vmatprep.subr.mxu0 %v724
      %1131 = vmatpush1.msra.mxu0 %v723
      %1132 = vmatprep.subr.mxu0 %v718
      %1133 = vmatpush1.msra.mxu0 %v717
      %1134 = vmatprep.subr.mxu0 %v712
      %1135 = vmatpush1.msra.mxu0 %v711
      %1136 = vmatprep.subr.mxu0 %v706
      %1137 = vmatpush1.msra.mxu0 %v705
      %1138 = vmatprep.subr.mxu0 %v700
      %1139 = vmatpush1.msra.mxu0 %v699
      %1140 = vmatprep.subr.mxu0 %v694
      %1141 = vmatpush1.msra.mxu0 %v693
      %1142 = vmatprep.subr.mxu0 %v688
      %1143 = vmatpush1.msra.mxu0 %v687
      %1144 = vmatprep.subr.mxu0 %v682
      %1145 = vmatpush1.msra.mxu0 %v681
      %1146 = vmatprep.subr.mxu0 %v676
      %1147 = vmatpush1.msra.mxu0 %v675
      %1148 = vmatprep.subr.mxu0 %v670
      %1149 = vmatpush1.msra.mxu0 %v669
      %1150 = vmatprep.subr.mxu0 %v664
      %1151 = vmatpush1.msra.mxu0 %v663
      %1152 = vmatprep.subr.mxu0 %v850
      %1153 = vmatpush2.msra.mxu0 %v849
      %1154 = vmatprep.subr.mxu0 %v844
      %1155 = vmatpush2.msra.mxu0 %v843
      %1156 = vmatprep.subr.mxu0 %v838
      %1157 = vmatpush2.msra.mxu0 %v837
      %1158 = vmatprep.subr.mxu0 %v832
      %1159 = vmatpush2.msra.mxu0 %v831
      %1160 = vmatprep.subr.mxu0 %v826
      %1161 = vmatpush2.msra.mxu0 %v825
      %1162 = vmatprep.subr.mxu0 %v820
      %1163 = vmatpush2.msra.mxu0 %v819
      %1164 = vmatprep.subr.mxu0 %v814
      %1165 = vmatpush2.msra.mxu0 %v813
      %1166 = vmatprep.subr.mxu0 %v808
      %1167 = vmatpush2.msra.mxu0 %v807
      %1168 = vmatprep.subr.mxu0 %v802
      %1169 = vmatpush2.msra.mxu0 %v801
      %1170 = vmatprep.subr.mxu0 %v796
      %1171 = vmatpush2.msra.mxu0 %v795
      %1172 = vmatprep.subr.mxu0 %v790
      %1173 = vmatpush2.msra.mxu0 %v789
      %1174 = vmatprep.subr.mxu0 %v784
      %1175 = vmatpush2.msra.mxu0 %v783
      %1176 = vmatprep.subr.mxu0 %v778
      %1177 = vmatpush2.msra.mxu0 %v777
      %1178 = vmatprep.subr.mxu0 %v772
      %1179 = vmatpush2.msra.mxu0 %v771
      %1180 = vmatprep.subr.mxu0 %v766
      %1181 = vmatpush2.msra.mxu0 %v765
      %1182 = vmatprep.subr.mxu0 %v760
      %1183 = vmatpush2.msra.mxu0 %v759
      %1184 = vmatprep.mubr.f32.mxu0 %v902
      %1185 = vmatmul.mubr.f32.gmra.mxu0 %v900
      %v1186 = vpop.f32.mrf.mxu0
      %v1187 = vadd.f32 %v1116, %v1186
      %v1188 = vpop.f32.mrf.mxu0
      %v1189 = vadd.f32 %v1118, %v1188
      %1190 = vdwg.mxu0
      %1191 = vmatprep.subr.mxu0 %v564
      %1192 = vmatpush1.msra.mxu0 %v563
      %1193 = vmatprep.subr.mxu0 %v558
      %1194 = vmatpush1.msra.mxu0 %v557
      %1195 = vmatprep.subr.mxu0 %v552
      %1196 = vmatpush1.msra.mxu0 %v551
      %1197 = vmatprep.subr.mxu0 %v546
      %1198 = vmatpush1.msra.mxu0 %v545
      %1199 = vmatprep.subr.mxu0 %v540
      %1200 = vmatpush1.msra.mxu0 %v539
      %1201 = vmatprep.subr.mxu0 %v534
      %1202 = vmatpush1.msra.mxu0 %v533
      %1203 = vmatprep.subr.mxu0 %v528
      %1204 = vmatpush1.msra.mxu0 %v527
      %1205 = vmatprep.subr.mxu0 %v522
      %1206 = vmatpush1.msra.mxu0 %v521
      %1207 = vmatprep.subr.mxu0 %v516
      %1208 = vmatpush1.msra.mxu0 %v515
      %1209 = vmatprep.subr.mxu0 %v510
      %1210 = vmatpush1.msra.mxu0 %v509
      %1211 = vmatprep.subr.mxu0 %v504
      %1212 = vmatpush1.msra.mxu0 %v503
      %1213 = vmatprep.subr.mxu0 %v498
      %1214 = vmatpush1.msra.mxu0 %v497
      %1215 = vmatprep.subr.mxu0 %v492
      %1216 = vmatpush1.msra.mxu0 %v491
      %1217 = vmatprep.subr.mxu0 %v486
      %1218 = vmatpush1.msra.mxu0 %v485
      %1219 = vmatprep.subr.mxu0 %v480
      %1220 = vmatpush1.msra.mxu0 %v479
      %1221 = vmatprep.subr.mxu0 %v474
      %1222 = vmatpush1.msra.mxu0 %v473
      %1223 = vmatprep.subr.mxu0 %v660
      %1224 = vmatpush2.msra.mxu0 %v659
      %1225 = vmatprep.subr.mxu0 %v654
      %1226 = vmatpush2.msra.mxu0 %v653
      %1227 = vmatprep.subr.mxu0 %v648
      %1228 = vmatpush2.msra.mxu0 %v647
      %1229 = vmatprep.subr.mxu0 %v642
      %1230 = vmatpush2.msra.mxu0 %v641
      %1231 = vmatprep.subr.mxu0 %v636
      %1232 = vmatpush2.msra.mxu0 %v635
      %1233 = vmatprep.subr.mxu0 %v630
      %1234 = vmatpush2.msra.mxu0 %v629
      %1235 = vmatprep.subr.mxu0 %v624
      %1236 = vmatpush2.msra.mxu0 %v623
      %1237 = vmatprep.subr.mxu0 %v618
      %1238 = vmatpush2.msra.mxu0 %v617
      %1239 = vmatprep.subr.mxu0 %v612
      %1240 = vmatpush2.msra.mxu0 %v611
      %1241 = vmatprep.subr.mxu0 %v606
      %1242 = vmatpush2.msra.mxu0 %v605
      %1243 = vmatprep.subr.mxu0 %v600
      %1244 = vmatpush2.msra.mxu0 %v599
      %1245 = vmatprep.subr.mxu0 %v594
      %1246 = vmatpush2.msra.mxu0 %v593
      %1247 = vmatprep.subr.mxu0 %v588
      %1248 = vmatpush2.msra.mxu0 %v587
      %1249 = vmatprep.subr.mxu0 %v582
      %1250 = vmatpush2.msra.mxu0 %v581
      %1251 = vmatprep.subr.mxu0 %v576
      %1252 = vmatpush2.msra.mxu0 %v575
      %1253 = vmatprep.subr.mxu0 %v570
      %1254 = vmatpush2.msra.mxu0 %v569
      %1255 = vmatprep.mubr.f32.mxu0 %v901
      %1256 = vmatmul.mubr.f32.gmra.mxu0 %v893
      %v1257 = vpop.f32.mrf.mxu0
      %v1258 = vadd.f32 %v874, %v1257
      %v1259 = vpop.f32.mrf.mxu0
      %v1260 = vadd.f32 %v878, %v1259
      %1261 = vdwg.mxu0
      %1262 = vmatprep.subr.mxu0 %v756
      %1263 = vmatpush1.msra.mxu0 %v755
      %1264 = vmatprep.subr.mxu0 %v750
      %1265 = vmatpush1.msra.mxu0 %v749
      %1266 = vmatprep.subr.mxu0 %v744
      %1267 = vmatpush1.msra.mxu0 %v743
      %1268 = vmatprep.subr.mxu0 %v738
      %1269 = vmatpush1.msra.mxu0 %v737
      %1270 = vmatprep.subr.mxu0 %v732
      %1271 = vmatpush1.msra.mxu0 %v731
      %1272 = vmatprep.subr.mxu0 %v726
      %1273 = vmatpush1.msra.mxu0 %v725
      %1274 = vmatprep.subr.mxu0 %v720
      %1275 = vmatpush1.msra.mxu0 %v719
      %1276 = vmatprep.subr.mxu0 %v714
      %1277 = vmatpush1.msra.mxu0 %v713
      %1278 = vmatprep.subr.mxu0 %v708
      %1279 = vmatpush1.msra.mxu0 %v707
      %1280 = vmatprep.subr.mxu0 %v702
      %1281 = vmatpush1.msra.mxu0 %v701
      %1282 = vmatprep.subr.mxu0 %v696
      %1283 = vmatpush1.msra.mxu0 %v695
      %1284 = vmatprep.subr.mxu0 %v690
      %1285 = vmatpush1.msra.mxu0 %v689
      %1286 = vmatprep.subr.mxu0 %v684
      %1287 = vmatpush1.msra.mxu0 %v683
      %1288 = vmatprep.subr.mxu0 %v678
      %1289 = vmatpush1.msra.mxu0 %v677
      %1290 = vmatprep.subr.mxu0 %v672
      %1291 = vmatpush1.msra.mxu0 %v671
      %1292 = vmatprep.subr.mxu0 %v666
      %1293 = vmatpush1.msra.mxu0 %v665
      %1294 = vmatprep.subr.mxu0 %v852
      %1295 = vmatpush2.msra.mxu0 %v851
      %1296 = vmatprep.subr.mxu0 %v846
      %1297 = vmatpush2.msra.mxu0 %v845
      %1298 = vmatprep.subr.mxu0 %v840
      %1299 = vmatpush2.msra.mxu0 %v839
      %1300 = vmatprep.subr.mxu0 %v834
      %1301 = vmatpush2.msra.mxu0 %v833
      %1302 = vmatprep.subr.mxu0 %v828
      %1303 = vmatpush2.msra.mxu0 %v827
      %1304 = vmatprep.subr.mxu0 %v822
      %1305 = vmatpush2.msra.mxu0 %v821
      %1306 = vmatprep.subr.mxu0 %v816
      %1307 = vmatpush2.msra.mxu0 %v815
      %1308 = vmatprep.subr.mxu0 %v810
      %1309 = vmatpush2.msra.mxu0 %v809
      %1310 = vmatprep.subr.mxu0 %v804
      %1311 = vmatpush2.msra.mxu0 %v803
      %1312 = vmatprep.subr.mxu0 %v798
      %1313 = vmatpush2.msra.mxu0 %v797
      %1314 = vmatprep.subr.mxu0 %v792
      %1315 = vmatpush2.msra.mxu0 %v791
      %1316 = vmatprep.subr.mxu0 %v786
      %1317 = vmatpush2.msra.mxu0 %v785
      %1318 = vmatprep.subr.mxu0 %v780
      %1319 = vmatpush2.msra.mxu0 %v779
      %1320 = vmatprep.subr.mxu0 %v774
      %1321 = vmatpush2.msra.mxu0 %v773
      %1322 = vmatprep.subr.mxu0 %v768
      %1323 = vmatpush2.msra.mxu0 %v767
      %1324 = vmatprep.subr.mxu0 %v762
      %1325 = vmatpush2.msra.mxu0 %v761
      %1326 = vmatprep.mubr.f32.mxu0 %v902
      %1327 = vmatmul.mubr.f32.gmra.mxu0 %v900
      %v1328 = vpop.f32.mrf.mxu0
      %v1329 = vadd.f32 %v1258, %v1328
      %v1330 = vpop.f32.mrf.mxu0
      %v1331 = vadd.f32 %v1260, %v1330
      %1332 = vdwg.mxu0
      %v1333 = vmax.f32 %v1045, 0.0
      %v1334 = vmax.f32 %v1047, 0.0
      %v1335 = vmax.f32 %v1187, 0.0
      %v1336 = vmax.f32 %v1189, 0.0
      %v1337 = vmax.f32 %v1329, 0.0
      %v1338 = vmax.f32 %v1331, 0.0
      %v1339 = vld [vmem:[#allocation12] sm:$0xff]
      %v1340 = vld [vmem:[#allocation12 + $0x8] sm:$0xff]
      %v1341 = vld [vmem:[#allocation12 + $0x10] sm:$0xff]
      %v1342 = vld [vmem:[#allocation12 + $0x18] sm:$0xff]
      %v1343 = vld [vmem:[#allocation12 + $0x20] sm:$0xff]
      %v1344 = vld [vmem:[#allocation12 + $0x28] sm:$0xff]
      %v1345 = vld [vmem:[#allocation12 + $0x30] sm:$0xff]
      %v1346 = vld [vmem:[#allocation12 + $0x38] sm:$0xff]
      %v1347 = vld [vmem:[#allocation12 + $0x40] sm:$0xff]
      %v1348 = vld [vmem:[#allocation12 + $0x48] sm:$0xff]
      %v1349 = vld [vmem:[#allocation12 + $0x50] sm:$0xff]
      %v1350 = vld [vmem:[#allocation12 + $0x58] sm:$0xff]
      %v1351 = vld [vmem:[#allocation12 + $0x60] sm:$0xff]
      %v1352 = vld [vmem:[#allocation12 + $0x68] sm:$0xff]
      %v1353 = vld [vmem:[#allocation12 + $0x70] sm:$0xff]
      %v1354 = vld [vmem:[#allocation12 + $0x78] sm:$0xff]
      %v1355 = vld [vmem:[#allocation12 + $0x80] sm:$0xff]
      %v1356 = vld [vmem:[#allocation12 + $0x88] sm:$0xff]
      %v1357 = vld [vmem:[#allocation12 + $0x90] sm:$0xff]
      %v1358 = vld [vmem:[#allocation12 + $0x98] sm:$0xff]
      %v1359 = vld [vmem:[#allocation12 + $0xa0] sm:$0xff]
      %v1360 = vld [vmem:[#allocation12 + $0xa8] sm:$0xff]
      %v1361 = vld [vmem:[#allocation12 + $0xb0] sm:$0xff]
      %v1362 = vld [vmem:[#allocation12 + $0xb8] sm:$0xff]
      %v1363 = vld [vmem:[#allocation12 + $0xc0] sm:$0xff]
      %v1364 = vld [vmem:[#allocation12 + $0xc8] sm:$0xff]
      %v1365 = vld [vmem:[#allocation12 + $0xd0] sm:$0xff]
      %v1366 = vld [vmem:[#allocation12 + $0xd8] sm:$0xff]
      %v1367 = vld [vmem:[#allocation12 + $0xe0] sm:$0xff]
      %v1368 = vld [vmem:[#allocation12 + $0xe8] sm:$0xff]
      %v1369 = vld [vmem:[#allocation12 + $0xf0] sm:$0xff]
      %v1370 = vld [vmem:[#allocation12 + $0xf8] sm:$0xff]
      %v1371 = vld [vmem:[#allocation12 + $0x100] sm:$0xff]
      %v1372 = vld [vmem:[#allocation12 + $0x108] sm:$0xff]
      %v1373 = vld [vmem:[#allocation12 + $0x110] sm:$0xff]
      %v1374 = vld [vmem:[#allocation12 + $0x118] sm:$0xff]
      %v1375 = vld [vmem:[#allocation12 + $0x120] sm:$0xff]
      %v1376 = vld [vmem:[#allocation12 + $0x128] sm:$0xff]
      %v1377 = vld [vmem:[#allocation12 + $0x130] sm:$0xff]
      %v1378 = vld [vmem:[#allocation12 + $0x138] sm:$0xff]
      %v1379 = vld [vmem:[#allocation12 + $0x140] sm:$0xff]
      %v1380 = vld [vmem:[#allocation12 + $0x148] sm:$0xff]
      %v1381 = vld [vmem:[#allocation12 + $0x150] sm:$0xff]
      %v1382 = vld [vmem:[#allocation12 + $0x158] sm:$0xff]
      %v1383 = vld [vmem:[#allocation12 + $0x160] sm:$0xff]
      %v1384 = vld [vmem:[#allocation12 + $0x168] sm:$0xff]
      %v1385 = vld [vmem:[#allocation12 + $0x170] sm:$0xff]
      %v1386 = vld [vmem:[#allocation12 + $0x178] sm:$0xff]
      %v1387 = vld [vmem:[#allocation12 + $0x180] sm:$0xff]
      %v1388 = vld [vmem:[#allocation12 + $0x188] sm:$0xff]
      %v1389 = vld [vmem:[#allocation12 + $0x190] sm:$0xff]
      %v1390 = vld [vmem:[#allocation12 + $0x198] sm:$0xff]
      %v1391 = vld [vmem:[#allocation12 + $0x1a0] sm:$0xff]
      %v1392 = vld [vmem:[#allocation12 + $0x1a8] sm:$0xff]
      %v1393 = vld [vmem:[#allocation12 + $0x1b0] sm:$0xff]
      %v1394 = vld [vmem:[#allocation12 + $0x1b8] sm:$0xff]
      %v1395 = vld [vmem:[#allocation12 + $0x1c0] sm:$0xff]
      %v1396 = vld [vmem:[#allocation12 + $0x1c8] sm:$0xff]
      %v1397 = vld [vmem:[#allocation12 + $0x1d0] sm:$0xff]
      %v1398 = vld [vmem:[#allocation12 + $0x1d8] sm:$0xff]
      %v1399 = vld [vmem:[#allocation12 + $0x1e0] sm:$0xff]
      %v1400 = vld [vmem:[#allocation12 + $0x1e8] sm:$0xff]
      %v1401 = vld [vmem:[#allocation12 + $0x1f0] sm:$0xff]
      %v1402 = vld [vmem:[#allocation12 + $0x1f8] sm:$0xff]
      %v1403 = vld [vmem:[#allocation12 + $0x200] sm:$0xff]
      %v1404 = vld [vmem:[#allocation12 + $0x208] sm:$0xff]
      %v1405 = vld [vmem:[#allocation12 + $0x210] sm:$0xff]
      %v1406 = vld [vmem:[#allocation12 + $0x218] sm:$0xff]
      %v1407 = vld [vmem:[#allocation12 + $0x220] sm:$0xff]
      %v1408 = vld [vmem:[#allocation12 + $0x228] sm:$0xff]
      %v1409 = vld [vmem:[#allocation12 + $0x230] sm:$0xff]
      %v1410 = vld [vmem:[#allocation12 + $0x238] sm:$0xff]
      %v1411 = vld [vmem:[#allocation12 + $0x240] sm:$0xff]
      %v1412 = vld [vmem:[#allocation12 + $0x248] sm:$0xff]
      %v1413 = vld [vmem:[#allocation12 + $0x250] sm:$0xff]
      %v1414 = vld [vmem:[#allocation12 + $0x258] sm:$0xff]
      %v1415 = vld [vmem:[#allocation12 + $0x260] sm:$0xff]
      %v1416 = vld [vmem:[#allocation12 + $0x268] sm:$0xff]
      %v1417 = vld [vmem:[#allocation12 + $0x270] sm:$0xff]
      %v1418 = vld [vmem:[#allocation12 + $0x278] sm:$0xff]
      %v1419 = vld [vmem:[#allocation12 + $0x280] sm:$0xff]
      %v1420 = vld [vmem:[#allocation12 + $0x288] sm:$0xff]
      %v1421 = vld [vmem:[#allocation12 + $0x290] sm:$0xff]
      %v1422 = vld [vmem:[#allocation12 + $0x298] sm:$0xff]
      %v1423 = vld [vmem:[#allocation12 + $0x2a0] sm:$0xff]
      %v1424 = vld [vmem:[#allocation12 + $0x2a8] sm:$0xff]
      %v1425 = vld [vmem:[#allocation12 + $0x2b0] sm:$0xff]
      %v1426 = vld [vmem:[#allocation12 + $0x2b8] sm:$0xff]
      %v1427 = vld [vmem:[#allocation12 + $0x2c0] sm:$0xff]
      %v1428 = vld [vmem:[#allocation12 + $0x2c8] sm:$0xff]
      %v1429 = vld [vmem:[#allocation12 + $0x2d0] sm:$0xff]
      %v1430 = vld [vmem:[#allocation12 + $0x2d8] sm:$0xff]
      %v1431 = vld [vmem:[#allocation12 + $0x2e0] sm:$0xff]
      %v1432 = vld [vmem:[#allocation12 + $0x2e8] sm:$0xff]
      %v1433 = vld [vmem:[#allocation12 + $0x2f0] sm:$0xff]
      %v1434 = vld [vmem:[#allocation12 + $0x2f8] sm:$0xff]
      %v1435 = vld [vmem:[#allocation14] sm:$0x1]
      %v1437 = vlaneseq
      %v1438 = vshrl.u32 %v1437, 7
      %v1439 = vsub.s32 0, %v1438
      %v1440 = vrot.slane %v1435, %v1439
      %1442 = vmatprep.subr.mxu0 0.0
      %1443 = vmatpush1.msra.mxu0 %v1354
      %1444 = vmatprep.subr.mxu0 0.0
      %1445 = vmatpush1.msra.mxu0 %v1353
      %1446 = vmatprep.subr.mxu0 0.0
      %1447 = vmatpush1.msra.mxu0 %v1352
      %1448 = vmatprep.subr.mxu0 0.0
      %1449 = vmatpush1.msra.mxu0 %v1351
      %1450 = vmatprep.subr.mxu0 0.0
      %1451 = vmatpush1.msra.mxu0 %v1350
      %1452 = vmatprep.subr.mxu0 0.0
      %1453 = vmatpush1.msra.mxu0 %v1349
      %1454 = vmatprep.subr.mxu0 0.0
      %1455 = vmatpush1.msra.mxu0 %v1348
      %1456 = vmatprep.subr.mxu0 0.0
      %1457 = vmatpush1.msra.mxu0 %v1347
      %1458 = vmatprep.subr.mxu0 0.0
      %1459 = vmatpush1.msra.mxu0 %v1346
      %1460 = vmatprep.subr.mxu0 0.0
      %1461 = vmatpush1.msra.mxu0 %v1345
      %1462 = vmatprep.subr.mxu0 0.0
      %1463 = vmatpush1.msra.mxu0 %v1344
      %1464 = vmatprep.subr.mxu0 0.0
      %1465 = vmatpush1.msra.mxu0 %v1343
      %1466 = vmatprep.subr.mxu0 0.0
      %1467 = vmatpush1.msra.mxu0 %v1342
      %1468 = vmatprep.subr.mxu0 0.0
      %1469 = vmatpush1.msra.mxu0 %v1341
      %1470 = vmatprep.subr.mxu0 0.0
      %1471 = vmatpush1.msra.mxu0 %v1340
      %1472 = vmatprep.subr.mxu0 0.0
      %1473 = vmatpush1.msra.mxu0 %v1339
      %1474 = vmatprep.subr.mxu0 0.0
      %1475 = vmatpush2.msra.mxu0 %v1370
      %1476 = vmatprep.subr.mxu0 0.0
      %1477 = vmatpush2.msra.mxu0 %v1369
      %1478 = vmatprep.subr.mxu0 0.0
      %1479 = vmatpush2.msra.mxu0 %v1368
      %1480 = vmatprep.subr.mxu0 0.0
      %1481 = vmatpush2.msra.mxu0 %v1367
      %1482 = vmatprep.subr.mxu0 0.0
      %1483 = vmatpush2.msra.mxu0 %v1366
      %1484 = vmatprep.subr.mxu0 0.0
      %1485 = vmatpush2.msra.mxu0 %v1365
      %1486 = vmatprep.subr.mxu0 0.0
      %1487 = vmatpush2.msra.mxu0 %v1364
      %1488 = vmatprep.subr.mxu0 0.0
      %1489 = vmatpush2.msra.mxu0 %v1363
      %1490 = vmatprep.subr.mxu0 0.0
      %1491 = vmatpush2.msra.mxu0 %v1362
      %1492 = vmatprep.subr.mxu0 0.0
      %1493 = vmatpush2.msra.mxu0 %v1361
      %1494 = vmatprep.subr.mxu0 0.0
      %1495 = vmatpush2.msra.mxu0 %v1360
      %1496 = vmatprep.subr.mxu0 0.0
      %1497 = vmatpush2.msra.mxu0 %v1359
      %1498 = vmatprep.subr.mxu0 0.0
      %1499 = vmatpush2.msra.mxu0 %v1358
      %1500 = vmatprep.subr.mxu0 0.0
      %1501 = vmatpush2.msra.mxu0 %v1357
      %1502 = vmatprep.subr.mxu0 0.0
      %1503 = vmatpush2.msra.mxu0 %v1356
      %1504 = vmatprep.subr.mxu0 0.0
      %1505 = vmatpush2.msra.mxu0 %v1355
      %1506 = vmatprep.mubr.f32.mxu0 %v1334
      %1507 = vmatmul.mubr.f32.gmra.mxu0 %v1333
      %v1508 = vpop.f32.mrf.mxu0
      %v1509 = vadd.f32 %v1440, %v1508
      %v1510 = vpop.f32.mrf.mxu0
      %1511 = vdwg.mxu0
      %1512 = vmatprep.subr.mxu0 0.0
      %1513 = vmatpush1.msra.mxu0 %v1386
      %1514 = vmatprep.subr.mxu0 0.0
      %1515 = vmatpush1.msra.mxu0 %v1385
      %1516 = vmatprep.subr.mxu0 0.0
      %1517 = vmatpush1.msra.mxu0 %v1384
      %1518 = vmatprep.subr.mxu0 0.0
      %1519 = vmatpush1.msra.mxu0 %v1383
      %1520 = vmatprep.subr.mxu0 0.0
      %1521 = vmatpush1.msra.mxu0 %v1382
      %1522 = vmatprep.subr.mxu0 0.0
      %1523 = vmatpush1.msra.mxu0 %v1381
      %1524 = vmatprep.subr.mxu0 0.0
      %1525 = vmatpush1.msra.mxu0 %v1380
      %1526 = vmatprep.subr.mxu0 0.0
      %1527 = vmatpush1.msra.mxu0 %v1379
      %1528 = vmatprep.subr.mxu0 0.0
      %1529 = vmatpush1.msra.mxu0 %v1378
      %1530 = vmatprep.subr.mxu0 0.0
      %1531 = vmatpush1.msra.mxu0 %v1377
      %1532 = vmatprep.subr.mxu0 0.0
      %1533 = vmatpush1.msra.mxu0 %v1376
      %1534 = vmatprep.subr.mxu0 0.0
      %1535 = vmatpush1.msra.mxu0 %v1375
      %1536 = vmatprep.subr.mxu0 0.0
      %1537 = vmatpush1.msra.mxu0 %v1374
      %1538 = vmatprep.subr.mxu0 0.0
      %1539 = vmatpush1.msra.mxu0 %v1373
      %1540 = vmatprep.subr.mxu0 0.0
      %1541 = vmatpush1.msra.mxu0 %v1372
      %1542 = vmatprep.subr.mxu0 0.0
      %1543 = vmatpush1.msra.mxu0 %v1371
      %1544 = vmatprep.subr.mxu0 0.0
      %1545 = vmatpush2.msra.mxu0 %v1402
      %1546 = vmatprep.subr.mxu0 0.0
      %1547 = vmatpush2.msra.mxu0 %v1401
      %1548 = vmatprep.subr.mxu0 0.0
      %1549 = vmatpush2.msra.mxu0 %v1400
      %1550 = vmatprep.subr.mxu0 0.0
      %1551 = vmatpush2.msra.mxu0 %v1399
      %1552 = vmatprep.subr.mxu0 0.0
      %1553 = vmatpush2.msra.mxu0 %v1398
      %1554 = vmatprep.subr.mxu0 0.0
      %1555 = vmatpush2.msra.mxu0 %v1397
      %1556 = vmatprep.subr.mxu0 0.0
      %1557 = vmatpush2.msra.mxu0 %v1396
      %1558 = vmatprep.subr.mxu0 0.0
      %1559 = vmatpush2.msra.mxu0 %v1395
      %1560 = vmatprep.subr.mxu0 0.0
      %1561 = vmatpush2.msra.mxu0 %v1394
      %1562 = vmatprep.subr.mxu0 0.0
      %1563 = vmatpush2.msra.mxu0 %v1393
      %1564 = vmatprep.subr.mxu0 0.0
      %1565 = vmatpush2.msra.mxu0 %v1392
      %1566 = vmatprep.subr.mxu0 0.0
      %1567 = vmatpush2.msra.mxu0 %v1391
      %1568 = vmatprep.subr.mxu0 0.0
      %1569 = vmatpush2.msra.mxu0 %v1390
      %1570 = vmatprep.subr.mxu0 0.0
      %1571 = vmatpush2.msra.mxu0 %v1389
      %1572 = vmatprep.subr.mxu0 0.0
      %1573 = vmatpush2.msra.mxu0 %v1388
      %1574 = vmatprep.subr.mxu0 0.0
      %1575 = vmatpush2.msra.mxu0 %v1387
      %1576 = vmatprep.mubr.f32.mxu0 %v1336
      %1577 = vmatmul.mubr.f32.gmra.mxu0 %v1335
      %v1578 = vpop.f32.mrf.mxu0
      %v1579 = vadd.f32 %v1509, %v1578
      %v1580 = vpop.f32.mrf.mxu0
      %1581 = vdwg.mxu0
      %1582 = vmatprep.subr.mxu0 0.0
      %1583 = vmatpush1.msra.mxu0 %v1418
      %1584 = vmatprep.subr.mxu0 0.0
      %1585 = vmatpush1.msra.mxu0 %v1417
      %1586 = vmatprep.subr.mxu0 0.0
      %1587 = vmatpush1.msra.mxu0 %v1416
      %1588 = vmatprep.subr.mxu0 0.0
      %1589 = vmatpush1.msra.mxu0 %v1415
      %1590 = vmatprep.subr.mxu0 0.0
      %1591 = vmatpush1.msra.mxu0 %v1414
      %1592 = vmatprep.subr.mxu0 0.0
      %1593 = vmatpush1.msra.mxu0 %v1413
      %1594 = vmatprep.subr.mxu0 0.0
      %1595 = vmatpush1.msra.mxu0 %v1412
      %1596 = vmatprep.subr.mxu0 0.0
      %1597 = vmatpush1.msra.mxu0 %v1411
      %1598 = vmatprep.subr.mxu0 0.0
      %1599 = vmatpush1.msra.mxu0 %v1410
      %1600 = vmatprep.subr.mxu0 0.0
      %1601 = vmatpush1.msra.mxu0 %v1409
      %1602 = vmatprep.subr.mxu0 0.0
      %1603 = vmatpush1.msra.mxu0 %v1408
      %1604 = vmatprep.subr.mxu0 0.0
      %1605 = vmatpush1.msra.mxu0 %v1407
      %1606 = vmatprep.subr.mxu0 0.0
      %1607 = vmatpush1.msra.mxu0 %v1406
      %1608 = vmatprep.subr.mxu0 0.0
      %1609 = vmatpush1.msra.mxu0 %v1405
      %1610 = vmatprep.subr.mxu0 0.0
      %1611 = vmatpush1.msra.mxu0 %v1404
      %1612 = vmatprep.subr.mxu0 0.0
      %1613 = vmatpush1.msra.mxu0 %v1403
      %1614 = vmatprep.subr.mxu0 0.0
      %1615 = vmatpush2.msra.mxu0 %v1434
      %1616 = vmatprep.subr.mxu0 0.0
      %1617 = vmatpush2.msra.mxu0 %v1433
      %1618 = vmatprep.subr.mxu0 0.0
      %1619 = vmatpush2.msra.mxu0 %v1432
      %1620 = vmatprep.subr.mxu0 0.0
      %1621 = vmatpush2.msra.mxu0 %v1431
      %1622 = vmatprep.subr.mxu0 0.0
      %1623 = vmatpush2.msra.mxu0 %v1430
      %1624 = vmatprep.subr.mxu0 0.0
      %1625 = vmatpush2.msra.mxu0 %v1429
      %1626 = vmatprep.subr.mxu0 0.0
      %1627 = vmatpush2.msra.mxu0 %v1428
      %1628 = vmatprep.subr.mxu0 0.0
      %1629 = vmatpush2.msra.mxu0 %v1427
      %1630 = vmatprep.subr.mxu0 0.0
      %1631 = vmatpush2.msra.mxu0 %v1426
      %1632 = vmatprep.subr.mxu0 0.0
      %1633 = vmatpush2.msra.mxu0 %v1425
      %1634 = vmatprep.subr.mxu0 0.0
      %1635 = vmatpush2.msra.mxu0 %v1424
      %1636 = vmatprep.subr.mxu0 0.0
      %1637 = vmatpush2.msra.mxu0 %v1423
      %1638 = vmatprep.subr.mxu0 0.0
      %1639 = vmatpush2.msra.mxu0 %v1422
      %1640 = vmatprep.subr.mxu0 0.0
      %1641 = vmatpush2.msra.mxu0 %v1421
      %1642 = vmatprep.subr.mxu0 0.0
      %1643 = vmatpush2.msra.mxu0 %v1420
      %1644 = vmatprep.subr.mxu0 0.0
      %1645 = vmatpush2.msra.mxu0 %v1419
      %1646 = vmatprep.mubr.f32.mxu0 %v1338
      %1647 = vmatmul.mubr.f32.gmra.mxu0 %v1337
      %v1648 = vpop.f32.mrf.mxu0
      %v1649 = vadd.f32 %v1579, %v1648
      %v1650 = vpop.f32.mrf.mxu0
      %1651 = vdwg.mxu0
      %1652 = vst [vmem:[#allocation15] sm:$0x3] %v1649
    $region65: #{tpu_custom_call.1} parent=1 // pred_fallthru
      _
    // Predicated region
    $region66: #{tpu_custom_call.1} parent=1 // pred_check
      _
    $region67: #{tpu_custom_call.1} parent=1 // pred_check_branch
      %1654 = sbr.rel (0) target = $region69
    $region68: #{tpu_custom_call.1} parent=1 // pred_region
      %s1656 = ssub.s32 32, 32
      %1657 = vsyncadd [#allocation5], %s1656
      %s1659 = sshll.u32 [#allocation15], 4
      %s1660 = int_to_ptr.vmem [resolvable:$true] %s1659
      %1662 = dma.vmem_to_hbm [thread:$0]  %s1660, 32, %s7, [#allocation5]
    $region69: #{tpu_custom_call.1} parent=1 // pred_fallthru
      _
    // Predicated region
    $region70: #{tpu_custom_call.1} parent=1 // pred_check
      _
    $region71: #{tpu_custom_call.1} parent=1 // pred_check_branch
      %1664 = sbr.rel (0) target = $region73
    $region72: #{tpu_custom_call.1} parent=1 // pred_region
      %1665 = dma.done [#allocation5], 32
    $region73: #{tpu_custom_call.1} parent=1 // pred_fallthru
      _
    %1666 = vsyncpa [#allocation4], 1
    %1667 = vsyncpa [#allocation7], 1
    %1668 = vsyncpa [#allocation10], 1
    %1669 = vsyncpa [#allocation13], 1
    %1670 = vsyncpa [#allocation5], 1

</llo_original>
